<compile_context>
chip_gen: v6e
topology: v6e:2x2x1
jax: 0.10.0
libtpu: 0.0.40
codegen_flags: <defaults>
</compile_context>

<pallas_src>
import jax
import jax.numpy as jnp
from jax.experimental import pallas as pl
from jax.experimental.pallas import tpu as pltpu


def _round_up(x, m):
    return ((x + m - 1) // m) * m


def _pad2(a, rows, cols, value=0.0):
    return jnp.pad(a, ((0, rows - a.shape[0]), (0, cols - a.shape[1])),
                   constant_values=value)


# ----------------------------------------------------------------------------
# Kernel 1: GRU encoder.  Single grid step; the whole (padded) sequence lives
# in VMEM.  The input projection for all timesteps is one large matmul; the
# recurrence runs as an in-kernel fori_loop with the hidden state in a VMEM
# scratch.  Context is written time-major: row t*B_pad + b.
# ----------------------------------------------------------------------------
def gru_encoder(x_tm, wx, wh, bx, bh, *, S, B_pad, H_pad):
    SB, E_pad = x_tm.shape
    H3 = 3 * H_pad

    def kernel(x_ref, wx_ref, wh_ref, bx_ref, bh_ref, ctx_ref, h_scr, gi_scr):
        # Hoisted input projection (all timesteps, all 3 gates) -- one MXU matmul.
        gi_scr[...] = (jnp.dot(x_ref[...], wx_ref[...],
                               preferred_element_type=jnp.float32)
                       + bx_ref[...])
        h_scr[...] = jnp.zeros_like(h_scr)

        def step(t, carry):
            row = pl.multiple_of(t * B_pad, B_pad)
            gi = gi_scr[pl.ds(row, B_pad), :]                      # (B_pad, 3H)
            h = h_scr[...]                                         # (B_pad, H) f32
            gh = (jnp.dot(h.astype(wh_ref.dtype), wh_ref[...],
                          preferred_element_type=jnp.float32)
                  + bh_ref[...])                                   # (B_pad, 3H)
            r = jax.nn.sigmoid(gi[:, :H_pad] + gh[:, :H_pad])
            z = jax.nn.sigmoid(gi[:, H_pad:2 * H_pad] + gh[:, H_pad:2 * H_pad])
            n = jnp.tanh(gi[:, 2 * H_pad:] + r * gh[:, 2 * H_pad:])
            h_new = (1.0 - z) * n + z * h
            h_scr[...] = h_new
            ctx_ref[pl.ds(row, B_pad), :] = h_new.astype(ctx_ref.dtype)
            return carry

        # Sequential by construction (recurrence); unroll short sequences.
        jax.lax.fori_loop(0, S, step, 0, unroll=(S <= 16))

    spec2d = lambda a: pl.BlockSpec(a.shape, lambda i: (0, 0))

    return pl.pallas_call(
        kernel,
        out_shape=jax.ShapeDtypeStruct((SB, H_pad), jnp.bfloat16),
        grid_spec=pltpu.PrefetchScalarGridSpec(
            num_scalar_prefetch=0,
            grid=(1,),
            in_specs=[spec2d(x_tm), spec2d(wx), spec2d(wh),
                      spec2d(bx), spec2d(bh)],
            out_specs=pl.BlockSpec((SB, H_pad), lambda i: (0, 0)),
            scratch_shapes=[pltpu.VMEM((B_pad, H_pad), jnp.float32),   # h state
                            pltpu.VMEM((SB, H3), jnp.float32)],        # gi
        ),
        compiler_params=pltpu.CompilerParams(
            dimension_semantics=("arbitrary",)),
    )(x_tm, wx, wh, bx, bh)


# ----------------------------------------------------------------------------
# Kernel 2: lr Linear + log_softmax over the vocab axis, row-tiled.
# Weight/bias stay resident (constant index_map); row axis is "parallel".
# Padded vocab lanes carry a -1e30 bias so they never touch the softmax.
# ----------------------------------------------------------------------------
def linear_logsoftmax(x, w, b, *, tn):
    N, H_pad = x.shape
    V_pad = w.shape[1]

    def kernel(x_ref, w_ref, b_ref, o_ref):
        logits = (jnp.dot(x_ref[...], w_ref[...],
                          preferred_element_type=jnp.float32)
                  + b_ref[...])
        m = jnp.max(logits, axis=-1, keepdims=True)
        shifted = logits - m
        lse = jnp.log(jnp.sum(jnp.exp(shifted), axis=-1, keepdims=True))
        o_ref[...] = shifted - lse

    return pl.pallas_call(
        kernel,
        out_shape=jax.ShapeDtypeStruct((N, V_pad), jnp.float32),
        grid_spec=pltpu.PrefetchScalarGridSpec(
            num_scalar_prefetch=0,
            grid=(N // tn,),
            in_specs=[pl.BlockSpec((tn, H_pad), lambda i: (i, 0)),
                      pl.BlockSpec((H_pad, V_pad), lambda i: (0, 0)),
                      pl.BlockSpec((1, V_pad), lambda i: (0, 0))],
            out_specs=pl.BlockSpec((tn, V_pad), lambda i: (i, 0)),
        ),
        compiler_params=pltpu.CompilerParams(
            dimension_semantics=("parallel",),
            vmem_limit_bytes=64 * 1024 * 1024),
    )(x, w, b)


# ----------------------------------------------------------------------------
# TaggerModel forward: embedding lookup (glue) -> GRU encoder (Pallas) ->
# Linear + log_softmax (Pallas).  Returns (B*S, tgt_vocab) log-probs,
# batch-major rows (row = b*S + s), matching F.log_softmax(self.lr(context), 1).
# ----------------------------------------------------------------------------
def tagger_forward(src, params):
    B, S = src.shape
    E = params["embedding"].shape[1]
    H = params["whr"].shape[0]
    V = params["w_lr"].shape[1]

    B_pad = _round_up(B, 8)
    E_pad = _round_up(E, 128)
    H_pad = _round_up(H, 128)
    V_pad = _round_up(V, 128)

    bf16, f32 = jnp.bfloat16, jnp.float32

    # --- fuse + pad GRU weights: gates concatenated as [r | z | n] lanes ---
    wx = jnp.concatenate([_pad2(params["wxr"], E_pad, H_pad),
                          _pad2(params["wxz"], E_pad, H_pad),
                          _pad2(params["wxn"], E_pad, H_pad)], axis=1).astype(bf16)
    wh = jnp.concatenate([_pad2(params["whr"], H_pad, H_pad),
                          _pad2(params["whz"], H_pad, H_pad),
                          _pad2(params["whn"], H_pad, H_pad)], axis=1).astype(bf16)
    bx = jnp.concatenate([_pad2(params["bxr"], 1, H_pad),
                          _pad2(params["bxz"], 1, H_pad),
                          _pad2(params["bxn"], 1, H_pad)], axis=1).astype(f32)
    bh = jnp.concatenate([_pad2(params["bhr"], 1, H_pad),
                          _pad2(params["bhz"], 1, H_pad),
                          _pad2(params["bhn"], 1, H_pad)], axis=1).astype(f32)

    w_lr = _pad2(params["w_lr"], H_pad, V_pad).astype(bf16)
    b_lr = _pad2(params["b_lr"], 1, V_pad).astype(f32)
    if V_pad > V:   # padded vocab lanes must not contribute to the softmax sum
        lane_ok = (jnp.arange(V_pad) < V)[None, :]
        b_lr = jnp.where(lane_ok, b_lr, jnp.float32(-1e30))

    emb = jnp.pad(params["embedding"], ((0, 0), (0, E_pad - E))).astype(bf16)

    # --- embedding lookup (glue), time-major flattened (row = t*B_pad + b) ---
    src_p = jnp.pad(src, ((0, B_pad - B), (0, 0)))            # pad batch (token 0)
    x_emb = jnp.take(emb, src_p, axis=0)                       # (B_pad, S, E_pad)
    x_tm = jnp.transpose(x_emb, (1, 0, 2)).reshape(S * B_pad, E_pad)

    # --- GRU encoder (Pallas) -> time-major context (S*B_pad, H_pad) bf16 ---
    ctx_tm = gru_encoder(x_tm, wx, wh, bx, bh, S=S, B_pad=B_pad, H_pad=H_pad)

    # time-major -> batch-major row order (row = b*S + s); bf16 so cheap.
    ctx_bm = jnp.transpose(ctx_tm.reshape(S, B_pad, H_pad), (1, 0, 2))
    ctx_bm = ctx_bm.reshape(B_pad * S, H_pad)

    # --- output projection + log_softmax (Pallas, row-tiled) ---
    N = B_pad * S
    TN = min(256, N)
    N_pad = _round_up(N, TN)
    if N_pad > N:
        ctx_bm = jnp.pad(ctx_bm, ((0, N_pad - N), (0, 0)))
    out = linear_logsoftmax(ctx_bm, w_lr, b_lr, tn=TN)         # (N_pad, V_pad)

    return out[:B * S, :V]


# ----------------------------------------------------------------------------
# Deterministic parameter init (PyTorch-style uniform(-1/sqrt(H), 1/sqrt(H)))
# ----------------------------------------------------------------------------
def init_params(key, src_vocab, tgt_vocab, emb_size, rnn_size):
    H, E = rnn_size, emb_size
    scale = 1.0 / jnp.sqrt(jnp.float32(H))
    keys = jax.random.split(key, 16)
    u = lambda k, shape: jax.random.uniform(k, shape, jnp.float32, -scale, scale)
    return {
        "embedding": u(keys[0], (src_vocab, E)),
        "wxr": u(keys[1], (E, H)), "wxz": u(keys[2], (E, H)), "wxn": u(keys[3], (E, H)),
        "whr": u(keys[4], (H, H)), "whz": u(keys[5], (H, H)), "whn": u(keys[6], (H, H)),
        "bxr": u(keys[7], (1, H)), "bxz": u(keys[8], (1, H)), "bxn": u(keys[9], (1, H)),
        "bhr": u(keys[10], (1, H)), "bhz": u(keys[11], (1, H)), "bhn": u(keys[12], (1, H)),
        "w_lr": u(keys[13], (H, tgt_vocab)),
        "b_lr": u(keys[14], (1, tgt_vocab)),
    }


# ----------------------------------------------------------------------------
# Pure-JAX reference.  Uses the same mixed precision as the kernels (bf16
# matmul operands, f32 accumulation/state) so the comparison is apples-to-apples.
# ----------------------------------------------------------------------------
def reference_forward(src, params):
    bf16 = jnp.bfloat16
    B, S = src.shape
    H = params["whr"].shape[0]
    dot = lambda a, b: jnp.dot(a, b, preferred_element_type=jnp.float32)

    emb = params["embedding"].astype(bf16)
    x_emb = jnp.take(emb, src, axis=0)                         # (B, S, E) bf16
    wxr, wxz, wxn = (params[k].astype(bf16) for k in ("wxr", "wxz", "wxn"))
    whr, whz, whn = (params[k].astype(bf16) for k in ("whr", "whz", "whn"))

    h = jnp.zeros((B, H), jnp.float32)
    ctx = []
    for t in range(S):
        x = x_emb[:, t, :]
        hb = h.astype(bf16)
        r = jax.nn.sigmoid(dot(x, wxr) + params["bxr"] + dot(hb, whr) + params["bhr"])
        z = jax.nn.sigmoid(dot(x, wxz) + params["bxz"] + dot(hb, whz) + params["bhz"])
        n = jnp.tanh(dot(x, wxn) + params["bxn"]
                     + r * (dot(hb, whn) + params["bhn"]))
        h = (1.0 - z) * n + z * h
        ctx.append(h)
    context = jnp.stack(ctx, axis=1).reshape(B * S, H)          # batch-major rows
    logits = dot(context.astype(bf16), params["w_lr"].astype(bf16)) + params["b_lr"]
    return jax.nn.log_softmax(logits, axis=1)


if __name__ == "__main__":
    B, S = 2, 8
    SRC_VOCAB, TGT_VOCAB = 16, 16
    EMB, RNN = 32, 32

    key = jax.random.PRNGKey(0)
    k_src, k_par = jax.random.split(key)
    src = jax.random.randint(k_src, (B, S), 0, SRC_VOCAB, dtype=jnp.int32)
    params = init_params(k_par, SRC_VOCAB, TGT_VOCAB, EMB, RNN)

    out = jax.block_until_ready(tagger_forward(src, params))
    ref = jax.block_until_ready(reference_forward(src, params))

    assert out.shape == (B * S, TGT_VOCAB)
    assert bool(jnp.all(jnp.isfinite(out)))
    # bf16 matmul operands in both paths -> loose-but-meaningful tolerance.
    err = float(jnp.max(jnp.abs(out - ref)))
    assert jnp.allclose(out, ref, atol=1e-2, rtol=1e-2), f"max abs err {err}"

    # TODO(synk): CRFLoss / self.generator are unused in forward(), so they are
    # intentionally not implemented.
    print("KERNEL_OK")
</pallas_src>

<mosaic_0001>
module attributes {stable_mosaic.version = 11 : i64} {
  func.func @kernel(%arg0: i32, %arg1: memref<64x128xbf16, #tpu.memory_space<vmem>>, %arg2: memref<128x384xbf16, #tpu.memory_space<vmem>>, %arg3: memref<128x384xbf16, #tpu.memory_space<vmem>>, %arg4: memref<1x384xf32, #tpu.memory_space<vmem>>, %arg5: memref<1x384xf32, #tpu.memory_space<vmem>>, %arg6: memref<64x128xbf16, #tpu.memory_space<vmem>>, %arg7: memref<8x128xf32, #tpu.memory_space<vmem>>, %arg8: memref<64x384xf32, #tpu.memory_space<vmem>>) attributes {dimension_semantics = [#tpu.dimension_semantics<arbitrary>], iteration_bounds = array<i64: 1>, scalar_prefetch = 0 : i64, scratch_operands = 2 : i64, tpu.core_type = #tpu.core_type<tc>, window_params = [{pipeline_mode = #tpu.pipeline_mode<synchronous>, transform_indices = @transform_0, window_bounds = array<i64: 64, 128>}, {pipeline_mode = #tpu.pipeline_mode<synchronous>, transform_indices = @transform_1, window_bounds = array<i64: 128, 384>}, {pipeline_mode = #tpu.pipeline_mode<synchronous>, transform_indices = @transform_2, window_bounds = array<i64: 128, 384>}, {pipeline_mode = #tpu.pipeline_mode<synchronous>, transform_indices = @transform_3, window_bounds = array<i64: 1, 384>}, {pipeline_mode = #tpu.pipeline_mode<synchronous>, transform_indices = @transform_4, window_bounds = array<i64: 1, 384>}, {pipeline_mode = #tpu.pipeline_mode<synchronous>, transform_indices = @transform_5, window_bounds = array<i64: 64, 128>}]} {
    %c0 = arith.constant 0 : index
    %c0_0 = arith.constant 0 : index
    %0 = vector.load %arg1[%c0, %c0_0] : memref<64x128xbf16, #tpu.memory_space<vmem>>, vector<64x128xbf16>
    %c0_1 = arith.constant 0 : index
    %c0_2 = arith.constant 0 : index
    %1 = vector.load %arg2[%c0_1, %c0_2] : memref<128x384xbf16, #tpu.memory_space<vmem>>, vector<128x384xbf16>
    %cst = arith.constant dense<0.000000e+00> : vector<64x384xf32>
    %2 = tpu.matmul %0, %1, %cst {dimension_numbers = #tpu.dot_dimension_numbers<[1], [0], [0], [1], [0, 0, 1, 1], [], []>} : vector<64x128xbf16>, vector<128x384xbf16>, vector<64x384xf32> -> vector<64x384xf32>
    %c0_3 = arith.constant 0 : index
    %c0_4 = arith.constant 0 : index
    %3 = vector.load %arg4[%c0_3, %c0_4] : memref<1x384xf32, #tpu.memory_space<vmem>>, vector<1x384xf32>
    %4 = vector.broadcast %3 : vector<1x384xf32> to vector<64x384xf32>
    %5 = arith.addf %2, %4 : vector<64x384xf32>
    %c0_5 = arith.constant 0 : index
    %c0_6 = arith.constant 0 : index
    %6 = vector.load %arg8[%c0_5, %c0_6] : memref<64x384xf32, #tpu.memory_space<vmem>>, vector<64x384xf32>
    tpu.vector_store %arg8[%c0_5, %c0_6], %5 {strides = array<i32>} : memref<64x384xf32, #tpu.memory_space<vmem>>, vector<64x384xf32>,
    %cst_7 = arith.constant 0.000000e+00 : f32
    %7 = vector.broadcast %cst_7 : f32 to vector<8x128xf32>
    %c0_8 = arith.constant 0 : index
    %c0_9 = arith.constant 0 : index
    %8 = vector.load %arg7[%c0_8, %c0_9] : memref<8x128xf32, #tpu.memory_space<vmem>>, vector<8x128xf32>
    tpu.vector_store %arg7[%c0_8, %c0_9], %7 {strides = array<i32>} : memref<8x128xf32, #tpu.memory_space<vmem>>, vector<8x128xf32>,
    %c0_i32 = arith.constant 0 : i32
    %c8_i32 = arith.constant 8 : i32
    %9 = arith.muli %c0_i32, %c8_i32 : i32
    %10 = tpu.assume_multiple %9, 8 : i32
    %11 = arith.index_cast %10 : i32 to index
    %c0_10 = arith.constant 0 : index
    %12 = vector.load %arg8[%11, %c0_10] : memref<64x384xf32, #tpu.memory_space<vmem>>, vector<8x384xf32>
    %c0_11 = arith.constant 0 : index
    %c0_12 = arith.constant 0 : index
    %13 = vector.load %arg7[%c0_11, %c0_12] : memref<8x128xf32, #tpu.memory_space<vmem>>, vector<8x128xf32>
    %14 = arith.truncf %13 : vector<8x128xf32> to vector<8x128xbf16>
    %c0_13 = arith.constant 0 : index
    %c0_14 = arith.constant 0 : index
    %15 = vector.load %arg3[%c0_13, %c0_14] : memref<128x384xbf16, #tpu.memory_space<vmem>>, vector<128x384xbf16>
    %cst_15 = arith.constant dense<0.000000e+00> : vector<8x384xf32>
    %16 = tpu.matmul %14, %15, %cst_15 {dimension_numbers = #tpu.dot_dimension_numbers<[1], [0], [0], [1], [0, 0, 1, 1], [], []>} : vector<8x128xbf16>, vector<128x384xbf16>, vector<8x384xf32> -> vector<8x384xf32>
    %c0_16 = arith.constant 0 : index
    %c0_17 = arith.constant 0 : index
    %17 = vector.load %arg5[%c0_16, %c0_17] : memref<1x384xf32, #tpu.memory_space<vmem>>, vector<1x384xf32>
    %18 = vector.broadcast %17 : vector<1x384xf32> to vector<8x384xf32>
    %19 = arith.addf %16, %18 : vector<8x384xf32>
    %20 = vector.extract_strided_slice %12 {offsets = [0, 0], sizes = [8, 128], strides = [1, 1]} : vector<8x384xf32> to vector<8x128xf32>
    %21 = vector.extract_strided_slice %19 {offsets = [0, 0], sizes = [8, 128], strides = [1, 1]} : vector<8x384xf32> to vector<8x128xf32>
    %22 = arith.addf %20, %21 : vector<8x128xf32>
    %23 = arith.negf %22 : vector<8x128xf32>
    %24 = math.exp %23 : vector<8x128xf32>
    %cst_18 = arith.constant 1.000000e+00 : f32
    %25 = vector.broadcast %cst_18 : f32 to vector<8x128xf32>
    %26 = arith.addf %25, %24 : vector<8x128xf32>
    %27 = arith.divf %25, %26 : vector<8x128xf32>
    %28 = vector.extract_strided_slice %12 {offsets = [0, 128], sizes = [8, 128], strides = [1, 1]} : vector<8x384xf32> to vector<8x128xf32>
    %29 = vector.extract_strided_slice %19 {offsets = [0, 128], sizes = [8, 128], strides = [1, 1]} : vector<8x384xf32> to vector<8x128xf32>
    %30 = arith.addf %28, %29 : vector<8x128xf32>
    %31 = arith.negf %30 : vector<8x128xf32>
    %32 = math.exp %31 : vector<8x128xf32>
    %cst_19 = arith.constant 1.000000e+00 : f32
    %33 = vector.broadcast %cst_19 : f32 to vector<8x128xf32>
    %34 = arith.addf %33, %32 : vector<8x128xf32>
    %35 = arith.divf %33, %34 : vector<8x128xf32>
    %36 = vector.extract_strided_slice %12 {offsets = [0, 256], sizes = [8, 128], strides = [1, 1]} : vector<8x384xf32> to vector<8x128xf32>
    %37 = vector.extract_strided_slice %19 {offsets = [0, 256], sizes = [8, 128], strides = [1, 1]} : vector<8x384xf32> to vector<8x128xf32>
    %38 = arith.mulf %27, %37 : vector<8x128xf32>
    %39 = arith.addf %36, %38 : vector<8x128xf32>
    %40 = math.tanh %39 : vector<8x128xf32>
    %cst_20 = arith.constant 1.000000e+00 : f32
    %41 = vector.broadcast %cst_20 : f32 to vector<8x128xf32>
    %42 = arith.subf %41, %35 : vector<8x128xf32>
    %43 = arith.mulf %42, %40 : vector<8x128xf32>
    %44 = arith.mulf %35, %13 : vector<8x128xf32>
    %45 = arith.addf %43, %44 : vector<8x128xf32>
    %c0_21 = arith.constant 0 : index
    %c0_22 = arith.constant 0 : index
    %46 = vector.load %arg7[%c0_21, %c0_22] : memref<8x128xf32, #tpu.memory_space<vmem>>, vector<8x128xf32>
    tpu.vector_store %arg7[%c0_21, %c0_22], %45 {strides = array<i32>} : memref<8x128xf32, #tpu.memory_space<vmem>>, vector<8x128xf32>,
    %47 = arith.truncf %45 : vector<8x128xf32> to vector<8x128xbf16>
    %48 = arith.index_cast %10 : i32 to index
    %c0_23 = arith.constant 0 : index
    %49 = vector.load %arg6[%48, %c0_23] : memref<64x128xbf16, #tpu.memory_space<vmem>>, vector<8x128xbf16>
    tpu.vector_store %arg6[%48, %c0_23], %47 {strides = array<i32>} : memref<64x128xbf16, #tpu.memory_space<vmem>>, vector<8x128xbf16>,
    %c1_i32 = arith.constant 1 : i32
    %c8_i32_24 = arith.constant 8 : i32
    %50 = arith.muli %c1_i32, %c8_i32_24 : i32
    %51 = tpu.assume_multiple %50, 8 : i32
    %52 = arith.index_cast %51 : i32 to index
    %c0_25 = arith.constant 0 : index
    %53 = vector.load %arg8[%52, %c0_25] : memref<64x384xf32, #tpu.memory_space<vmem>>, vector<8x384xf32>
    %c0_26 = arith.constant 0 : index
    %c0_27 = arith.constant 0 : index
    %54 = vector.load %arg7[%c0_26, %c0_27] : memref<8x128xf32, #tpu.memory_space<vmem>>, vector<8x128xf32>
    %55 = arith.truncf %54 : vector<8x128xf32> to vector<8x128xbf16>
    %c0_28 = arith.constant 0 : index
    %c0_29 = arith.constant 0 : index
    %56 = vector.load %arg3[%c0_28, %c0_29] : memref<128x384xbf16, #tpu.memory_space<vmem>>, vector<128x384xbf16>
    %cst_30 = arith.constant dense<0.000000e+00> : vector<8x384xf32>
    %57 = tpu.matmul %55, %56, %cst_30 {dimension_numbers = #tpu.dot_dimension_numbers<[1], [0], [0], [1], [0, 0, 1, 1], [], []>} : vector<8x128xbf16>, vector<128x384xbf16>, vector<8x384xf32> -> vector<8x384xf32>
    %c0_31 = arith.constant 0 : index
    %c0_32 = arith.constant 0 : index
    %58 = vector.load %arg5[%c0_31, %c0_32] : memref<1x384xf32, #tpu.memory_space<vmem>>, vector<1x384xf32>
    %59 = vector.broadcast %58 : vector<1x384xf32> to vector<8x384xf32>
    %60 = arith.addf %57, %59 : vector<8x384xf32>
    %61 = vector.extract_strided_slice %53 {offsets = [0, 0], sizes = [8, 128], strides = [1, 1]} : vector<8x384xf32> to vector<8x128xf32>
    %62 = vector.extract_strided_slice %60 {offsets = [0, 0], sizes = [8, 128], strides = [1, 1]} : vector<8x384xf32> to vector<8x128xf32>
    %63 = arith.addf %61, %62 : vector<8x128xf32>
    %64 = arith.negf %63 : vector<8x128xf32>
    %65 = math.exp %64 : vector<8x128xf32>
    %cst_33 = arith.constant 1.000000e+00 : f32
    %66 = vector.broadcast %cst_33 : f32 to vector<8x128xf32>
    %67 = arith.addf %66, %65 : vector<8x128xf32>
    %68 = arith.divf %66, %67 : vector<8x128xf32>
    %69 = vector.extract_strided_slice %53 {offsets = [0, 128], sizes = [8, 128], strides = [1, 1]} : vector<8x384xf32> to vector<8x128xf32>
    %70 = vector.extract_strided_slice %60 {offsets = [0, 128], sizes = [8, 128], strides = [1, 1]} : vector<8x384xf32> to vector<8x128xf32>
    %71 = arith.addf %69, %70 : vector<8x128xf32>
    %72 = arith.negf %71 : vector<8x128xf32>
    %73 = math.exp %72 : vector<8x128xf32>
    %cst_34 = arith.constant 1.000000e+00 : f32
    %74 = vector.broadcast %cst_34 : f32 to vector<8x128xf32>
    %75 = arith.addf %74, %73 : vector<8x128xf32>
    %76 = arith.divf %74, %75 : vector<8x128xf32>
    %77 = vector.extract_strided_slice %53 {offsets = [0, 256], sizes = [8, 128], strides = [1, 1]} : vector<8x384xf32> to vector<8x128xf32>
    %78 = vector.extract_strided_slice %60 {offsets = [0, 256], sizes = [8, 128], strides = [1, 1]} : vector<8x384xf32> to vector<8x128xf32>
    %79 = arith.mulf %68, %78 : vector<8x128xf32>
    %80 = arith.addf %77, %79 : vector<8x128xf32>
    %81 = math.tanh %80 : vector<8x128xf32>
    %cst_35 = arith.constant 1.000000e+00 : f32
    %82 = vector.broadcast %cst_35 : f32 to vector<8x128xf32>
    %83 = arith.subf %82, %76 : vector<8x128xf32>
    %84 = arith.mulf %83, %81 : vector<8x128xf32>
    %85 = arith.mulf %76, %54 : vector<8x128xf32>
    %86 = arith.addf %84, %85 : vector<8x128xf32>
    %c0_36 = arith.constant 0 : index
    %c0_37 = arith.constant 0 : index
    %87 = vector.load %arg7[%c0_36, %c0_37] : memref<8x128xf32, #tpu.memory_space<vmem>>, vector<8x128xf32>
    tpu.vector_store %arg7[%c0_36, %c0_37], %86 {strides = array<i32>} : memref<8x128xf32, #tpu.memory_space<vmem>>, vector<8x128xf32>,
    %88 = arith.truncf %86 : vector<8x128xf32> to vector<8x128xbf16>
    %89 = arith.index_cast %51 : i32 to index
    %c0_38 = arith.constant 0 : index
    %90 = vector.load %arg6[%89, %c0_38] : memref<64x128xbf16, #tpu.memory_space<vmem>>, vector<8x128xbf16>
    tpu.vector_store %arg6[%89, %c0_38], %88 {strides = array<i32>} : memref<64x128xbf16, #tpu.memory_space<vmem>>, vector<8x128xbf16>,
    %c2_i32 = arith.constant 2 : i32
    %c8_i32_39 = arith.constant 8 : i32
    %91 = arith.muli %c2_i32, %c8_i32_39 : i32
    %92 = tpu.assume_multiple %91, 8 : i32
    %93 = arith.index_cast %92 : i32 to index
    %c0_40 = arith.constant 0 : index
    %94 = vector.load %arg8[%93, %c0_40] : memref<64x384xf32, #tpu.memory_space<vmem>>, vector<8x384xf32>
    %c0_41 = arith.constant 0 : index
    %c0_42 = arith.constant 0 : index
    %95 = vector.load %arg7[%c0_41, %c0_42] : memref<8x128xf32, #tpu.memory_space<vmem>>, vector<8x128xf32>
    %96 = arith.truncf %95 : vector<8x128xf32> to vector<8x128xbf16>
    %c0_43 = arith.constant 0 : index
    %c0_44 = arith.constant 0 : index
    %97 = vector.load %arg3[%c0_43, %c0_44] : memref<128x384xbf16, #tpu.memory_space<vmem>>, vector<128x384xbf16>
    %cst_45 = arith.constant dense<0.000000e+00> : vector<8x384xf32>
    %98 = tpu.matmul %96, %97, %cst_45 {dimension_numbers = #tpu.dot_dimension_numbers<[1], [0], [0], [1], [0, 0, 1, 1], [], []>} : vector<8x128xbf16>, vector<128x384xbf16>, vector<8x384xf32> -> vector<8x384xf32>
    %c0_46 = arith.constant 0 : index
    %c0_47 = arith.constant 0 : index
    %99 = vector.load %arg5[%c0_46, %c0_47] : memref<1x384xf32, #tpu.memory_space<vmem>>, vector<1x384xf32>
    %100 = vector.broadcast %99 : vector<1x384xf32> to vector<8x384xf32>
    %101 = arith.addf %98, %100 : vector<8x384xf32>
    %102 = vector.extract_strided_slice %94 {offsets = [0, 0], sizes = [8, 128], strides = [1, 1]} : vector<8x384xf32> to vector<8x128xf32>
    %103 = vector.extract_strided_slice %101 {offsets = [0, 0], sizes = [8, 128], strides = [1, 1]} : vector<8x384xf32> to vector<8x128xf32>
    %104 = arith.addf %102, %103 : vector<8x128xf32>
    %105 = arith.negf %104 : vector<8x128xf32>
    %106 = math.exp %105 : vector<8x128xf32>
    %cst_48 = arith.constant 1.000000e+00 : f32
    %107 = vector.broadcast %cst_48 : f32 to vector<8x128xf32>
    %108 = arith.addf %107, %106 : vector<8x128xf32>
    %109 = arith.divf %107, %108 : vector<8x128xf32>
    %110 = vector.extract_strided_slice %94 {offsets = [0, 128], sizes = [8, 128], strides = [1, 1]} : vector<8x384xf32> to vector<8x128xf32>
    %111 = vector.extract_strided_slice %101 {offsets = [0, 128], sizes = [8, 128], strides = [1, 1]} : vector<8x384xf32> to vector<8x128xf32>
    %112 = arith.addf %110, %111 : vector<8x128xf32>
    %113 = arith.negf %112 : vector<8x128xf32>
    %114 = math.exp %113 : vector<8x128xf32>
    %cst_49 = arith.constant 1.000000e+00 : f32
    %115 = vector.broadcast %cst_49 : f32 to vector<8x128xf32>
    %116 = arith.addf %115, %114 : vector<8x128xf32>
    %117 = arith.divf %115, %116 : vector<8x128xf32>
    %118 = vector.extract_strided_slice %94 {offsets = [0, 256], sizes = [8, 128], strides = [1, 1]} : vector<8x384xf32> to vector<8x128xf32>
    %119 = vector.extract_strided_slice %101 {offsets = [0, 256], sizes = [8, 128], strides = [1, 1]} : vector<8x384xf32> to vector<8x128xf32>
    %120 = arith.mulf %109, %119 : vector<8x128xf32>
    %121 = arith.addf %118, %120 : vector<8x128xf32>
    %122 = math.tanh %121 : vector<8x128xf32>
    %cst_50 = arith.constant 1.000000e+00 : f32
    %123 = vector.broadcast %cst_50 : f32 to vector<8x128xf32>
    %124 = arith.subf %123, %117 : vector<8x128xf32>
    %125 = arith.mulf %124, %122 : vector<8x128xf32>
    %126 = arith.mulf %117, %95 : vector<8x128xf32>
    %127 = arith.addf %125, %126 : vector<8x128xf32>
    %c0_51 = arith.constant 0 : index
    %c0_52 = arith.constant 0 : index
    %128 = vector.load %arg7[%c0_51, %c0_52] : memref<8x128xf32, #tpu.memory_space<vmem>>, vector<8x128xf32>
    tpu.vector_store %arg7[%c0_51, %c0_52], %127 {strides = array<i32>} : memref<8x128xf32, #tpu.memory_space<vmem>>, vector<8x128xf32>,
    %129 = arith.truncf %127 : vector<8x128xf32> to vector<8x128xbf16>
    %130 = arith.index_cast %92 : i32 to index
    %c0_53 = arith.constant 0 : index
    %131 = vector.load %arg6[%130, %c0_53] : memref<64x128xbf16, #tpu.memory_space<vmem>>, vector<8x128xbf16>
    tpu.vector_store %arg6[%130, %c0_53], %129 {strides = array<i32>} : memref<64x128xbf16, #tpu.memory_space<vmem>>, vector<8x128xbf16>,
    %c3_i32 = arith.constant 3 : i32
    %c8_i32_54 = arith.constant 8 : i32
    %132 = arith.muli %c3_i32, %c8_i32_54 : i32
    %133 = tpu.assume_multiple %132, 8 : i32
    %134 = arith.index_cast %133 : i32 to index
    %c0_55 = arith.constant 0 : index
    %135 = vector.load %arg8[%134, %c0_55] : memref<64x384xf32, #tpu.memory_space<vmem>>, vector<8x384xf32>
    %c0_56 = arith.constant 0 : index
    %c0_57 = arith.constant 0 : index
    %136 = vector.load %arg7[%c0_56, %c0_57] : memref<8x128xf32, #tpu.memory_space<vmem>>, vector<8x128xf32>
    %137 = arith.truncf %136 : vector<8x128xf32> to vector<8x128xbf16>
    %c0_58 = arith.constant 0 : index
    %c0_59 = arith.constant 0 : index
    %138 = vector.load %arg3[%c0_58, %c0_59] : memref<128x384xbf16, #tpu.memory_space<vmem>>, vector<128x384xbf16>
    %cst_60 = arith.constant dense<0.000000e+00> : vector<8x384xf32>
    %139 = tpu.matmul %137, %138, %cst_60 {dimension_numbers = #tpu.dot_dimension_numbers<[1], [0], [0], [1], [0, 0, 1, 1], [], []>} : vector<8x128xbf16>, vector<128x384xbf16>, vector<8x384xf32> -> vector<8x384xf32>
    %c0_61 = arith.constant 0 : index
    %c0_62 = arith.constant 0 : index
    %140 = vector.load %arg5[%c0_61, %c0_62] : memref<1x384xf32, #tpu.memory_space<vmem>>, vector<1x384xf32>
    %141 = vector.broadcast %140 : vector<1x384xf32> to vector<8x384xf32>
    %142 = arith.addf %139, %141 : vector<8x384xf32>
    %143 = vector.extract_strided_slice %135 {offsets = [0, 0], sizes = [8, 128], strides = [1, 1]} : vector<8x384xf32> to vector<8x128xf32>
    %144 = vector.extract_strided_slice %142 {offsets = [0, 0], sizes = [8, 128], strides = [1, 1]} : vector<8x384xf32> to vector<8x128xf32>
    %145 = arith.addf %143, %144 : vector<8x128xf32>
    %146 = arith.negf %145 : vector<8x128xf32>
    %147 = math.exp %146 : vector<8x128xf32>
    %cst_63 = arith.constant 1.000000e+00 : f32
    %148 = vector.broadcast %cst_63 : f32 to vector<8x128xf32>
    %149 = arith.addf %148, %147 : vector<8x128xf32>
    %150 = arith.divf %148, %149 : vector<8x128xf32>
    %151 = vector.extract_strided_slice %135 {offsets = [0, 128], sizes = [8, 128], strides = [1, 1]} : vector<8x384xf32> to vector<8x128xf32>
    %152 = vector.extract_strided_slice %142 {offsets = [0, 128], sizes = [8, 128], strides = [1, 1]} : vector<8x384xf32> to vector<8x128xf32>
    %153 = arith.addf %151, %152 : vector<8x128xf32>
    %154 = arith.negf %153 : vector<8x128xf32>
    %155 = math.exp %154 : vector<8x128xf32>
    %cst_64 = arith.constant 1.000000e+00 : f32
    %156 = vector.broadcast %cst_64 : f32 to vector<8x128xf32>
    %157 = arith.addf %156, %155 : vector<8x128xf32>
    %158 = arith.divf %156, %157 : vector<8x128xf32>
    %159 = vector.extract_strided_slice %135 {offsets = [0, 256], sizes = [8, 128], strides = [1, 1]} : vector<8x384xf32> to vector<8x128xf32>
    %160 = vector.extract_strided_slice %142 {offsets = [0, 256], sizes = [8, 128], strides = [1, 1]} : vector<8x384xf32> to vector<8x128xf32>
    %161 = arith.mulf %150, %160 : vector<8x128xf32>
    %162 = arith.addf %159, %161 : vector<8x128xf32>
    %163 = math.tanh %162 : vector<8x128xf32>
    %cst_65 = arith.constant 1.000000e+00 : f32
    %164 = vector.broadcast %cst_65 : f32 to vector<8x128xf32>
    %165 = arith.subf %164, %158 : vector<8x128xf32>
    %166 = arith.mulf %165, %163 : vector<8x128xf32>
    %167 = arith.mulf %158, %136 : vector<8x128xf32>
    %168 = arith.addf %166, %167 : vector<8x128xf32>
    %c0_66 = arith.constant 0 : index
    %c0_67 = arith.constant 0 : index
    %169 = vector.load %arg7[%c0_66, %c0_67] : memref<8x128xf32, #tpu.memory_space<vmem>>, vector<8x128xf32>
    tpu.vector_store %arg7[%c0_66, %c0_67], %168 {strides = array<i32>} : memref<8x128xf32, #tpu.memory_space<vmem>>, vector<8x128xf32>,
    %170 = arith.truncf %168 : vector<8x128xf32> to vector<8x128xbf16>
    %171 = arith.index_cast %133 : i32 to index
    %c0_68 = arith.constant 0 : index
    %172 = vector.load %arg6[%171, %c0_68] : memref<64x128xbf16, #tpu.memory_space<vmem>>, vector<8x128xbf16>
    tpu.vector_store %arg6[%171, %c0_68], %170 {strides = array<i32>} : memref<64x128xbf16, #tpu.memory_space<vmem>>, vector<8x128xbf16>,
    %c4_i32 = arith.constant 4 : i32
    %c8_i32_69 = arith.constant 8 : i32
    %173 = arith.muli %c4_i32, %c8_i32_69 : i32
    %174 = tpu.assume_multiple %173, 8 : i32
    %175 = arith.index_cast %174 : i32 to index
    %c0_70 = arith.constant 0 : index
    %176 = vector.load %arg8[%175, %c0_70] : memref<64x384xf32, #tpu.memory_space<vmem>>, vector<8x384xf32>
    %c0_71 = arith.constant 0 : index
    %c0_72 = arith.constant 0 : index
    %177 = vector.load %arg7[%c0_71, %c0_72] : memref<8x128xf32, #tpu.memory_space<vmem>>, vector<8x128xf32>
    %178 = arith.truncf %177 : vector<8x128xf32> to vector<8x128xbf16>
    %c0_73 = arith.constant 0 : index
    %c0_74 = arith.constant 0 : index
    %179 = vector.load %arg3[%c0_73, %c0_74] : memref<128x384xbf16, #tpu.memory_space<vmem>>, vector<128x384xbf16>
    %cst_75 = arith.constant dense<0.000000e+00> : vector<8x384xf32>
    %180 = tpu.matmul %178, %179, %cst_75 {dimension_numbers = #tpu.dot_dimension_numbers<[1], [0], [0], [1], [0, 0, 1, 1], [], []>} : vector<8x128xbf16>, vector<128x384xbf16>, vector<8x384xf32> -> vector<8x384xf32>
    %c0_76 = arith.constant 0 : index
    %c0_77 = arith.constant 0 : index
    %181 = vector.load %arg5[%c0_76, %c0_77] : memref<1x384xf32, #tpu.memory_space<vmem>>, vector<1x384xf32>
    %182 = vector.broadcast %181 : vector<1x384xf32> to vector<8x384xf32>
    %183 = arith.addf %180, %182 : vector<8x384xf32>
    %184 = vector.extract_strided_slice %176 {offsets = [0, 0], sizes = [8, 128], strides = [1, 1]} : vector<8x384xf32> to vector<8x128xf32>
    %185 = vector.extract_strided_slice %183 {offsets = [0, 0], sizes = [8, 128], strides = [1, 1]} : vector<8x384xf32> to vector<8x128xf32>
    %186 = arith.addf %184, %185 : vector<8x128xf32>
    %187 = arith.negf %186 : vector<8x128xf32>
    %188 = math.exp %187 : vector<8x128xf32>
    %cst_78 = arith.constant 1.000000e+00 : f32
    %189 = vector.broadcast %cst_78 : f32 to vector<8x128xf32>
    %190 = arith.addf %189, %188 : vector<8x128xf32>
    %191 = arith.divf %189, %190 : vector<8x128xf32>
    %192 = vector.extract_strided_slice %176 {offsets = [0, 128], sizes = [8, 128], strides = [1, 1]} : vector<8x384xf32> to vector<8x128xf32>
    %193 = vector.extract_strided_slice %183 {offsets = [0, 128], sizes = [8, 128], strides = [1, 1]} : vector<8x384xf32> to vector<8x128xf32>
    %194 = arith.addf %192, %193 : vector<8x128xf32>
    %195 = arith.negf %194 : vector<8x128xf32>
    %196 = math.exp %195 : vector<8x128xf32>
    %cst_79 = arith.constant 1.000000e+00 : f32
    %197 = vector.broadcast %cst_79 : f32 to vector<8x128xf32>
    %198 = arith.addf %197, %196 : vector<8x128xf32>
    %199 = arith.divf %197, %198 : vector<8x128xf32>
    %200 = vector.extract_strided_slice %176 {offsets = [0, 256], sizes = [8, 128], strides = [1, 1]} : vector<8x384xf32> to vector<8x128xf32>
    %201 = vector.extract_strided_slice %183 {offsets = [0, 256], sizes = [8, 128], strides = [1, 1]} : vector<8x384xf32> to vector<8x128xf32>
    %202 = arith.mulf %191, %201 : vector<8x128xf32>
    %203 = arith.addf %200, %202 : vector<8x128xf32>
    %204 = math.tanh %203 : vector<8x128xf32>
    %cst_80 = arith.constant 1.000000e+00 : f32
    %205 = vector.broadcast %cst_80 : f32 to vector<8x128xf32>
    %206 = arith.subf %205, %199 : vector<8x128xf32>
    %207 = arith.mulf %206, %204 : vector<8x128xf32>
    %208 = arith.mulf %199, %177 : vector<8x128xf32>
    %209 = arith.addf %207, %208 : vector<8x128xf32>
    %c0_81 = arith.constant 0 : index
    %c0_82 = arith.constant 0 : index
    %210 = vector.load %arg7[%c0_81, %c0_82] : memref<8x128xf32, #tpu.memory_space<vmem>>, vector<8x128xf32>
    tpu.vector_store %arg7[%c0_81, %c0_82], %209 {strides = array<i32>} : memref<8x128xf32, #tpu.memory_space<vmem>>, vector<8x128xf32>,
    %211 = arith.truncf %209 : vector<8x128xf32> to vector<8x128xbf16>
    %212 = arith.index_cast %174 : i32 to index
    %c0_83 = arith.constant 0 : index
    %213 = vector.load %arg6[%212, %c0_83] : memref<64x128xbf16, #tpu.memory_space<vmem>>, vector<8x128xbf16>
    tpu.vector_store %arg6[%212, %c0_83], %211 {strides = array<i32>} : memref<64x128xbf16, #tpu.memory_space<vmem>>, vector<8x128xbf16>,
    %c5_i32 = arith.constant 5 : i32
    %c8_i32_84 = arith.constant 8 : i32
    %214 = arith.muli %c5_i32, %c8_i32_84 : i32
    %215 = tpu.assume_multiple %214, 8 : i32
    %216 = arith.index_cast %215 : i32 to index
    %c0_85 = arith.constant 0 : index
    %217 = vector.load %arg8[%216, %c0_85] : memref<64x384xf32, #tpu.memory_space<vmem>>, vector<8x384xf32>
    %c0_86 = arith.constant 0 : index
    %c0_87 = arith.constant 0 : index
    %218 = vector.load %arg7[%c0_86, %c0_87] : memref<8x128xf32, #tpu.memory_space<vmem>>, vector<8x128xf32>
    %219 = arith.truncf %218 : vector<8x128xf32> to vector<8x128xbf16>
    %c0_88 = arith.constant 0 : index
    %c0_89 = arith.constant 0 : index
    %220 = vector.load %arg3[%c0_88, %c0_89] : memref<128x384xbf16, #tpu.memory_space<vmem>>, vector<128x384xbf16>
    %cst_90 = arith.constant dense<0.000000e+00> : vector<8x384xf32>
    %221 = tpu.matmul %219, %220, %cst_90 {dimension_numbers = #tpu.dot_dimension_numbers<[1], [0], [0], [1], [0, 0, 1, 1], [], []>} : vector<8x128xbf16>, vector<128x384xbf16>, vector<8x384xf32> -> vector<8x384xf32>
    %c0_91 = arith.constant 0 : index
    %c0_92 = arith.constant 0 : index
    %222 = vector.load %arg5[%c0_91, %c0_92] : memref<1x384xf32, #tpu.memory_space<vmem>>, vector<1x384xf32>
    %223 = vector.broadcast %222 : vector<1x384xf32> to vector<8x384xf32>
    %224 = arith.addf %221, %223 : vector<8x384xf32>
    %225 = vector.extract_strided_slice %217 {offsets = [0, 0], sizes = [8, 128], strides = [1, 1]} : vector<8x384xf32> to vector<8x128xf32>
    %226 = vector.extract_strided_slice %224 {offsets = [0, 0], sizes = [8, 128], strides = [1, 1]} : vector<8x384xf32> to vector<8x128xf32>
    %227 = arith.addf %225, %226 : vector<8x128xf32>
    %228 = arith.negf %227 : vector<8x128xf32>
    %229 = math.exp %228 : vector<8x128xf32>
    %cst_93 = arith.constant 1.000000e+00 : f32
    %230 = vector.broadcast %cst_93 : f32 to vector<8x128xf32>
    %231 = arith.addf %230, %229 : vector<8x128xf32>
    %232 = arith.divf %230, %231 : vector<8x128xf32>
    %233 = vector.extract_strided_slice %217 {offsets = [0, 128], sizes = [8, 128], strides = [1, 1]} : vector<8x384xf32> to vector<8x128xf32>
    %234 = vector.extract_strided_slice %224 {offsets = [0, 128], sizes = [8, 128], strides = [1, 1]} : vector<8x384xf32> to vector<8x128xf32>
    %235 = arith.addf %233, %234 : vector<8x128xf32>
    %236 = arith.negf %235 : vector<8x128xf32>
    %237 = math.exp %236 : vector<8x128xf32>
    %cst_94 = arith.constant 1.000000e+00 : f32
    %238 = vector.broadcast %cst_94 : f32 to vector<8x128xf32>
    %239 = arith.addf %238, %237 : vector<8x128xf32>
    %240 = arith.divf %238, %239 : vector<8x128xf32>
    %241 = vector.extract_strided_slice %217 {offsets = [0, 256], sizes = [8, 128], strides = [1, 1]} : vector<8x384xf32> to vector<8x128xf32>
    %242 = vector.extract_strided_slice %224 {offsets = [0, 256], sizes = [8, 128], strides = [1, 1]} : vector<8x384xf32> to vector<8x128xf32>
    %243 = arith.mulf %232, %242 : vector<8x128xf32>
    %244 = arith.addf %241, %243 : vector<8x128xf32>
    %245 = math.tanh %244 : vector<8x128xf32>
    %cst_95 = arith.constant 1.000000e+00 : f32
    %246 = vector.broadcast %cst_95 : f32 to vector<8x128xf32>
    %247 = arith.subf %246, %240 : vector<8x128xf32>
    %248 = arith.mulf %247, %245 : vector<8x128xf32>
    %249 = arith.mulf %240, %218 : vector<8x128xf32>
    %250 = arith.addf %248, %249 : vector<8x128xf32>
    %c0_96 = arith.constant 0 : index
    %c0_97 = arith.constant 0 : index
    %251 = vector.load %arg7[%c0_96, %c0_97] : memref<8x128xf32, #tpu.memory_space<vmem>>, vector<8x128xf32>
    tpu.vector_store %arg7[%c0_96, %c0_97], %250 {strides = array<i32>} : memref<8x128xf32, #tpu.memory_space<vmem>>, vector<8x128xf32>,
    %252 = arith.truncf %250 : vector<8x128xf32> to vector<8x128xbf16>
    %253 = arith.index_cast %215 : i32 to index
    %c0_98 = arith.constant 0 : index
    %254 = vector.load %arg6[%253, %c0_98] : memref<64x128xbf16, #tpu.memory_space<vmem>>, vector<8x128xbf16>
    tpu.vector_store %arg6[%253, %c0_98], %252 {strides = array<i32>} : memref<64x128xbf16, #tpu.memory_space<vmem>>, vector<8x128xbf16>,
    %c6_i32 = arith.constant 6 : i32
    %c8_i32_99 = arith.constant 8 : i32
    %255 = arith.muli %c6_i32, %c8_i32_99 : i32
    %256 = tpu.assume_multiple %255, 8 : i32
    %257 = arith.index_cast %256 : i32 to index
    %c0_100 = arith.constant 0 : index
    %258 = vector.load %arg8[%257, %c0_100] : memref<64x384xf32, #tpu.memory_space<vmem>>, vector<8x384xf32>
    %c0_101 = arith.constant 0 : index
    %c0_102 = arith.constant 0 : index
    %259 = vector.load %arg7[%c0_101, %c0_102] : memref<8x128xf32, #tpu.memory_space<vmem>>, vector<8x128xf32>
    %260 = arith.truncf %259 : vector<8x128xf32> to vector<8x128xbf16>
    %c0_103 = arith.constant 0 : index
    %c0_104 = arith.constant 0 : index
    %261 = vector.load %arg3[%c0_103, %c0_104] : memref<128x384xbf16, #tpu.memory_space<vmem>>, vector<128x384xbf16>
    %cst_105 = arith.constant dense<0.000000e+00> : vector<8x384xf32>
    %262 = tpu.matmul %260, %261, %cst_105 {dimension_numbers = #tpu.dot_dimension_numbers<[1], [0], [0], [1], [0, 0, 1, 1], [], []>} : vector<8x128xbf16>, vector<128x384xbf16>, vector<8x384xf32> -> vector<8x384xf32>
    %c0_106 = arith.constant 0 : index
    %c0_107 = arith.constant 0 : index
    %263 = vector.load %arg5[%c0_106, %c0_107] : memref<1x384xf32, #tpu.memory_space<vmem>>, vector<1x384xf32>
    %264 = vector.broadcast %263 : vector<1x384xf32> to vector<8x384xf32>
    %265 = arith.addf %262, %264 : vector<8x384xf32>
    %266 = vector.extract_strided_slice %258 {offsets = [0, 0], sizes = [8, 128], strides = [1, 1]} : vector<8x384xf32> to vector<8x128xf32>
    %267 = vector.extract_strided_slice %265 {offsets = [0, 0], sizes = [8, 128], strides = [1, 1]} : vector<8x384xf32> to vector<8x128xf32>
    %268 = arith.addf %266, %267 : vector<8x128xf32>
    %269 = arith.negf %268 : vector<8x128xf32>
    %270 = math.exp %269 : vector<8x128xf32>
    %cst_108 = arith.constant 1.000000e+00 : f32
    %271 = vector.broadcast %cst_108 : f32 to vector<8x128xf32>
    %272 = arith.addf %271, %270 : vector<8x128xf32>
    %273 = arith.divf %271, %272 : vector<8x128xf32>
    %274 = vector.extract_strided_slice %258 {offsets = [0, 128], sizes = [8, 128], strides = [1, 1]} : vector<8x384xf32> to vector<8x128xf32>
    %275 = vector.extract_strided_slice %265 {offsets = [0, 128], sizes = [8, 128], strides = [1, 1]} : vector<8x384xf32> to vector<8x128xf32>
    %276 = arith.addf %274, %275 : vector<8x128xf32>
    %277 = arith.negf %276 : vector<8x128xf32>
    %278 = math.exp %277 : vector<8x128xf32>
    %cst_109 = arith.constant 1.000000e+00 : f32
    %279 = vector.broadcast %cst_109 : f32 to vector<8x128xf32>
    %280 = arith.addf %279, %278 : vector<8x128xf32>
    %281 = arith.divf %279, %280 : vector<8x128xf32>
    %282 = vector.extract_strided_slice %258 {offsets = [0, 256], sizes = [8, 128], strides = [1, 1]} : vector<8x384xf32> to vector<8x128xf32>
    %283 = vector.extract_strided_slice %265 {offsets = [0, 256], sizes = [8, 128], strides = [1, 1]} : vector<8x384xf32> to vector<8x128xf32>
    %284 = arith.mulf %273, %283 : vector<8x128xf32>
    %285 = arith.addf %282, %284 : vector<8x128xf32>
    %286 = math.tanh %285 : vector<8x128xf32>
    %cst_110 = arith.constant 1.000000e+00 : f32
    %287 = vector.broadcast %cst_110 : f32 to vector<8x128xf32>
    %288 = arith.subf %287, %281 : vector<8x128xf32>
    %289 = arith.mulf %288, %286 : vector<8x128xf32>
    %290 = arith.mulf %281, %259 : vector<8x128xf32>
    %291 = arith.addf %289, %290 : vector<8x128xf32>
    %c0_111 = arith.constant 0 : index
    %c0_112 = arith.constant 0 : index
    %292 = vector.load %arg7[%c0_111, %c0_112] : memref<8x128xf32, #tpu.memory_space<vmem>>, vector<8x128xf32>
    tpu.vector_store %arg7[%c0_111, %c0_112], %291 {strides = array<i32>} : memref<8x128xf32, #tpu.memory_space<vmem>>, vector<8x128xf32>,
    %293 = arith.truncf %291 : vector<8x128xf32> to vector<8x128xbf16>
    %294 = arith.index_cast %256 : i32 to index
    %c0_113 = arith.constant 0 : index
    %295 = vector.load %arg6[%294, %c0_113] : memref<64x128xbf16, #tpu.memory_space<vmem>>, vector<8x128xbf16>
    tpu.vector_store %arg6[%294, %c0_113], %293 {strides = array<i32>} : memref<64x128xbf16, #tpu.memory_space<vmem>>, vector<8x128xbf16>,
    %c7_i32 = arith.constant 7 : i32
    %c8_i32_114 = arith.constant 8 : i32
    %296 = arith.muli %c7_i32, %c8_i32_114 : i32
    %297 = tpu.assume_multiple %296, 8 : i32
    %298 = arith.index_cast %297 : i32 to index
    %c0_115 = arith.constant 0 : index
    %299 = vector.load %arg8[%298, %c0_115] : memref<64x384xf32, #tpu.memory_space<vmem>>, vector<8x384xf32>
    %c0_116 = arith.constant 0 : index
    %c0_117 = arith.constant 0 : index
    %300 = vector.load %arg7[%c0_116, %c0_117] : memref<8x128xf32, #tpu.memory_space<vmem>>, vector<8x128xf32>
    %301 = arith.truncf %300 : vector<8x128xf32> to vector<8x128xbf16>
    %c0_118 = arith.constant 0 : index
    %c0_119 = arith.constant 0 : index
    %302 = vector.load %arg3[%c0_118, %c0_119] : memref<128x384xbf16, #tpu.memory_space<vmem>>, vector<128x384xbf16>
    %cst_120 = arith.constant dense<0.000000e+00> : vector<8x384xf32>
    %303 = tpu.matmul %301, %302, %cst_120 {dimension_numbers = #tpu.dot_dimension_numbers<[1], [0], [0], [1], [0, 0, 1, 1], [], []>} : vector<8x128xbf16>, vector<128x384xbf16>, vector<8x384xf32> -> vector<8x384xf32>
    %c0_121 = arith.constant 0 : index
    %c0_122 = arith.constant 0 : index
    %304 = vector.load %arg5[%c0_121, %c0_122] : memref<1x384xf32, #tpu.memory_space<vmem>>, vector<1x384xf32>
    %305 = vector.broadcast %304 : vector<1x384xf32> to vector<8x384xf32>
    %306 = arith.addf %303, %305 : vector<8x384xf32>
    %307 = vector.extract_strided_slice %299 {offsets = [0, 0], sizes = [8, 128], strides = [1, 1]} : vector<8x384xf32> to vector<8x128xf32>
    %308 = vector.extract_strided_slice %306 {offsets = [0, 0], sizes = [8, 128], strides = [1, 1]} : vector<8x384xf32> to vector<8x128xf32>
    %309 = arith.addf %307, %308 : vector<8x128xf32>
    %310 = arith.negf %309 : vector<8x128xf32>
    %311 = math.exp %310 : vector<8x128xf32>
    %cst_123 = arith.constant 1.000000e+00 : f32
    %312 = vector.broadcast %cst_123 : f32 to vector<8x128xf32>
    %313 = arith.addf %312, %311 : vector<8x128xf32>
    %314 = arith.divf %312, %313 : vector<8x128xf32>
    %315 = vector.extract_strided_slice %299 {offsets = [0, 128], sizes = [8, 128], strides = [1, 1]} : vector<8x384xf32> to vector<8x128xf32>
    %316 = vector.extract_strided_slice %306 {offsets = [0, 128], sizes = [8, 128], strides = [1, 1]} : vector<8x384xf32> to vector<8x128xf32>
    %317 = arith.addf %315, %316 : vector<8x128xf32>
    %318 = arith.negf %317 : vector<8x128xf32>
    %319 = math.exp %318 : vector<8x128xf32>
    %cst_124 = arith.constant 1.000000e+00 : f32
    %320 = vector.broadcast %cst_124 : f32 to vector<8x128xf32>
    %321 = arith.addf %320, %319 : vector<8x128xf32>
    %322 = arith.divf %320, %321 : vector<8x128xf32>
    %323 = vector.extract_strided_slice %299 {offsets = [0, 256], sizes = [8, 128], strides = [1, 1]} : vector<8x384xf32> to vector<8x128xf32>
    %324 = vector.extract_strided_slice %306 {offsets = [0, 256], sizes = [8, 128], strides = [1, 1]} : vector<8x384xf32> to vector<8x128xf32>
    %325 = arith.mulf %314, %324 : vector<8x128xf32>
    %326 = arith.addf %323, %325 : vector<8x128xf32>
    %327 = math.tanh %326 : vector<8x128xf32>
    %cst_125 = arith.constant 1.000000e+00 : f32
    %328 = vector.broadcast %cst_125 : f32 to vector<8x128xf32>
    %329 = arith.subf %328, %322 : vector<8x128xf32>
    %330 = arith.mulf %329, %327 : vector<8x128xf32>
    %331 = arith.mulf %322, %300 : vector<8x128xf32>
    %332 = arith.addf %330, %331 : vector<8x128xf32>
    %c0_126 = arith.constant 0 : index
    %c0_127 = arith.constant 0 : index
    %333 = vector.load %arg7[%c0_126, %c0_127] : memref<8x128xf32, #tpu.memory_space<vmem>>, vector<8x128xf32>
    tpu.vector_store %arg7[%c0_126, %c0_127], %332 {strides = array<i32>} : memref<8x128xf32, #tpu.memory_space<vmem>>, vector<8x128xf32>,
    %334 = arith.truncf %332 : vector<8x128xf32> to vector<8x128xbf16>
    %335 = arith.index_cast %297 : i32 to index
    %c0_128 = arith.constant 0 : index
    %336 = vector.load %arg6[%335, %c0_128] : memref<64x128xbf16, #tpu.memory_space<vmem>>, vector<8x128xbf16>
    tpu.vector_store %arg6[%335, %c0_128], %334 {strides = array<i32>} : memref<64x128xbf16, #tpu.memory_space<vmem>>, vector<8x128xbf16>,
    %c8_i32_129 = arith.constant 8 : i32
    return
  }
  func.func @transform_0(%arg0: i32) -> (i32, i32) {
    %c0_i32 = arith.constant 0 : i32
    %c0_i32_0 = arith.constant 0 : i32
    %c0_i32_1 = arith.constant 0 : i32
    return %c0_i32, %c0_i32_0 : i32, i32
  }
  func.func @transform_1(%arg0: i32) -> (i32, i32) {
    %c0_i32 = arith.constant 0 : i32
    %c0_i32_0 = arith.constant 0 : i32
    %c0_i32_1 = arith.constant 0 : i32
    return %c0_i32, %c0_i32_0 : i32, i32
  }
  func.func @transform_2(%arg0: i32) -> (i32, i32) {
    %c0_i32 = arith.constant 0 : i32
    %c0_i32_0 = arith.constant 0 : i32
    %c0_i32_1 = arith.constant 0 : i32
    return %c0_i32, %c0_i32_0 : i32, i32
  }
  func.func @transform_3(%arg0: i32) -> (i32, i32) {
    %c0_i32 = arith.constant 0 : i32
    %c0_i32_0 = arith.constant 0 : i32
    %c0_i32_1 = arith.constant 0 : i32
    return %c0_i32, %c0_i32_0 : i32, i32
  }
  func.func @transform_4(%arg0: i32) -> (i32, i32) {
    %c0_i32 = arith.constant 0 : i32
    %c0_i32_0 = arith.constant 0 : i32
    %c0_i32_1 = arith.constant 0 : i32
    return %c0_i32, %c0_i32_0 : i32, i32
  }
  func.func @transform_5(%arg0: i32) -> (i32, i32) {
    %c0_i32 = arith.constant 0 : i32
    %c0_i32_0 = arith.constant 0 : i32
    %c0_i32_1 = arith.constant 0 : i32
    return %c0_i32, %c0_i32_0 : i32, i32
  }
}

</mosaic_0001>

<llo_original>
// kernel: tpu_custom_call.1
$region0: #{tpu_custom_call.1}
  #allocation0 [shape = 'u32[]', space=smem, size = 0x4, offset = 0x4, fixed_abs, tag = 'smem constant byte address 0x4 - core index']
  #allocation1 [shape = 'u32[144,128]{1,0:T(1,128)}', space=vmem, size = 0x12000, scoped, tag = 'internal scratch']
  #allocation2 [shape = 'f32[8,128]{1,0:T(8,128)}', space=vmem, size = 0x1000, scoped, tag = 'scratch operand']
  #allocation3 [shape = 'f32[64,384]{1,0:T(8,128)}', space=vmem, size = 0x18000, scoped, tag = 'scratch operand']
  %s0 = inlined_call_operand.hbm [shape: bf16[64,128], index: 0, kind: input, shape index: {}]
  %s1 = inlined_call_operand.hbm [shape: bf16[128,384], index: 1, kind: input, shape index: {}]
  %s2 = inlined_call_operand.hbm [shape: bf16[128,384], index: 2, kind: input, shape index: {}]
  %s3 = inlined_call_operand.vmem [shape: f32[1,384], index: 3, kind: input, shape index: {}]
  %s4 = inlined_call_operand.vmem [shape: f32[1,384], index: 4, kind: input, shape index: {}]
  %s5 = inlined_call_operand.hbm [shape: bf16[64,128], index: 5, kind: output, shape index: {}]
  %s6 = sld [smem:[#allocation0]]
  $region42: #{tpu_custom_call.1} parent=0
    _
  %s8 = ssub.s32 1, %s6
  %s9 = scalar_select 0, %s8, %s6
  $region1: #{tpu_custom_call.1} parent=0
    #allocation4 [shape = 'u8[16384]{0}', space=vmem, size = 0x4000, scoped, tag = 'input window, operand 0, single buffered']
    #allocation5 [shape = 's32[1]{0}', space=sflag, size = 0x4, scoped, tag = 'scoped memory for tpu_custom_call.1']
    #allocation6 [shape = 's32[1]{0}', space=sflag, size = 0x4, scoped, tag = 'scoped memory for tpu_custom_call.1']
    #allocation7 [shape = 'u8[98304]{0}', space=vmem, size = 0x18000, scoped, tag = 'input window, operand 1, single buffered']
    #allocation8 [shape = 's32[1]{0}', space=sflag, size = 0x4, scoped, tag = 'scoped memory for tpu_custom_call.1']
    #allocation9 [shape = 'u8[98304]{0}', space=vmem, size = 0x18000, scoped, tag = 'input window, operand 2, single buffered']
    #allocation10 [shape = 'u8[16384]{0}', space=vmem, size = 0x4000, scoped, tag = 'output window, operand 0, single buffered']
    %10 = vsyncpa [#allocation5], 0
    %11 = vsyncpa [#allocation8], 0
    %12 = vsyncpa [#allocation6], 0
    // Predicated region
    $region2: #{tpu_custom_call.1} parent=1 // pred_check
      _
    $region3: #{tpu_custom_call.1} parent=1 // pred_check_branch
      %14 = sbr.rel (0) target = $region5
    $region4: #{tpu_custom_call.1} parent=1 // pred_region
      %s16 = ssub.s32 512, 512
      %17 = vsyncadd [#allocation5], %s16
      %s18 = sshll.u32 [#allocation4], 4
      %s19 = int_to_ptr.vmem [resolvable:$true] %s18
      %24 = dma.hbm_to_vmem [thread:$0]  %s0, 512, %s19, [#allocation5], 64, 64, 4
    $region5: #{tpu_custom_call.1} parent=1 // pred_fallthru
      _
    // Predicated region
    $region6: #{tpu_custom_call.1} parent=1 // pred_check
      _
    $region7: #{tpu_custom_call.1} parent=1 // pred_check_branch
      %26 = sbr.rel (0) target = $region9
    $region8: #{tpu_custom_call.1} parent=1 // pred_region
      %s28 = ssub.s32 3072, 3072
      %29 = vsyncadd [#allocation8], %s28
      %s30 = sshll.u32 [#allocation7], 4
      %s31 = int_to_ptr.vmem [resolvable:$true] %s30
      %36 = dma.hbm_to_vmem [thread:$0]  %s1, 3072, %s31, [#allocation8], 192, 192, 12
    $region9: #{tpu_custom_call.1} parent=1 // pred_fallthru
      _
    // Predicated region
    $region10: #{tpu_custom_call.1} parent=1 // pred_check
      _
    $region11: #{tpu_custom_call.1} parent=1 // pred_check_branch
      %38 = sbr.rel (0) target = $region13
    $region12: #{tpu_custom_call.1} parent=1 // pred_region
      %s40 = ssub.s32 3072, 3072
      %41 = vsyncadd [#allocation8], %s40
      %s42 = sshll.u32 [#allocation9], 4
      %s43 = int_to_ptr.vmem [resolvable:$true] %s42
      %48 = dma.hbm_to_vmem [thread:$0]  %s2, 3072, %s43, [#allocation8], 192, 192, 12
    $region13: #{tpu_custom_call.1} parent=1 // pred_fallthru
      _
    // Predicated region
    $region14: #{tpu_custom_call.1} parent=1 // pred_check
      _
    $region15: #{tpu_custom_call.1} parent=1 // pred_check_branch
      %50 = sbr.rel (0) target = $region17
    $region16: #{tpu_custom_call.1} parent=1 // pred_region
      _
    $region17: #{tpu_custom_call.1} parent=1 // pred_fallthru
      _
    // Predicated region
    $region18: #{tpu_custom_call.1} parent=1 // pred_check
      _
    $region19: #{tpu_custom_call.1} parent=1 // pred_check_branch
      %52 = sbr.rel (0) target = $region21
    $region20: #{tpu_custom_call.1} parent=1 // pred_region
      _
    $region21: #{tpu_custom_call.1} parent=1 // pred_fallthru
      _
    // Predicated region
    $region22: #{tpu_custom_call.1} parent=1 // pred_check
      _
    $region23: #{tpu_custom_call.1} parent=1 // pred_check_branch
      %54 = sbr.rel (0) target = $region25
    $region24: #{tpu_custom_call.1} parent=1 // pred_region
      %55 = dma.done [#allocation5], 512
    $region25: #{tpu_custom_call.1} parent=1 // pred_fallthru
      _
    // Predicated region
    $region26: #{tpu_custom_call.1} parent=1 // pred_check
      _
    $region27: #{tpu_custom_call.1} parent=1 // pred_check_branch
      %57 = sbr.rel (0) target = $region29
    $region28: #{tpu_custom_call.1} parent=1 // pred_region
      %58 = dma.done [#allocation8], 3072
    $region29: #{tpu_custom_call.1} parent=1 // pred_fallthru
      _
    // Predicated region
    $region30: #{tpu_custom_call.1} parent=1 // pred_check
      _
    $region31: #{tpu_custom_call.1} parent=1 // pred_check_branch
      %60 = sbr.rel (0) target = $region33
    $region32: #{tpu_custom_call.1} parent=1 // pred_region
      %61 = dma.done [#allocation8], 3072
    $region33: #{tpu_custom_call.1} parent=1 // pred_fallthru
      _
    %v63 = vld [vmem:[#allocation4] sm:$0xf]
    %v64 = vld [vmem:[#allocation4 + $0x4] sm:$0xf]
    %v65 = vld [vmem:[#allocation4 + $0x8] sm:$0xf]
    %v66 = vld [vmem:[#allocation4 + $0xc] sm:$0xf]
    %v67 = vld [vmem:[#allocation4 + $0x10] sm:$0xf]
    %v68 = vld [vmem:[#allocation4 + $0x14] sm:$0xf]
    %v69 = vld [vmem:[#allocation4 + $0x18] sm:$0xf]
    %v70 = vld [vmem:[#allocation4 + $0x1c] sm:$0xf]
    %v71 = vld [vmem:[#allocation7] sm:$0xff]
    %v72 = vld [vmem:[#allocation7 + $0x8] sm:$0xf]
    %v73 = vld [vmem:[#allocation7 + $0xc] sm:$0xff]
    %v74 = vld [vmem:[#allocation7 + $0x14] sm:$0xf]
    %v75 = vld [vmem:[#allocation7 + $0x18] sm:$0xff]
    %v76 = vld [vmem:[#allocation7 + $0x20] sm:$0xf]
    %v77 = vld [vmem:[#allocation7 + $0x24] sm:$0xff]
    %v78 = vld [vmem:[#allocation7 + $0x2c] sm:$0xf]
    %v79 = vld [vmem:[#allocation7 + $0x30] sm:$0xff]
    %v80 = vld [vmem:[#allocation7 + $0x38] sm:$0xf]
    %v81 = vld [vmem:[#allocation7 + $0x3c] sm:$0xff]
    %v82 = vld [vmem:[#allocation7 + $0x44] sm:$0xf]
    %v83 = vld [vmem:[#allocation7 + $0x48] sm:$0xff]
    %v84 = vld [vmem:[#allocation7 + $0x50] sm:$0xf]
    %v85 = vld [vmem:[#allocation7 + $0x54] sm:$0xff]
    %v86 = vld [vmem:[#allocation7 + $0x5c] sm:$0xf]
    %v87 = vld [vmem:[#allocation7 + $0x60] sm:$0xff]
    %v88 = vld [vmem:[#allocation7 + $0x68] sm:$0xf]
    %v89 = vld [vmem:[#allocation7 + $0x6c] sm:$0xff]
    %v90 = vld [vmem:[#allocation7 + $0x74] sm:$0xf]
    %v91 = vld [vmem:[#allocation7 + $0x78] sm:$0xff]
    %v92 = vld [vmem:[#allocation7 + $0x80] sm:$0xf]
    %v93 = vld [vmem:[#allocation7 + $0x84] sm:$0xff]
    %v94 = vld [vmem:[#allocation7 + $0x8c] sm:$0xf]
    %v95 = vld [vmem:[#allocation7 + $0x90] sm:$0xff]
    %v96 = vld [vmem:[#allocation7 + $0x98] sm:$0xf]
    %v97 = vld [vmem:[#allocation7 + $0x9c] sm:$0xff]
    %v98 = vld [vmem:[#allocation7 + $0xa4] sm:$0xf]
    %v99 = vld [vmem:[#allocation7 + $0xa8] sm:$0xff]
    %v100 = vld [vmem:[#allocation7 + $0xb0] sm:$0xf]
    %v101 = vld [vmem:[#allocation7 + $0xb4] sm:$0xff]
    %v102 = vld [vmem:[#allocation7 + $0xbc] sm:$0xf]
    %v103 = vld [vmem:[%s3] sm:$0x7]
    %v105 = vlaneseq
    %v106 = vshrl.u32 %v105, 7
    %v107 = vsub.s32 0, %v106
    %v108 = vrot.slane %v103, %v107
    %v109 = vlaneseq
    %v110 = vshrl.u32 %v109, 7
    %v111 = vsub.s32 1, %v110
    %v112 = vrot.slane %v103, %v111
    %v113 = vlaneseq
    %v114 = vshrl.u32 %v113, 7
    %v115 = vsub.s32 2, %v114
    %v116 = vrot.slane %v103, %v115
    %v128 = vunpack.c.l.b16 %v63
    %v129 = vunpack.c.l.b16 %v64
    %v130 = vunpack.c.l.b16 %v65
    %v131 = vunpack.c.l.b16 %v66
    %v132 = vunpack.c.l.b16 %v67
    %v133 = vunpack.c.l.b16 %v68
    %v134 = vunpack.c.l.b16 %v69
    %v135 = vunpack.c.l.b16 %v70
    %v136 = vpack.c.b16 %v129, %v128
    %v137 = vpack.c.b16 %v131, %v130
    %v138 = vpack.c.b16 %v133, %v132
    %v139 = vpack.c.b16 %v135, %v134
    %v176 = vunpack.c.l.b16 %v71
    %v177 = vunpack.c.h.b16 %v71
    %v178 = vunpack.c.l.b16 %v72
    %v179 = vunpack.c.l.b16 %v73
    %v180 = vunpack.c.h.b16 %v73
    %v181 = vunpack.c.l.b16 %v74
    %v182 = vunpack.c.l.b16 %v75
    %v183 = vunpack.c.h.b16 %v75
    %v184 = vunpack.c.l.b16 %v76
    %v185 = vunpack.c.l.b16 %v77
    %v186 = vunpack.c.h.b16 %v77
    %v187 = vunpack.c.l.b16 %v78
    %v188 = vunpack.c.l.b16 %v79
    %v189 = vunpack.c.h.b16 %v79
    %v190 = vunpack.c.l.b16 %v80
    %v191 = vunpack.c.l.b16 %v81
    %v192 = vunpack.c.h.b16 %v81
    %v193 = vunpack.c.l.b16 %v82
    %v194 = vunpack.c.l.b16 %v83
    %v195 = vunpack.c.h.b16 %v83
    %v196 = vunpack.c.l.b16 %v84
    %v197 = vunpack.c.l.b16 %v85
    %v198 = vunpack.c.h.b16 %v85
    %v199 = vunpack.c.l.b16 %v86
    %v200 = vunpack.c.l.b16 %v87
    %v201 = vunpack.c.h.b16 %v87
    %v202 = vunpack.c.l.b16 %v88
    %v203 = vunpack.c.l.b16 %v89
    %v204 = vunpack.c.h.b16 %v89
    %v205 = vunpack.c.l.b16 %v90
    %v206 = vunpack.c.l.b16 %v91
    %v207 = vunpack.c.h.b16 %v91
    %v208 = vunpack.c.l.b16 %v92
    %v209 = vunpack.c.l.b16 %v93
    %v210 = vunpack.c.h.b16 %v93
    %v211 = vunpack.c.l.b16 %v94
    %v212 = vunpack.c.l.b16 %v95
    %v213 = vunpack.c.h.b16 %v95
    %v214 = vunpack.c.l.b16 %v96
    %v215 = vunpack.c.l.b16 %v97
    %v216 = vunpack.c.h.b16 %v97
    %v217 = vunpack.c.l.b16 %v98
    %v218 = vunpack.c.l.b16 %v99
    %v219 = vunpack.c.h.b16 %v99
    %v220 = vunpack.c.l.b16 %v100
    %v221 = vunpack.c.l.b16 %v101
    %v222 = vunpack.c.h.b16 %v101
    %v223 = vunpack.c.l.b16 %v102
    %v224 = vpack.c.b16 %v179, %v176
    %v225 = vpack.c.b16 %v180, %v177
    %v226 = vpack.c.b16 %v181, %v178
    %v227 = vpack.c.b16 %v185, %v182
    %v228 = vpack.c.b16 %v186, %v183
    %v229 = vpack.c.b16 %v187, %v184
    %v230 = vpack.c.b16 %v191, %v188
    %v231 = vpack.c.b16 %v192, %v189
    %v232 = vpack.c.b16 %v193, %v190
    %v233 = vpack.c.b16 %v197, %v194
    %v234 = vpack.c.b16 %v198, %v195
    %v235 = vpack.c.b16 %v199, %v196
    %v236 = vpack.c.b16 %v203, %v200
    %v237 = vpack.c.b16 %v204, %v201
    %v238 = vpack.c.b16 %v205, %v202
    %v239 = vpack.c.b16 %v209, %v206
    %v240 = vpack.c.b16 %v210, %v207
    %v241 = vpack.c.b16 %v211, %v208
    %v242 = vpack.c.b16 %v215, %v212
    %v243 = vpack.c.b16 %v216, %v213
    %v244 = vpack.c.b16 %v217, %v214
    %v245 = vpack.c.b16 %v221, %v218
    %v246 = vpack.c.b16 %v222, %v219
    %v247 = vpack.c.b16 %v223, %v220
    %272 = vmatprep.subr.bf16.mxu0 %v246
    %273 = vmatpush1.bf16.msra.mxu0 %v245
    %274 = vmatprep.subr.bf16.mxu0 %v243
    %275 = vmatpush1.bf16.msra.mxu0 %v242
    %276 = vmatprep.subr.bf16.mxu0 %v240
    %277 = vmatpush1.bf16.msra.mxu0 %v239
    %278 = vmatprep.subr.bf16.mxu0 %v237
    %279 = vmatpush1.bf16.msra.mxu0 %v236
    %280 = vmatprep.subr.bf16.mxu0 %v234
    %281 = vmatpush1.bf16.msra.mxu0 %v233
    %282 = vmatprep.subr.bf16.mxu0 %v231
    %283 = vmatpush1.bf16.msra.mxu0 %v230
    %284 = vmatprep.subr.bf16.mxu0 %v228
    %285 = vmatpush1.bf16.msra.mxu0 %v227
    %286 = vmatprep.subr.bf16.mxu0 %v225
    %287 = vmatpush1.bf16.msra.mxu0 %v224
    %288 = vmatprep.subr.bf16.mxu0 0
    %289 = vmatpush2.bf16.msra.mxu0 0
    %290 = vmatprep.subr.bf16.mxu0 0
    %291 = vmatpush2.bf16.msra.mxu0 0
    %292 = vmatprep.subr.bf16.mxu0 0
    %293 = vmatpush2.bf16.msra.mxu0 0
    %294 = vmatprep.subr.bf16.mxu0 0
    %295 = vmatpush2.bf16.msra.mxu0 0
    %296 = vmatprep.subr.bf16.mxu0 0
    %297 = vmatpush2.bf16.msra.mxu0 0
    %298 = vmatprep.subr.bf16.mxu0 0
    %299 = vmatpush2.bf16.msra.mxu0 0
    %300 = vmatprep.subr.bf16.mxu0 0
    %301 = vmatpush2.bf16.msra.mxu0 0
    %302 = vmatprep.subr.bf16.mxu0 0
    %303 = vmatpush2.bf16.msra.mxu0 0
    %304 = vmatprep.mubr.bf16.mxu0 0
    %305 = vmatmul.mubr.bf16.gmra.mxu0 %v136
    %v306 = vpop.f32.mrf.mxu0
    %v307 = vadd.f32 %v108, %v306
    %v308 = vpop.f32.mrf.mxu0
    %v309 = vadd.f32 %v112, %v308
    %v310 = vpop.f32.mrf.mxu0
    %v311 = vadd.f32 %v108, %v310
    %v312 = vpop.f32.mrf.mxu0
    %v313 = vadd.f32 %v112, %v312
    %314 = vmatprep.mubr.bf16.mxu0 0
    %315 = vmatmul.mubr.bf16.gmra.mxu0 %v137
    %v316 = vpop.f32.mrf.mxu0
    %v317 = vadd.f32 %v108, %v316
    %v318 = vpop.f32.mrf.mxu0
    %v319 = vadd.f32 %v112, %v318
    %v320 = vpop.f32.mrf.mxu0
    %v321 = vadd.f32 %v108, %v320
    %v322 = vpop.f32.mrf.mxu0
    %v323 = vadd.f32 %v112, %v322
    %324 = vmatprep.mubr.bf16.mxu0 0
    %325 = vmatmul.mubr.bf16.gmra.mxu0 %v138
    %v326 = vpop.f32.mrf.mxu0
    %v327 = vadd.f32 %v108, %v326
    %v328 = vpop.f32.mrf.mxu0
    %v329 = vadd.f32 %v112, %v328
    %v330 = vpop.f32.mrf.mxu0
    %v331 = vadd.f32 %v108, %v330
    %v332 = vpop.f32.mrf.mxu0
    %v333 = vadd.f32 %v112, %v332
    %334 = vmatprep.mubr.bf16.mxu0 0
    %335 = vmatmul.mubr.bf16.gmra.mxu0 %v139
    %v336 = vpop.f32.mrf.mxu0
    %v337 = vadd.f32 %v108, %v336
    %v338 = vpop.f32.mrf.mxu0
    %v339 = vadd.f32 %v112, %v338
    %v340 = vpop.f32.mrf.mxu0
    %v341 = vadd.f32 %v108, %v340
    %v342 = vpop.f32.mrf.mxu0
    %v343 = vadd.f32 %v112, %v342
    %344 = vdwg.mxu0
    %345 = vmatprep.subr.bf16.mxu0 0
    %346 = vmatpush1.bf16.msra.mxu0 %v247
    %347 = vmatprep.subr.bf16.mxu0 0
    %348 = vmatpush1.bf16.msra.mxu0 %v244
    %349 = vmatprep.subr.bf16.mxu0 0
    %350 = vmatpush1.bf16.msra.mxu0 %v241
    %351 = vmatprep.subr.bf16.mxu0 0
    %352 = vmatpush1.bf16.msra.mxu0 %v238
    %353 = vmatprep.subr.bf16.mxu0 0
    %354 = vmatpush1.bf16.msra.mxu0 %v235
    %355 = vmatprep.subr.bf16.mxu0 0
    %356 = vmatpush1.bf16.msra.mxu0 %v232
    %357 = vmatprep.subr.bf16.mxu0 0
    %358 = vmatpush1.bf16.msra.mxu0 %v229
    %359 = vmatprep.subr.bf16.mxu0 0
    %360 = vmatpush1.bf16.msra.mxu0 %v226
    %361 = vmatprep.subr.bf16.mxu0 0
    %362 = vmatpush2.bf16.msra.mxu0 0
    %363 = vmatprep.subr.bf16.mxu0 0
    %364 = vmatpush2.bf16.msra.mxu0 0
    %365 = vmatprep.subr.bf16.mxu0 0
    %366 = vmatpush2.bf16.msra.mxu0 0
    %367 = vmatprep.subr.bf16.mxu0 0
    %368 = vmatpush2.bf16.msra.mxu0 0
    %369 = vmatprep.subr.bf16.mxu0 0
    %370 = vmatpush2.bf16.msra.mxu0 0
    %371 = vmatprep.subr.bf16.mxu0 0
    %372 = vmatpush2.bf16.msra.mxu0 0
    %373 = vmatprep.subr.bf16.mxu0 0
    %374 = vmatpush2.bf16.msra.mxu0 0
    %375 = vmatprep.subr.bf16.mxu0 0
    %376 = vmatpush2.bf16.msra.mxu0 0
    %377 = vmatprep.mubr.bf16.mxu0 0
    %378 = vmatmul.mubr.bf16.gmra.mxu0 %v136
    %v379 = vpop.f32.mrf.mxu0
    %v380 = vadd.f32 %v116, %v379
    %v381 = vpop.f32.mrf.mxu0
    %v382 = vpop.f32.mrf.mxu0
    %v383 = vadd.f32 %v116, %v382
    %v384 = vpop.f32.mrf.mxu0
    %385 = vmatprep.mubr.bf16.mxu0 0
    %386 = vmatmul.mubr.bf16.gmra.mxu0 %v137
    %v387 = vpop.f32.mrf.mxu0
    %v388 = vadd.f32 %v116, %v387
    %v389 = vpop.f32.mrf.mxu0
    %v390 = vpop.f32.mrf.mxu0
    %v391 = vadd.f32 %v116, %v390
    %v392 = vpop.f32.mrf.mxu0
    %393 = vmatprep.mubr.bf16.mxu0 0
    %394 = vmatmul.mubr.bf16.gmra.mxu0 %v138
    %v395 = vpop.f32.mrf.mxu0
    %v396 = vadd.f32 %v116, %v395
    %v397 = vpop.f32.mrf.mxu0
    %v398 = vpop.f32.mrf.mxu0
    %v399 = vadd.f32 %v116, %v398
    %v400 = vpop.f32.mrf.mxu0
    %401 = vmatprep.mubr.bf16.mxu0 0
    %402 = vmatmul.mubr.bf16.gmra.mxu0 %v139
    %v403 = vpop.f32.mrf.mxu0
    %v404 = vadd.f32 %v116, %v403
    %v405 = vpop.f32.mrf.mxu0
    %v406 = vpop.f32.mrf.mxu0
    %v407 = vadd.f32 %v116, %v406
    %v408 = vpop.f32.mrf.mxu0
    %409 = vdwg.mxu0
    %410 = vst [vmem:[#allocation3] sm:$0xff] %v307
    %411 = vst [vmem:[#allocation3 + $0x8] sm:$0xff] %v309
    %412 = vst [vmem:[#allocation3 + $0x10] sm:$0xff] %v380
    %413 = vst [vmem:[#allocation3 + $0x18] sm:$0xff] %v311
    %414 = vst [vmem:[#allocation3 + $0x20] sm:$0xff] %v313
    %415 = vst [vmem:[#allocation3 + $0x28] sm:$0xff] %v383
    %416 = vst [vmem:[#allocation3 + $0x30] sm:$0xff] %v317
    %417 = vst [vmem:[#allocation3 + $0x38] sm:$0xff] %v319
    %418 = vst [vmem:[#allocation3 + $0x40] sm:$0xff] %v388
    %419 = vst [vmem:[#allocation3 + $0x48] sm:$0xff] %v321
    %420 = vst [vmem:[#allocation3 + $0x50] sm:$0xff] %v323
    %421 = vst [vmem:[#allocation3 + $0x58] sm:$0xff] %v391
    %422 = vst [vmem:[#allocation3 + $0x60] sm:$0xff] %v327
    %423 = vst [vmem:[#allocation3 + $0x68] sm:$0xff] %v329
    %424 = vst [vmem:[#allocation3 + $0x70] sm:$0xff] %v396
    %425 = vst [vmem:[#allocation3 + $0x78] sm:$0xff] %v331
    %426 = vst [vmem:[#allocation3 + $0x80] sm:$0xff] %v333
    %427 = vst [vmem:[#allocation3 + $0x88] sm:$0xff] %v399
    %428 = vst [vmem:[#allocation3 + $0x90] sm:$0xff] %v337
    %429 = vst [vmem:[#allocation3 + $0x98] sm:$0xff] %v339
    %430 = vst [vmem:[#allocation3 + $0xa0] sm:$0xff] %v404
    %431 = vst [vmem:[#allocation3 + $0xa8] sm:$0xff] %v341
    %432 = vst [vmem:[#allocation3 + $0xb0] sm:$0xff] %v343
    %433 = vst [vmem:[#allocation3 + $0xb8] sm:$0xff] %v407
    %434 = vst [vmem:[#allocation2] sm:$0xff] 0.0
    %s435 = smul.u32 0, 3
    %s436 = smul.addr %s435, 8
    %s437 = scalar_lea.vmem [#allocation3], %s436
    %v438 = vld [vmem:[%s437] sm:$0xff]
    %v439 = vld [vmem:[%s437 + $0x8] sm:$0xff]
    %v440 = vld [vmem:[%s437 + $0x10] sm:$0xff]
    %v441 = vld [vmem:[#allocation2] sm:$0xff]
    %v442 = vpack.c.bf16 %v441, %v441
    %v443 = vld [vmem:[#allocation9] sm:$0xff]
    %v444 = vld [vmem:[#allocation9 + $0x8] sm:$0xf]
    %v445 = vld [vmem:[#allocation9 + $0xc] sm:$0xff]
    %v446 = vld [vmem:[#allocation9 + $0x14] sm:$0xf]
    %v447 = vld [vmem:[#allocation9 + $0x18] sm:$0xff]
    %v448 = vld [vmem:[#allocation9 + $0x20] sm:$0xf]
    %v449 = vld [vmem:[#allocation9 + $0x24] sm:$0xff]
    %v450 = vld [vmem:[#allocation9 + $0x2c] sm:$0xf]
    %v451 = vld [vmem:[#allocation9 + $0x30] sm:$0xff]
    %v452 = vld [vmem:[#allocation9 + $0x38] sm:$0xf]
    %v453 = vld [vmem:[#allocation9 + $0x3c] sm:$0xff]
    %v454 = vld [vmem:[#allocation9 + $0x44] sm:$0xf]
    %v455 = vld [vmem:[#allocation9 + $0x48] sm:$0xff]
    %v456 = vld [vmem:[#allocation9 + $0x50] sm:$0xf]
    %v457 = vld [vmem:[#allocation9 + $0x54] sm:$0xff]
    %v458 = vld [vmem:[#allocation9 + $0x5c] sm:$0xf]
    %v459 = vld [vmem:[#allocation9 + $0x60] sm:$0xff]
    %v460 = vld [vmem:[#allocation9 + $0x68] sm:$0xf]
    %v461 = vld [vmem:[#allocation9 + $0x6c] sm:$0xff]
    %v462 = vld [vmem:[#allocation9 + $0x74] sm:$0xf]
    %v463 = vld [vmem:[#allocation9 + $0x78] sm:$0xff]
    %v464 = vld [vmem:[#allocation9 + $0x80] sm:$0xf]
    %v465 = vld [vmem:[#allocation9 + $0x84] sm:$0xff]
    %v466 = vld [vmem:[#allocation9 + $0x8c] sm:$0xf]
    %v467 = vld [vmem:[#allocation9 + $0x90] sm:$0xff]
    %v468 = vld [vmem:[#allocation9 + $0x98] sm:$0xf]
    %v469 = vld [vmem:[#allocation9 + $0x9c] sm:$0xff]
    %v470 = vld [vmem:[#allocation9 + $0xa4] sm:$0xf]
    %v471 = vld [vmem:[#allocation9 + $0xa8] sm:$0xff]
    %v472 = vld [vmem:[#allocation9 + $0xb0] sm:$0xf]
    %v473 = vld [vmem:[#allocation9 + $0xb4] sm:$0xff]
    %v474 = vld [vmem:[#allocation9 + $0xbc] sm:$0xf]
    %v475 = vld [vmem:[%s4] sm:$0x7]
    %v477 = vlaneseq
    %v478 = vshrl.u32 %v477, 7
    %v479 = vsub.s32 0, %v478
    %v480 = vrot.slane %v475, %v479
    %v481 = vlaneseq
    %v482 = vshrl.u32 %v481, 7
    %v483 = vsub.s32 1, %v482
    %v484 = vrot.slane %v475, %v483
    %v485 = vlaneseq
    %v486 = vshrl.u32 %v485, 7
    %v487 = vsub.s32 2, %v486
    %v488 = vrot.slane %v475, %v487
    %v524 = vunpack.c.l.b16 %v443
    %v525 = vunpack.c.h.b16 %v443
    %v526 = vunpack.c.l.b16 %v444
    %v527 = vunpack.c.l.b16 %v445
    %v528 = vunpack.c.h.b16 %v445
    %v529 = vunpack.c.l.b16 %v446
    %v530 = vunpack.c.l.b16 %v447
    %v531 = vunpack.c.h.b16 %v447
    %v532 = vunpack.c.l.b16 %v448
    %v533 = vunpack.c.l.b16 %v449
    %v534 = vunpack.c.h.b16 %v449
    %v535 = vunpack.c.l.b16 %v450
    %v536 = vunpack.c.l.b16 %v451
    %v537 = vunpack.c.h.b16 %v451
    %v538 = vunpack.c.l.b16 %v452
    %v539 = vunpack.c.l.b16 %v453
    %v540 = vunpack.c.h.b16 %v453
    %v541 = vunpack.c.l.b16 %v454
    %v542 = vunpack.c.l.b16 %v455
    %v543 = vunpack.c.h.b16 %v455
    %v544 = vunpack.c.l.b16 %v456
    %v545 = vunpack.c.l.b16 %v457
    %v546 = vunpack.c.h.b16 %v457
    %v547 = vunpack.c.l.b16 %v458
    %v548 = vunpack.c.l.b16 %v459
    %v549 = vunpack.c.h.b16 %v459
    %v550 = vunpack.c.l.b16 %v460
    %v551 = vunpack.c.l.b16 %v461
    %v552 = vunpack.c.h.b16 %v461
    %v553 = vunpack.c.l.b16 %v462
    %v554 = vunpack.c.l.b16 %v463
    %v555 = vunpack.c.h.b16 %v463
    %v556 = vunpack.c.l.b16 %v464
    %v557 = vunpack.c.l.b16 %v465
    %v558 = vunpack.c.h.b16 %v465
    %v559 = vunpack.c.l.b16 %v466
    %v560 = vunpack.c.l.b16 %v467
    %v561 = vunpack.c.h.b16 %v467
    %v562 = vunpack.c.l.b16 %v468
    %v563 = vunpack.c.l.b16 %v469
    %v564 = vunpack.c.h.b16 %v469
    %v565 = vunpack.c.l.b16 %v470
    %v566 = vunpack.c.l.b16 %v471
    %v567 = vunpack.c.h.b16 %v471
    %v568 = vunpack.c.l.b16 %v472
    %v569 = vunpack.c.l.b16 %v473
    %v570 = vunpack.c.h.b16 %v473
    %v571 = vunpack.c.l.b16 %v474
    %v572 = vpack.c.b16 %v527, %v524
    %v573 = vpack.c.b16 %v528, %v525
    %v574 = vpack.c.b16 %v529, %v526
    %v575 = vpack.c.b16 %v533, %v530
    %v576 = vpack.c.b16 %v534, %v531
    %v577 = vpack.c.b16 %v535, %v532
    %v578 = vpack.c.b16 %v539, %v536
    %v579 = vpack.c.b16 %v540, %v537
    %v580 = vpack.c.b16 %v541, %v538
    %v581 = vpack.c.b16 %v545, %v542
    %v582 = vpack.c.b16 %v546, %v543
    %v583 = vpack.c.b16 %v547, %v544
    %v584 = vpack.c.b16 %v551, %v548
    %v585 = vpack.c.b16 %v552, %v549
    %v586 = vpack.c.b16 %v553, %v550
    %v587 = vpack.c.b16 %v557, %v554
    %v588 = vpack.c.b16 %v558, %v555
    %v589 = vpack.c.b16 %v559, %v556
    %v590 = vpack.c.b16 %v563, %v560
    %v591 = vpack.c.b16 %v564, %v561
    %v592 = vpack.c.b16 %v565, %v562
    %v593 = vpack.c.b16 %v569, %v566
    %v594 = vpack.c.b16 %v570, %v567
    %v595 = vpack.c.b16 %v571, %v568
    %620 = vmatprep.subr.bf16.mxu0 %v594
    %621 = vmatpush1.bf16.msra.mxu0 %v593
    %622 = vmatprep.subr.bf16.mxu0 %v591
    %623 = vmatpush1.bf16.msra.mxu0 %v590
    %624 = vmatprep.subr.bf16.mxu0 %v588
    %625 = vmatpush1.bf16.msra.mxu0 %v587
    %626 = vmatprep.subr.bf16.mxu0 %v585
    %627 = vmatpush1.bf16.msra.mxu0 %v584
    %628 = vmatprep.subr.bf16.mxu0 %v582
    %629 = vmatpush1.bf16.msra.mxu0 %v581
    %630 = vmatprep.subr.bf16.mxu0 %v579
    %631 = vmatpush1.bf16.msra.mxu0 %v578
    %632 = vmatprep.subr.bf16.mxu0 %v576
    %633 = vmatpush1.bf16.msra.mxu0 %v575
    %634 = vmatprep.subr.bf16.mxu0 %v573
    %635 = vmatpush1.bf16.msra.mxu0 %v572
    %636 = vmatprep.subr.bf16.mxu0 0
    %637 = vmatpush2.bf16.msra.mxu0 0
    %638 = vmatprep.subr.bf16.mxu0 0
    %639 = vmatpush2.bf16.msra.mxu0 0
    %640 = vmatprep.subr.bf16.mxu0 0
    %641 = vmatpush2.bf16.msra.mxu0 0
    %642 = vmatprep.subr.bf16.mxu0 0
    %643 = vmatpush2.bf16.msra.mxu0 0
    %644 = vmatprep.subr.bf16.mxu0 0
    %645 = vmatpush2.bf16.msra.mxu0 0
    %646 = vmatprep.subr.bf16.mxu0 0
    %647 = vmatpush2.bf16.msra.mxu0 0
    %648 = vmatprep.subr.bf16.mxu0 0
    %649 = vmatpush2.bf16.msra.mxu0 0
    %650 = vmatprep.subr.bf16.mxu0 0
    %651 = vmatpush2.bf16.msra.mxu0 0
    %652 = vmatprep.mubr.bf16.mxu0 0
    %653 = vmatmul.mubr.bf16.gmra.mxu0 %v442
    %v654 = vpop.f32.mrf.mxu0
    %v655 = vadd.f32 %v480, %v654
    %v656 = vpop.f32.mrf.mxu0
    %v657 = vadd.f32 %v484, %v656
    %v658 = vpop.f32.mrf.mxu0
    %v659 = vpop.f32.mrf.mxu0
    %660 = vdwg.mxu0
    %661 = vmatprep.subr.bf16.mxu0 0
    %662 = vmatpush1.bf16.msra.mxu0 %v595
    %663 = vmatprep.subr.bf16.mxu0 0
    %664 = vmatpush1.bf16.msra.mxu0 %v592
    %665 = vmatprep.subr.bf16.mxu0 0
    %666 = vmatpush1.bf16.msra.mxu0 %v589
    %667 = vmatprep.subr.bf16.mxu0 0
    %668 = vmatpush1.bf16.msra.mxu0 %v586
    %669 = vmatprep.subr.bf16.mxu0 0
    %670 = vmatpush1.bf16.msra.mxu0 %v583
    %671 = vmatprep.subr.bf16.mxu0 0
    %672 = vmatpush1.bf16.msra.mxu0 %v580
    %673 = vmatprep.subr.bf16.mxu0 0
    %674 = vmatpush1.bf16.msra.mxu0 %v577
    %675 = vmatprep.subr.bf16.mxu0 0
    %676 = vmatpush1.bf16.msra.mxu0 %v574
    %677 = vmatprep.subr.bf16.mxu0 0
    %678 = vmatpush2.bf16.msra.mxu0 0
    %679 = vmatprep.subr.bf16.mxu0 0
    %680 = vmatpush2.bf16.msra.mxu0 0
    %681 = vmatprep.subr.bf16.mxu0 0
    %682 = vmatpush2.bf16.msra.mxu0 0
    %683 = vmatprep.subr.bf16.mxu0 0
    %684 = vmatpush2.bf16.msra.mxu0 0
    %685 = vmatprep.subr.bf16.mxu0 0
    %686 = vmatpush2.bf16.msra.mxu0 0
    %687 = vmatprep.subr.bf16.mxu0 0
    %688 = vmatpush2.bf16.msra.mxu0 0
    %689 = vmatprep.subr.bf16.mxu0 0
    %690 = vmatpush2.bf16.msra.mxu0 0
    %691 = vmatprep.subr.bf16.mxu0 0
    %692 = vmatpush2.bf16.msra.mxu0 0
    %693 = vmatprep.mubr.bf16.mxu0 0
    %694 = vmatmul.mubr.bf16.gmra.mxu0 %v442
    %v695 = vpop.f32.mrf.mxu0
    %v696 = vadd.f32 %v488, %v695
    %v697 = vpop.f32.mrf.mxu0
    %v698 = vpop.f32.mrf.mxu0
    %v699 = vpop.f32.mrf.mxu0
    %700 = vdwg.mxu0
    %v701 = vadd.f32 %v438, %v655
    %v702 = vxor.u32 %v701, 2147483648
    %v703 = vmul.f32 %v702, 1.442695
    %v704 = vpow.pop %v703
    %v705 = vadd.f32 %v704, 1.0
    %v706 = vrcp.pop %v705
    %v707 = vmul.f32 1.0, %v706
    %v708 = vadd.f32 %v439, %v657
    %v709 = vxor.u32 %v708, 2147483648
    %v710 = vmul.f32 %v709, 1.442695
    %v711 = vpow.pop %v710
    %v712 = vadd.f32 %v711, 1.0
    %v713 = vrcp.pop %v712
    %v714 = vmul.f32 1.0, %v713
    %v715 = vmul.f32 %v707, %v696
    %v716 = vadd.f32 %v440, %v715
    %v717 = vtanh.pop %v716
    %v718 = vsub.f32 1.0, %v714
    %v719 = vmul.f32 %v718, %v717
    %v720 = vmul.f32 %v714, %v441
    %v721 = vadd.f32 %v719, %v720
    %722 = vst [vmem:[#allocation2] sm:$0xff] %v721
    %v723 = vpack.c.bf16 %v721, %v721
    %724 = vst [vmem:[#allocation10] sm:$0xf] %v723
    %s725 = smul.u32 1, 3
    %s726 = smul.addr %s725, 8
    %s727 = scalar_lea.vmem [#allocation3], %s726
    %v728 = vld [vmem:[%s727] sm:$0xff]
    %v729 = vld [vmem:[%s727 + $0x8] sm:$0xff]
    %v730 = vld [vmem:[%s727 + $0x10] sm:$0xff]
    %v731 = vld [vmem:[#allocation2] sm:$0xff]
    %v732 = vpack.c.bf16 %v731, %v731
    %v733 = vld [vmem:[#allocation9] sm:$0xff]
    %v734 = vld [vmem:[#allocation9 + $0x8] sm:$0xf]
    %v735 = vld [vmem:[#allocation9 + $0xc] sm:$0xff]
    %v736 = vld [vmem:[#allocation9 + $0x14] sm:$0xf]
    %v737 = vld [vmem:[#allocation9 + $0x18] sm:$0xff]
    %v738 = vld [vmem:[#allocation9 + $0x20] sm:$0xf]
    %v739 = vld [vmem:[#allocation9 + $0x24] sm:$0xff]
    %v740 = vld [vmem:[#allocation9 + $0x2c] sm:$0xf]
    %v741 = vld [vmem:[#allocation9 + $0x30] sm:$0xff]
    %v742 = vld [vmem:[#allocation9 + $0x38] sm:$0xf]
    %v743 = vld [vmem:[#allocation9 + $0x3c] sm:$0xff]
    %v744 = vld [vmem:[#allocation9 + $0x44] sm:$0xf]
    %v745 = vld [vmem:[#allocation9 + $0x48] sm:$0xff]
    %v746 = vld [vmem:[#allocation9 + $0x50] sm:$0xf]
    %v747 = vld [vmem:[#allocation9 + $0x54] sm:$0xff]
    %v748 = vld [vmem:[#allocation9 + $0x5c] sm:$0xf]
    %v749 = vld [vmem:[#allocation9 + $0x60] sm:$0xff]
    %v750 = vld [vmem:[#allocation9 + $0x68] sm:$0xf]
    %v751 = vld [vmem:[#allocation9 + $0x6c] sm:$0xff]
    %v752 = vld [vmem:[#allocation9 + $0x74] sm:$0xf]
    %v753 = vld [vmem:[#allocation9 + $0x78] sm:$0xff]
    %v754 = vld [vmem:[#allocation9 + $0x80] sm:$0xf]
    %v755 = vld [vmem:[#allocation9 + $0x84] sm:$0xff]
    %v756 = vld [vmem:[#allocation9 + $0x8c] sm:$0xf]
    %v757 = vld [vmem:[#allocation9 + $0x90] sm:$0xff]
    %v758 = vld [vmem:[#allocation9 + $0x98] sm:$0xf]
    %v759 = vld [vmem:[#allocation9 + $0x9c] sm:$0xff]
    %v760 = vld [vmem:[#allocation9 + $0xa4] sm:$0xf]
    %v761 = vld [vmem:[#allocation9 + $0xa8] sm:$0xff]
    %v762 = vld [vmem:[#allocation9 + $0xb0] sm:$0xf]
    %v763 = vld [vmem:[#allocation9 + $0xb4] sm:$0xff]
    %v764 = vld [vmem:[#allocation9 + $0xbc] sm:$0xf]
    %v765 = vld [vmem:[%s4] sm:$0x7]
    %v767 = vlaneseq
    %v768 = vshrl.u32 %v767, 7
    %v769 = vsub.s32 0, %v768
    %v770 = vrot.slane %v765, %v769
    %v771 = vlaneseq
    %v772 = vshrl.u32 %v771, 7
    %v773 = vsub.s32 1, %v772
    %v774 = vrot.slane %v765, %v773
    %v775 = vlaneseq
    %v776 = vshrl.u32 %v775, 7
    %v777 = vsub.s32 2, %v776
    %v778 = vrot.slane %v765, %v777
    %v814 = vunpack.c.l.b16 %v733
    %v815 = vunpack.c.h.b16 %v733
    %v816 = vunpack.c.l.b16 %v734
    %v817 = vunpack.c.l.b16 %v735
    %v818 = vunpack.c.h.b16 %v735
    %v819 = vunpack.c.l.b16 %v736
    %v820 = vunpack.c.l.b16 %v737
    %v821 = vunpack.c.h.b16 %v737
    %v822 = vunpack.c.l.b16 %v738
    %v823 = vunpack.c.l.b16 %v739
    %v824 = vunpack.c.h.b16 %v739
    %v825 = vunpack.c.l.b16 %v740
    %v826 = vunpack.c.l.b16 %v741
    %v827 = vunpack.c.h.b16 %v741
    %v828 = vunpack.c.l.b16 %v742
    %v829 = vunpack.c.l.b16 %v743
    %v830 = vunpack.c.h.b16 %v743
    %v831 = vunpack.c.l.b16 %v744
    %v832 = vunpack.c.l.b16 %v745
    %v833 = vunpack.c.h.b16 %v745
    %v834 = vunpack.c.l.b16 %v746
    %v835 = vunpack.c.l.b16 %v747
    %v836 = vunpack.c.h.b16 %v747
    %v837 = vunpack.c.l.b16 %v748
    %v838 = vunpack.c.l.b16 %v749
    %v839 = vunpack.c.h.b16 %v749
    %v840 = vunpack.c.l.b16 %v750
    %v841 = vunpack.c.l.b16 %v751
    %v842 = vunpack.c.h.b16 %v751
    %v843 = vunpack.c.l.b16 %v752
    %v844 = vunpack.c.l.b16 %v753
    %v845 = vunpack.c.h.b16 %v753
    %v846 = vunpack.c.l.b16 %v754
    %v847 = vunpack.c.l.b16 %v755
    %v848 = vunpack.c.h.b16 %v755
    %v849 = vunpack.c.l.b16 %v756
    %v850 = vunpack.c.l.b16 %v757
    %v851 = vunpack.c.h.b16 %v757
    %v852 = vunpack.c.l.b16 %v758
    %v853 = vunpack.c.l.b16 %v759
    %v854 = vunpack.c.h.b16 %v759
    %v855 = vunpack.c.l.b16 %v760
    %v856 = vunpack.c.l.b16 %v761
    %v857 = vunpack.c.h.b16 %v761
    %v858 = vunpack.c.l.b16 %v762
    %v859 = vunpack.c.l.b16 %v763
    %v860 = vunpack.c.h.b16 %v763
    %v861 = vunpack.c.l.b16 %v764
    %v862 = vpack.c.b16 %v817, %v814
    %v863 = vpack.c.b16 %v818, %v815
    %v864 = vpack.c.b16 %v819, %v816
    %v865 = vpack.c.b16 %v823, %v820
    %v866 = vpack.c.b16 %v824, %v821
    %v867 = vpack.c.b16 %v825, %v822
    %v868 = vpack.c.b16 %v829, %v826
    %v869 = vpack.c.b16 %v830, %v827
    %v870 = vpack.c.b16 %v831, %v828
    %v871 = vpack.c.b16 %v835, %v832
    %v872 = vpack.c.b16 %v836, %v833
    %v873 = vpack.c.b16 %v837, %v834
    %v874 = vpack.c.b16 %v841, %v838
    %v875 = vpack.c.b16 %v842, %v839
    %v876 = vpack.c.b16 %v843, %v840
    %v877 = vpack.c.b16 %v847, %v844
    %v878 = vpack.c.b16 %v848, %v845
    %v879 = vpack.c.b16 %v849, %v846
    %v880 = vpack.c.b16 %v853, %v850
    %v881 = vpack.c.b16 %v854, %v851
    %v882 = vpack.c.b16 %v855, %v852
    %v883 = vpack.c.b16 %v859, %v856
    %v884 = vpack.c.b16 %v860, %v857
    %v885 = vpack.c.b16 %v861, %v858
    %910 = vmatprep.subr.bf16.mxu0 %v884
    %911 = vmatpush1.bf16.msra.mxu0 %v883
    %912 = vmatprep.subr.bf16.mxu0 %v881
    %913 = vmatpush1.bf16.msra.mxu0 %v880
    %914 = vmatprep.subr.bf16.mxu0 %v878
    %915 = vmatpush1.bf16.msra.mxu0 %v877
    %916 = vmatprep.subr.bf16.mxu0 %v875
    %917 = vmatpush1.bf16.msra.mxu0 %v874
    %918 = vmatprep.subr.bf16.mxu0 %v872
    %919 = vmatpush1.bf16.msra.mxu0 %v871
    %920 = vmatprep.subr.bf16.mxu0 %v869
    %921 = vmatpush1.bf16.msra.mxu0 %v868
    %922 = vmatprep.subr.bf16.mxu0 %v866
    %923 = vmatpush1.bf16.msra.mxu0 %v865
    %924 = vmatprep.subr.bf16.mxu0 %v863
    %925 = vmatpush1.bf16.msra.mxu0 %v862
    %926 = vmatprep.subr.bf16.mxu0 0
    %927 = vmatpush2.bf16.msra.mxu0 0
    %928 = vmatprep.subr.bf16.mxu0 0
    %929 = vmatpush2.bf16.msra.mxu0 0
    %930 = vmatprep.subr.bf16.mxu0 0
    %931 = vmatpush2.bf16.msra.mxu0 0
    %932 = vmatprep.subr.bf16.mxu0 0
    %933 = vmatpush2.bf16.msra.mxu0 0
    %934 = vmatprep.subr.bf16.mxu0 0
    %935 = vmatpush2.bf16.msra.mxu0 0
    %936 = vmatprep.subr.bf16.mxu0 0
    %937 = vmatpush2.bf16.msra.mxu0 0
    %938 = vmatprep.subr.bf16.mxu0 0
    %939 = vmatpush2.bf16.msra.mxu0 0
    %940 = vmatprep.subr.bf16.mxu0 0
    %941 = vmatpush2.bf16.msra.mxu0 0
    %942 = vmatprep.mubr.bf16.mxu0 0
    %943 = vmatmul.mubr.bf16.gmra.mxu0 %v732
    %v944 = vpop.f32.mrf.mxu0
    %v945 = vadd.f32 %v770, %v944
    %v946 = vpop.f32.mrf.mxu0
    %v947 = vadd.f32 %v774, %v946
    %v948 = vpop.f32.mrf.mxu0
    %v949 = vpop.f32.mrf.mxu0
    %950 = vdwg.mxu0
    %951 = vmatprep.subr.bf16.mxu0 0
    %952 = vmatpush1.bf16.msra.mxu0 %v885
    %953 = vmatprep.subr.bf16.mxu0 0
    %954 = vmatpush1.bf16.msra.mxu0 %v882
    %955 = vmatprep.subr.bf16.mxu0 0
    %956 = vmatpush1.bf16.msra.mxu0 %v879
    %957 = vmatprep.subr.bf16.mxu0 0
    %958 = vmatpush1.bf16.msra.mxu0 %v876
    %959 = vmatprep.subr.bf16.mxu0 0
    %960 = vmatpush1.bf16.msra.mxu0 %v873
    %961 = vmatprep.subr.bf16.mxu0 0
    %962 = vmatpush1.bf16.msra.mxu0 %v870
    %963 = vmatprep.subr.bf16.mxu0 0
    %964 = vmatpush1.bf16.msra.mxu0 %v867
    %965 = vmatprep.subr.bf16.mxu0 0
    %966 = vmatpush1.bf16.msra.mxu0 %v864
    %967 = vmatprep.subr.bf16.mxu0 0
    %968 = vmatpush2.bf16.msra.mxu0 0
    %969 = vmatprep.subr.bf16.mxu0 0
    %970 = vmatpush2.bf16.msra.mxu0 0
    %971 = vmatprep.subr.bf16.mxu0 0
    %972 = vmatpush2.bf16.msra.mxu0 0
    %973 = vmatprep.subr.bf16.mxu0 0
    %974 = vmatpush2.bf16.msra.mxu0 0
    %975 = vmatprep.subr.bf16.mxu0 0
    %976 = vmatpush2.bf16.msra.mxu0 0
    %977 = vmatprep.subr.bf16.mxu0 0
    %978 = vmatpush2.bf16.msra.mxu0 0
    %979 = vmatprep.subr.bf16.mxu0 0
    %980 = vmatpush2.bf16.msra.mxu0 0
    %981 = vmatprep.subr.bf16.mxu0 0
    %982 = vmatpush2.bf16.msra.mxu0 0
    %983 = vmatprep.mubr.bf16.mxu0 0
    %984 = vmatmul.mubr.bf16.gmra.mxu0 %v732
    %v985 = vpop.f32.mrf.mxu0
    %v986 = vadd.f32 %v778, %v985
    %v987 = vpop.f32.mrf.mxu0
    %v988 = vpop.f32.mrf.mxu0
    %v989 = vpop.f32.mrf.mxu0
    %990 = vdwg.mxu0
    %v991 = vadd.f32 %v728, %v945
    %v992 = vxor.u32 %v991, 2147483648
    %v993 = vmul.f32 %v992, 1.442695
    %v994 = vpow.pop %v993
    %v995 = vadd.f32 %v994, 1.0
    %v996 = vrcp.pop %v995
    %v997 = vmul.f32 1.0, %v996
    %v998 = vadd.f32 %v729, %v947
    %v999 = vxor.u32 %v998, 2147483648
    %v1000 = vmul.f32 %v999, 1.442695
    %v1001 = vpow.pop %v1000
    %v1002 = vadd.f32 %v1001, 1.0
    %v1003 = vrcp.pop %v1002
    %v1004 = vmul.f32 1.0, %v1003
    %v1005 = vmul.f32 %v997, %v986
    %v1006 = vadd.f32 %v730, %v1005
    %v1007 = vtanh.pop %v1006
    %v1008 = vsub.f32 1.0, %v1004
    %v1009 = vmul.f32 %v1008, %v1007
    %v1010 = vmul.f32 %v1004, %v731
    %v1011 = vadd.f32 %v1009, %v1010
    %1012 = vst [vmem:[#allocation2] sm:$0xff] %v1011
    %v1013 = vpack.c.bf16 %v1011, %v1011
    %s1014 = scalar_lea.vmem [#allocation10], 4
    %1015 = vst [vmem:[%s1014] sm:$0xf] %v1013
    %s1016 = smul.u32 2, 3
    %s1017 = smul.addr %s1016, 8
    %s1018 = scalar_lea.vmem [#allocation3], %s1017
    %v1019 = vld [vmem:[%s1018] sm:$0xff]
    %v1020 = vld [vmem:[%s1018 + $0x8] sm:$0xff]
    %v1021 = vld [vmem:[%s1018 + $0x10] sm:$0xff]
    %v1022 = vld [vmem:[#allocation2] sm:$0xff]
    %v1023 = vpack.c.bf16 %v1022, %v1022
    %v1024 = vld [vmem:[#allocation9] sm:$0xff]
    %v1025 = vld [vmem:[#allocation9 + $0x8] sm:$0xf]
    %v1026 = vld [vmem:[#allocation9 + $0xc] sm:$0xff]
    %v1027 = vld [vmem:[#allocation9 + $0x14] sm:$0xf]
    %v1028 = vld [vmem:[#allocation9 + $0x18] sm:$0xff]
    %v1029 = vld [vmem:[#allocation9 + $0x20] sm:$0xf]
    %v1030 = vld [vmem:[#allocation9 + $0x24] sm:$0xff]
    %v1031 = vld [vmem:[#allocation9 + $0x2c] sm:$0xf]
    %v1032 = vld [vmem:[#allocation9 + $0x30] sm:$0xff]
    %v1033 = vld [vmem:[#allocation9 + $0x38] sm:$0xf]
    %v1034 = vld [vmem:[#allocation9 + $0x3c] sm:$0xff]
    %v1035 = vld [vmem:[#allocation9 + $0x44] sm:$0xf]
    %v1036 = vld [vmem:[#allocation9 + $0x48] sm:$0xff]
    %v1037 = vld [vmem:[#allocation9 + $0x50] sm:$0xf]
    %v1038 = vld [vmem:[#allocation9 + $0x54] sm:$0xff]
    %v1039 = vld [vmem:[#allocation9 + $0x5c] sm:$0xf]
    %v1040 = vld [vmem:[#allocation9 + $0x60] sm:$0xff]
    %v1041 = vld [vmem:[#allocation9 + $0x68] sm:$0xf]
    %v1042 = vld [vmem:[#allocation9 + $0x6c] sm:$0xff]
    %v1043 = vld [vmem:[#allocation9 + $0x74] sm:$0xf]
    %v1044 = vld [vmem:[#allocation9 + $0x78] sm:$0xff]
    %v1045 = vld [vmem:[#allocation9 + $0x80] sm:$0xf]
    %v1046 = vld [vmem:[#allocation9 + $0x84] sm:$0xff]
    %v1047 = vld [vmem:[#allocation9 + $0x8c] sm:$0xf]
    %v1048 = vld [vmem:[#allocation9 + $0x90] sm:$0xff]
    %v1049 = vld [vmem:[#allocation9 + $0x98] sm:$0xf]
    %v1050 = vld [vmem:[#allocation9 + $0x9c] sm:$0xff]
    %v1051 = vld [vmem:[#allocation9 + $0xa4] sm:$0xf]
    %v1052 = vld [vmem:[#allocation9 + $0xa8] sm:$0xff]
    %v1053 = vld [vmem:[#allocation9 + $0xb0] sm:$0xf]
    %v1054 = vld [vmem:[#allocation9 + $0xb4] sm:$0xff]
    %v1055 = vld [vmem:[#allocation9 + $0xbc] sm:$0xf]
    %v1056 = vld [vmem:[%s4] sm:$0x7]
    %v1058 = vlaneseq
    %v1059 = vshrl.u32 %v1058, 7
    %v1060 = vsub.s32 0, %v1059
    %v1061 = vrot.slane %v1056, %v1060
    %v1062 = vlaneseq
    %v1063 = vshrl.u32 %v1062, 7
    %v1064 = vsub.s32 1, %v1063
    %v1065 = vrot.slane %v1056, %v1064
    %v1066 = vlaneseq
    %v1067 = vshrl.u32 %v1066, 7
    %v1068 = vsub.s32 2, %v1067
    %v1069 = vrot.slane %v1056, %v1068
    %v1105 = vunpack.c.l.b16 %v1024
    %v1106 = vunpack.c.h.b16 %v1024
    %v1107 = vunpack.c.l.b16 %v1025
    %v1108 = vunpack.c.l.b16 %v1026
    %v1109 = vunpack.c.h.b16 %v1026
    %v1110 = vunpack.c.l.b16 %v1027
    %v1111 = vunpack.c.l.b16 %v1028
    %v1112 = vunpack.c.h.b16 %v1028
    %v1113 = vunpack.c.l.b16 %v1029
    %v1114 = vunpack.c.l.b16 %v1030
    %v1115 = vunpack.c.h.b16 %v1030
    %v1116 = vunpack.c.l.b16 %v1031
    %v1117 = vunpack.c.l.b16 %v1032
    %v1118 = vunpack.c.h.b16 %v1032
    %v1119 = vunpack.c.l.b16 %v1033
    %v1120 = vunpack.c.l.b16 %v1034
    %v1121 = vunpack.c.h.b16 %v1034
    %v1122 = vunpack.c.l.b16 %v1035
    %v1123 = vunpack.c.l.b16 %v1036
    %v1124 = vunpack.c.h.b16 %v1036
    %v1125 = vunpack.c.l.b16 %v1037
    %v1126 = vunpack.c.l.b16 %v1038
    %v1127 = vunpack.c.h.b16 %v1038
    %v1128 = vunpack.c.l.b16 %v1039
    %v1129 = vunpack.c.l.b16 %v1040
    %v1130 = vunpack.c.h.b16 %v1040
    %v1131 = vunpack.c.l.b16 %v1041
    %v1132 = vunpack.c.l.b16 %v1042
    %v1133 = vunpack.c.h.b16 %v1042
    %v1134 = vunpack.c.l.b16 %v1043
    %v1135 = vunpack.c.l.b16 %v1044
    %v1136 = vunpack.c.h.b16 %v1044
    %v1137 = vunpack.c.l.b16 %v1045
    %v1138 = vunpack.c.l.b16 %v1046
    %v1139 = vunpack.c.h.b16 %v1046
    %v1140 = vunpack.c.l.b16 %v1047
    %v1141 = vunpack.c.l.b16 %v1048
    %v1142 = vunpack.c.h.b16 %v1048
    %v1143 = vunpack.c.l.b16 %v1049
    %v1144 = vunpack.c.l.b16 %v1050
    %v1145 = vunpack.c.h.b16 %v1050
    %v1146 = vunpack.c.l.b16 %v1051
    %v1147 = vunpack.c.l.b16 %v1052
    %v1148 = vunpack.c.h.b16 %v1052
    %v1149 = vunpack.c.l.b16 %v1053
    %v1150 = vunpack.c.l.b16 %v1054
    %v1151 = vunpack.c.h.b16 %v1054
    %v1152 = vunpack.c.l.b16 %v1055
    %v1153 = vpack.c.b16 %v1108, %v1105
    %v1154 = vpack.c.b16 %v1109, %v1106
    %v1155 = vpack.c.b16 %v1110, %v1107
    %v1156 = vpack.c.b16 %v1114, %v1111
    %v1157 = vpack.c.b16 %v1115, %v1112
    %v1158 = vpack.c.b16 %v1116, %v1113
    %v1159 = vpack.c.b16 %v1120, %v1117
    %v1160 = vpack.c.b16 %v1121, %v1118
    %v1161 = vpack.c.b16 %v1122, %v1119
    %v1162 = vpack.c.b16 %v1126, %v1123
    %v1163 = vpack.c.b16 %v1127, %v1124
    %v1164 = vpack.c.b16 %v1128, %v1125
    %v1165 = vpack.c.b16 %v1132, %v1129
    %v1166 = vpack.c.b16 %v1133, %v1130
    %v1167 = vpack.c.b16 %v1134, %v1131
    %v1168 = vpack.c.b16 %v1138, %v1135
    %v1169 = vpack.c.b16 %v1139, %v1136
    %v1170 = vpack.c.b16 %v1140, %v1137
    %v1171 = vpack.c.b16 %v1144, %v1141
    %v1172 = vpack.c.b16 %v1145, %v1142
    %v1173 = vpack.c.b16 %v1146, %v1143
    %v1174 = vpack.c.b16 %v1150, %v1147
    %v1175 = vpack.c.b16 %v1151, %v1148
    %v1176 = vpack.c.b16 %v1152, %v1149
    %1201 = vmatprep.subr.bf16.mxu0 %v1175
    %1202 = vmatpush1.bf16.msra.mxu0 %v1174
    %1203 = vmatprep.subr.bf16.mxu0 %v1172
    %1204 = vmatpush1.bf16.msra.mxu0 %v1171
    %1205 = vmatprep.subr.bf16.mxu0 %v1169
    %1206 = vmatpush1.bf16.msra.mxu0 %v1168
    %1207 = vmatprep.subr.bf16.mxu0 %v1166
    %1208 = vmatpush1.bf16.msra.mxu0 %v1165
    %1209 = vmatprep.subr.bf16.mxu0 %v1163
    %1210 = vmatpush1.bf16.msra.mxu0 %v1162
    %1211 = vmatprep.subr.bf16.mxu0 %v1160
    %1212 = vmatpush1.bf16.msra.mxu0 %v1159
    %1213 = vmatprep.subr.bf16.mxu0 %v1157
    %1214 = vmatpush1.bf16.msra.mxu0 %v1156
    %1215 = vmatprep.subr.bf16.mxu0 %v1154
    %1216 = vmatpush1.bf16.msra.mxu0 %v1153
    %1217 = vmatprep.subr.bf16.mxu0 0
    %1218 = vmatpush2.bf16.msra.mxu0 0
    %1219 = vmatprep.subr.bf16.mxu0 0
    %1220 = vmatpush2.bf16.msra.mxu0 0
    %1221 = vmatprep.subr.bf16.mxu0 0
    %1222 = vmatpush2.bf16.msra.mxu0 0
    %1223 = vmatprep.subr.bf16.mxu0 0
    %1224 = vmatpush2.bf16.msra.mxu0 0
    %1225 = vmatprep.subr.bf16.mxu0 0
    %1226 = vmatpush2.bf16.msra.mxu0 0
    %1227 = vmatprep.subr.bf16.mxu0 0
    %1228 = vmatpush2.bf16.msra.mxu0 0
    %1229 = vmatprep.subr.bf16.mxu0 0
    %1230 = vmatpush2.bf16.msra.mxu0 0
    %1231 = vmatprep.subr.bf16.mxu0 0
    %1232 = vmatpush2.bf16.msra.mxu0 0
    %1233 = vmatprep.mubr.bf16.mxu0 0
    %1234 = vmatmul.mubr.bf16.gmra.mxu0 %v1023
    %v1235 = vpop.f32.mrf.mxu0
    %v1236 = vadd.f32 %v1061, %v1235
    %v1237 = vpop.f32.mrf.mxu0
    %v1238 = vadd.f32 %v1065, %v1237
    %v1239 = vpop.f32.mrf.mxu0
    %v1240 = vpop.f32.mrf.mxu0
    %1241 = vdwg.mxu0
    %1242 = vmatprep.subr.bf16.mxu0 0
    %1243 = vmatpush1.bf16.msra.mxu0 %v1176
    %1244 = vmatprep.subr.bf16.mxu0 0
    %1245 = vmatpush1.bf16.msra.mxu0 %v1173
    %1246 = vmatprep.subr.bf16.mxu0 0
    %1247 = vmatpush1.bf16.msra.mxu0 %v1170
    %1248 = vmatprep.subr.bf16.mxu0 0
    %1249 = vmatpush1.bf16.msra.mxu0 %v1167
    %1250 = vmatprep.subr.bf16.mxu0 0
    %1251 = vmatpush1.bf16.msra.mxu0 %v1164
    %1252 = vmatprep.subr.bf16.mxu0 0
    %1253 = vmatpush1.bf16.msra.mxu0 %v1161
    %1254 = vmatprep.subr.bf16.mxu0 0
    %1255 = vmatpush1.bf16.msra.mxu0 %v1158
    %1256 = vmatprep.subr.bf16.mxu0 0
    %1257 = vmatpush1.bf16.msra.mxu0 %v1155
    %1258 = vmatprep.subr.bf16.mxu0 0
    %1259 = vmatpush2.bf16.msra.mxu0 0
    %1260 = vmatprep.subr.bf16.mxu0 0
    %1261 = vmatpush2.bf16.msra.mxu0 0
    %1262 = vmatprep.subr.bf16.mxu0 0
    %1263 = vmatpush2.bf16.msra.mxu0 0
    %1264 = vmatprep.subr.bf16.mxu0 0
    %1265 = vmatpush2.bf16.msra.mxu0 0
    %1266 = vmatprep.subr.bf16.mxu0 0
    %1267 = vmatpush2.bf16.msra.mxu0 0
    %1268 = vmatprep.subr.bf16.mxu0 0
    %1269 = vmatpush2.bf16.msra.mxu0 0
    %1270 = vmatprep.subr.bf16.mxu0 0
    %1271 = vmatpush2.bf16.msra.mxu0 0
    %1272 = vmatprep.subr.bf16.mxu0 0
    %1273 = vmatpush2.bf16.msra.mxu0 0
    %1274 = vmatprep.mubr.bf16.mxu0 0
    %1275 = vmatmul.mubr.bf16.gmra.mxu0 %v1023
    %v1276 = vpop.f32.mrf.mxu0
    %v1277 = vadd.f32 %v1069, %v1276
    %v1278 = vpop.f32.mrf.mxu0
    %v1279 = vpop.f32.mrf.mxu0
    %v1280 = vpop.f32.mrf.mxu0
    %1281 = vdwg.mxu0
    %v1282 = vadd.f32 %v1019, %v1236
    %v1283 = vxor.u32 %v1282, 2147483648
    %v1284 = vmul.f32 %v1283, 1.442695
    %v1285 = vpow.pop %v1284
    %v1286 = vadd.f32 %v1285, 1.0
    %v1287 = vrcp.pop %v1286
    %v1288 = vmul.f32 1.0, %v1287
    %v1289 = vadd.f32 %v1020, %v1238
    %v1290 = vxor.u32 %v1289, 2147483648
    %v1291 = vmul.f32 %v1290, 1.442695
    %v1292 = vpow.pop %v1291
    %v1293 = vadd.f32 %v1292, 1.0
    %v1294 = vrcp.pop %v1293
    %v1295 = vmul.f32 1.0, %v1294
    %v1296 = vmul.f32 %v1288, %v1277
    %v1297 = vadd.f32 %v1021, %v1296
    %v1298 = vtanh.pop %v1297
    %v1299 = vsub.f32 1.0, %v1295
    %v1300 = vmul.f32 %v1299, %v1298
    %v1301 = vmul.f32 %v1295, %v1022
    %v1302 = vadd.f32 %v1300, %v1301
    %1303 = vst [vmem:[#allocation2] sm:$0xff] %v1302
    %v1304 = vpack.c.bf16 %v1302, %v1302
    %s1305 = scalar_lea.vmem [#allocation10], 8
    %1306 = vst [vmem:[%s1305] sm:$0xf] %v1304
    %s1307 = smul.u32 3, 3
    %s1308 = smul.addr %s1307, 8
    %s1309 = scalar_lea.vmem [#allocation3], %s1308
    %v1310 = vld [vmem:[%s1309] sm:$0xff]
    %v1311 = vld [vmem:[%s1309 + $0x8] sm:$0xff]
    %v1312 = vld [vmem:[%s1309 + $0x10] sm:$0xff]
    %v1313 = vld [vmem:[#allocation2] sm:$0xff]
    %v1314 = vpack.c.bf16 %v1313, %v1313
    %v1315 = vld [vmem:[#allocation9] sm:$0xff]
    %v1316 = vld [vmem:[#allocation9 + $0x8] sm:$0xf]
    %v1317 = vld [vmem:[#allocation9 + $0xc] sm:$0xff]
    %v1318 = vld [vmem:[#allocation9 + $0x14] sm:$0xf]
    %v1319 = vld [vmem:[#allocation9 + $0x18] sm:$0xff]
    %v1320 = vld [vmem:[#allocation9 + $0x20] sm:$0xf]
    %v1321 = vld [vmem:[#allocation9 + $0x24] sm:$0xff]
    %v1322 = vld [vmem:[#allocation9 + $0x2c] sm:$0xf]
    %v1323 = vld [vmem:[#allocation9 + $0x30] sm:$0xff]
    %v1324 = vld [vmem:[#allocation9 + $0x38] sm:$0xf]
    %v1325 = vld [vmem:[#allocation9 + $0x3c] sm:$0xff]
    %v1326 = vld [vmem:[#allocation9 + $0x44] sm:$0xf]
    %v1327 = vld [vmem:[#allocation9 + $0x48] sm:$0xff]
    %v1328 = vld [vmem:[#allocation9 + $0x50] sm:$0xf]
    %v1329 = vld [vmem:[#allocation9 + $0x54] sm:$0xff]
    %v1330 = vld [vmem:[#allocation9 + $0x5c] sm:$0xf]
    %v1331 = vld [vmem:[#allocation9 + $0x60] sm:$0xff]
    %v1332 = vld [vmem:[#allocation9 + $0x68] sm:$0xf]
    %v1333 = vld [vmem:[#allocation9 + $0x6c] sm:$0xff]
    %v1334 = vld [vmem:[#allocation9 + $0x74] sm:$0xf]
    %v1335 = vld [vmem:[#allocation9 + $0x78] sm:$0xff]
    %v1336 = vld [vmem:[#allocation9 + $0x80] sm:$0xf]
    %v1337 = vld [vmem:[#allocation9 + $0x84] sm:$0xff]
    %v1338 = vld [vmem:[#allocation9 + $0x8c] sm:$0xf]
    %v1339 = vld [vmem:[#allocation9 + $0x90] sm:$0xff]
    %v1340 = vld [vmem:[#allocation9 + $0x98] sm:$0xf]
    %v1341 = vld [vmem:[#allocation9 + $0x9c] sm:$0xff]
    %v1342 = vld [vmem:[#allocation9 + $0xa4] sm:$0xf]
    %v1343 = vld [vmem:[#allocation9 + $0xa8] sm:$0xff]
    %v1344 = vld [vmem:[#allocation9 + $0xb0] sm:$0xf]
    %v1345 = vld [vmem:[#allocation9 + $0xb4] sm:$0xff]
    %v1346 = vld [vmem:[#allocation9 + $0xbc] sm:$0xf]
    %v1347 = vld [vmem:[%s4] sm:$0x7]
    %v1349 = vlaneseq
    %v1350 = vshrl.u32 %v1349, 7
    %v1351 = vsub.s32 0, %v1350
    %v1352 = vrot.slane %v1347, %v1351
    %v1353 = vlaneseq
    %v1354 = vshrl.u32 %v1353, 7
    %v1355 = vsub.s32 1, %v1354
    %v1356 = vrot.slane %v1347, %v1355
    %v1357 = vlaneseq
    %v1358 = vshrl.u32 %v1357, 7
    %v1359 = vsub.s32 2, %v1358
    %v1360 = vrot.slane %v1347, %v1359
    %v1396 = vunpack.c.l.b16 %v1315
    %v1397 = vunpack.c.h.b16 %v1315
    %v1398 = vunpack.c.l.b16 %v1316
    %v1399 = vunpack.c.l.b16 %v1317
    %v1400 = vunpack.c.h.b16 %v1317
    %v1401 = vunpack.c.l.b16 %v1318
    %v1402 = vunpack.c.l.b16 %v1319
    %v1403 = vunpack.c.h.b16 %v1319
    %v1404 = vunpack.c.l.b16 %v1320
    %v1405 = vunpack.c.l.b16 %v1321
    %v1406 = vunpack.c.h.b16 %v1321
    %v1407 = vunpack.c.l.b16 %v1322
    %v1408 = vunpack.c.l.b16 %v1323
    %v1409 = vunpack.c.h.b16 %v1323
    %v1410 = vunpack.c.l.b16 %v1324
    %v1411 = vunpack.c.l.b16 %v1325
    %v1412 = vunpack.c.h.b16 %v1325
    %v1413 = vunpack.c.l.b16 %v1326
    %v1414 = vunpack.c.l.b16 %v1327
    %v1415 = vunpack.c.h.b16 %v1327
    %v1416 = vunpack.c.l.b16 %v1328
    %v1417 = vunpack.c.l.b16 %v1329
    %v1418 = vunpack.c.h.b16 %v1329
    %v1419 = vunpack.c.l.b16 %v1330
    %v1420 = vunpack.c.l.b16 %v1331
    %v1421 = vunpack.c.h.b16 %v1331
    %v1422 = vunpack.c.l.b16 %v1332
    %v1423 = vunpack.c.l.b16 %v1333
    %v1424 = vunpack.c.h.b16 %v1333
    %v1425 = vunpack.c.l.b16 %v1334
    %v1426 = vunpack.c.l.b16 %v1335
    %v1427 = vunpack.c.h.b16 %v1335
    %v1428 = vunpack.c.l.b16 %v1336
    %v1429 = vunpack.c.l.b16 %v1337
    %v1430 = vunpack.c.h.b16 %v1337
    %v1431 = vunpack.c.l.b16 %v1338
    %v1432 = vunpack.c.l.b16 %v1339
    %v1433 = vunpack.c.h.b16 %v1339
    %v1434 = vunpack.c.l.b16 %v1340
    %v1435 = vunpack.c.l.b16 %v1341
    %v1436 = vunpack.c.h.b16 %v1341
    %v1437 = vunpack.c.l.b16 %v1342
    %v1438 = vunpack.c.l.b16 %v1343
    %v1439 = vunpack.c.h.b16 %v1343
    %v1440 = vunpack.c.l.b16 %v1344
    %v1441 = vunpack.c.l.b16 %v1345
    %v1442 = vunpack.c.h.b16 %v1345
    %v1443 = vunpack.c.l.b16 %v1346
    %v1444 = vpack.c.b16 %v1399, %v1396
    %v1445 = vpack.c.b16 %v1400, %v1397
    %v1446 = vpack.c.b16 %v1401, %v1398
    %v1447 = vpack.c.b16 %v1405, %v1402
    %v1448 = vpack.c.b16 %v1406, %v1403
    %v1449 = vpack.c.b16 %v1407, %v1404
    %v1450 = vpack.c.b16 %v1411, %v1408
    %v1451 = vpack.c.b16 %v1412, %v1409
    %v1452 = vpack.c.b16 %v1413, %v1410
    %v1453 = vpack.c.b16 %v1417, %v1414
    %v1454 = vpack.c.b16 %v1418, %v1415
    %v1455 = vpack.c.b16 %v1419, %v1416
    %v1456 = vpack.c.b16 %v1423, %v1420
    %v1457 = vpack.c.b16 %v1424, %v1421
    %v1458 = vpack.c.b16 %v1425, %v1422
    %v1459 = vpack.c.b16 %v1429, %v1426
    %v1460 = vpack.c.b16 %v1430, %v1427
    %v1461 = vpack.c.b16 %v1431, %v1428
    %v1462 = vpack.c.b16 %v1435, %v1432
    %v1463 = vpack.c.b16 %v1436, %v1433
    %v1464 = vpack.c.b16 %v1437, %v1434
    %v1465 = vpack.c.b16 %v1441, %v1438
    %v1466 = vpack.c.b16 %v1442, %v1439
    %v1467 = vpack.c.b16 %v1443, %v1440
    %1492 = vmatprep.subr.bf16.mxu0 %v1466
    %1493 = vmatpush1.bf16.msra.mxu0 %v1465
    %1494 = vmatprep.subr.bf16.mxu0 %v1463
    %1495 = vmatpush1.bf16.msra.mxu0 %v1462
    %1496 = vmatprep.subr.bf16.mxu0 %v1460
    %1497 = vmatpush1.bf16.msra.mxu0 %v1459
    %1498 = vmatprep.subr.bf16.mxu0 %v1457
    %1499 = vmatpush1.bf16.msra.mxu0 %v1456
    %1500 = vmatprep.subr.bf16.mxu0 %v1454
    %1501 = vmatpush1.bf16.msra.mxu0 %v1453
    %1502 = vmatprep.subr.bf16.mxu0 %v1451
    %1503 = vmatpush1.bf16.msra.mxu0 %v1450
    %1504 = vmatprep.subr.bf16.mxu0 %v1448
    %1505 = vmatpush1.bf16.msra.mxu0 %v1447
    %1506 = vmatprep.subr.bf16.mxu0 %v1445
    %1507 = vmatpush1.bf16.msra.mxu0 %v1444
    %1508 = vmatprep.subr.bf16.mxu0 0
    %1509 = vmatpush2.bf16.msra.mxu0 0
    %1510 = vmatprep.subr.bf16.mxu0 0
    %1511 = vmatpush2.bf16.msra.mxu0 0
    %1512 = vmatprep.subr.bf16.mxu0 0
    %1513 = vmatpush2.bf16.msra.mxu0 0
    %1514 = vmatprep.subr.bf16.mxu0 0
    %1515 = vmatpush2.bf16.msra.mxu0 0
    %1516 = vmatprep.subr.bf16.mxu0 0
    %1517 = vmatpush2.bf16.msra.mxu0 0
    %1518 = vmatprep.subr.bf16.mxu0 0
    %1519 = vmatpush2.bf16.msra.mxu0 0
    %1520 = vmatprep.subr.bf16.mxu0 0
    %1521 = vmatpush2.bf16.msra.mxu0 0
    %1522 = vmatprep.subr.bf16.mxu0 0
    %1523 = vmatpush2.bf16.msra.mxu0 0
    %1524 = vmatprep.mubr.bf16.mxu0 0
    %1525 = vmatmul.mubr.bf16.gmra.mxu0 %v1314
    %v1526 = vpop.f32.mrf.mxu0
    %v1527 = vadd.f32 %v1352, %v1526
    %v1528 = vpop.f32.mrf.mxu0
    %v1529 = vadd.f32 %v1356, %v1528
    %v1530 = vpop.f32.mrf.mxu0
    %v1531 = vpop.f32.mrf.mxu0
    %1532 = vdwg.mxu0
    %1533 = vmatprep.subr.bf16.mxu0 0
    %1534 = vmatpush1.bf16.msra.mxu0 %v1467
    %1535 = vmatprep.subr.bf16.mxu0 0
    %1536 = vmatpush1.bf16.msra.mxu0 %v1464
    %1537 = vmatprep.subr.bf16.mxu0 0
    %1538 = vmatpush1.bf16.msra.mxu0 %v1461
    %1539 = vmatprep.subr.bf16.mxu0 0
    %1540 = vmatpush1.bf16.msra.mxu0 %v1458
    %1541 = vmatprep.subr.bf16.mxu0 0
    %1542 = vmatpush1.bf16.msra.mxu0 %v1455
    %1543 = vmatprep.subr.bf16.mxu0 0
    %1544 = vmatpush1.bf16.msra.mxu0 %v1452
    %1545 = vmatprep.subr.bf16.mxu0 0
    %1546 = vmatpush1.bf16.msra.mxu0 %v1449
    %1547 = vmatprep.subr.bf16.mxu0 0
    %1548 = vmatpush1.bf16.msra.mxu0 %v1446
    %1549 = vmatprep.subr.bf16.mxu0 0
    %1550 = vmatpush2.bf16.msra.mxu0 0
    %1551 = vmatprep.subr.bf16.mxu0 0
    %1552 = vmatpush2.bf16.msra.mxu0 0
    %1553 = vmatprep.subr.bf16.mxu0 0
    %1554 = vmatpush2.bf16.msra.mxu0 0
    %1555 = vmatprep.subr.bf16.mxu0 0
    %1556 = vmatpush2.bf16.msra.mxu0 0
    %1557 = vmatprep.subr.bf16.mxu0 0
    %1558 = vmatpush2.bf16.msra.mxu0 0
    %1559 = vmatprep.subr.bf16.mxu0 0
    %1560 = vmatpush2.bf16.msra.mxu0 0
    %1561 = vmatprep.subr.bf16.mxu0 0
    %1562 = vmatpush2.bf16.msra.mxu0 0
    %1563 = vmatprep.subr.bf16.mxu0 0
    %1564 = vmatpush2.bf16.msra.mxu0 0
    %1565 = vmatprep.mubr.bf16.mxu0 0
    %1566 = vmatmul.mubr.bf16.gmra.mxu0 %v1314
    %v1567 = vpop.f32.mrf.mxu0
    %v1568 = vadd.f32 %v1360, %v1567
    %v1569 = vpop.f32.mrf.mxu0
    %v1570 = vpop.f32.mrf.mxu0
    %v1571 = vpop.f32.mrf.mxu0
    %1572 = vdwg.mxu0
    %v1573 = vadd.f32 %v1310, %v1527
    %v1574 = vxor.u32 %v1573, 2147483648
    %v1575 = vmul.f32 %v1574, 1.442695
    %v1576 = vpow.pop %v1575
    %v1577 = vadd.f32 %v1576, 1.0
    %v1578 = vrcp.pop %v1577
    %v1579 = vmul.f32 1.0, %v1578
    %v1580 = vadd.f32 %v1311, %v1529
    %v1581 = vxor.u32 %v1580, 2147483648
    %v1582 = vmul.f32 %v1581, 1.442695
    %v1583 = vpow.pop %v1582
    %v1584 = vadd.f32 %v1583, 1.0
    %v1585 = vrcp.pop %v1584
    %v1586 = vmul.f32 1.0, %v1585
    %v1587 = vmul.f32 %v1579, %v1568
    %v1588 = vadd.f32 %v1312, %v1587
    %v1589 = vtanh.pop %v1588
    %v1590 = vsub.f32 1.0, %v1586
    %v1591 = vmul.f32 %v1590, %v1589
    %v1592 = vmul.f32 %v1586, %v1313
    %v1593 = vadd.f32 %v1591, %v1592
    %1594 = vst [vmem:[#allocation2] sm:$0xff] %v1593
    %v1595 = vpack.c.bf16 %v1593, %v1593
    %s1596 = scalar_lea.vmem [#allocation10], 12
    %1597 = vst [vmem:[%s1596] sm:$0xf] %v1595
    %s1598 = smul.u32 4, 3
    %s1599 = smul.addr %s1598, 8
    %s1600 = scalar_lea.vmem [#allocation3], %s1599
    %v1601 = vld [vmem:[%s1600] sm:$0xff]
    %v1602 = vld [vmem:[%s1600 + $0x8] sm:$0xff]
    %v1603 = vld [vmem:[%s1600 + $0x10] sm:$0xff]
    %v1604 = vld [vmem:[#allocation2] sm:$0xff]
    %v1605 = vpack.c.bf16 %v1604, %v1604
    %v1606 = vld [vmem:[#allocation9] sm:$0xff]
    %v1607 = vld [vmem:[#allocation9 + $0x8] sm:$0xf]
    %v1608 = vld [vmem:[#allocation9 + $0xc] sm:$0xff]
    %v1609 = vld [vmem:[#allocation9 + $0x14] sm:$0xf]
    %v1610 = vld [vmem:[#allocation9 + $0x18] sm:$0xff]
    %v1611 = vld [vmem:[#allocation9 + $0x20] sm:$0xf]
    %v1612 = vld [vmem:[#allocation9 + $0x24] sm:$0xff]
    %v1613 = vld [vmem:[#allocation9 + $0x2c] sm:$0xf]
    %v1614 = vld [vmem:[#allocation9 + $0x30] sm:$0xff]
    %v1615 = vld [vmem:[#allocation9 + $0x38] sm:$0xf]
    %v1616 = vld [vmem:[#allocation9 + $0x3c] sm:$0xff]
    %v1617 = vld [vmem:[#allocation9 + $0x44] sm:$0xf]
    %v1618 = vld [vmem:[#allocation9 + $0x48] sm:$0xff]
    %v1619 = vld [vmem:[#allocation9 + $0x50] sm:$0xf]
    %v1620 = vld [vmem:[#allocation9 + $0x54] sm:$0xff]
    %v1621 = vld [vmem:[#allocation9 + $0x5c] sm:$0xf]
    %v1622 = vld [vmem:[#allocation9 + $0x60] sm:$0xff]
    %v1623 = vld [vmem:[#allocation9 + $0x68] sm:$0xf]
    %v1624 = vld [vmem:[#allocation9 + $0x6c] sm:$0xff]
    %v1625 = vld [vmem:[#allocation9 + $0x74] sm:$0xf]
    %v1626 = vld [vmem:[#allocation9 + $0x78] sm:$0xff]
    %v1627 = vld [vmem:[#allocation9 + $0x80] sm:$0xf]
    %v1628 = vld [vmem:[#allocation9 + $0x84] sm:$0xff]
    %v1629 = vld [vmem:[#allocation9 + $0x8c] sm:$0xf]
    %v1630 = vld [vmem:[#allocation9 + $0x90] sm:$0xff]
    %v1631 = vld [vmem:[#allocation9 + $0x98] sm:$0xf]
    %v1632 = vld [vmem:[#allocation9 + $0x9c] sm:$0xff]
    %v1633 = vld [vmem:[#allocation9 + $0xa4] sm:$0xf]
    %v1634 = vld [vmem:[#allocation9 + $0xa8] sm:$0xff]
    %v1635 = vld [vmem:[#allocation9 + $0xb0] sm:$0xf]
    %v1636 = vld [vmem:[#allocation9 + $0xb4] sm:$0xff]
    %v1637 = vld [vmem:[#allocation9 + $0xbc] sm:$0xf]
    %v1638 = vld [vmem:[%s4] sm:$0x7]
    %v1640 = vlaneseq
    %v1641 = vshrl.u32 %v1640, 7
    %v1642 = vsub.s32 0, %v1641
    %v1643 = vrot.slane %v1638, %v1642
    %v1644 = vlaneseq
    %v1645 = vshrl.u32 %v1644, 7
    %v1646 = vsub.s32 1, %v1645
    %v1647 = vrot.slane %v1638, %v1646
    %v1648 = vlaneseq
    %v1649 = vshrl.u32 %v1648, 7
    %v1650 = vsub.s32 2, %v1649
    %v1651 = vrot.slane %v1638, %v1650
    %v1687 = vunpack.c.l.b16 %v1606
    %v1688 = vunpack.c.h.b16 %v1606
    %v1689 = vunpack.c.l.b16 %v1607
    %v1690 = vunpack.c.l.b16 %v1608
    %v1691 = vunpack.c.h.b16 %v1608
    %v1692 = vunpack.c.l.b16 %v1609
    %v1693 = vunpack.c.l.b16 %v1610
    %v1694 = vunpack.c.h.b16 %v1610
    %v1695 = vunpack.c.l.b16 %v1611
    %v1696 = vunpack.c.l.b16 %v1612
    %v1697 = vunpack.c.h.b16 %v1612
    %v1698 = vunpack.c.l.b16 %v1613
    %v1699 = vunpack.c.l.b16 %v1614
    %v1700 = vunpack.c.h.b16 %v1614
    %v1701 = vunpack.c.l.b16 %v1615
    %v1702 = vunpack.c.l.b16 %v1616
    %v1703 = vunpack.c.h.b16 %v1616
    %v1704 = vunpack.c.l.b16 %v1617
    %v1705 = vunpack.c.l.b16 %v1618
    %v1706 = vunpack.c.h.b16 %v1618
    %v1707 = vunpack.c.l.b16 %v1619
    %v1708 = vunpack.c.l.b16 %v1620
    %v1709 = vunpack.c.h.b16 %v1620
    %v1710 = vunpack.c.l.b16 %v1621
    %v1711 = vunpack.c.l.b16 %v1622
    %v1712 = vunpack.c.h.b16 %v1622
    %v1713 = vunpack.c.l.b16 %v1623
    %v1714 = vunpack.c.l.b16 %v1624
    %v1715 = vunpack.c.h.b16 %v1624
    %v1716 = vunpack.c.l.b16 %v1625
    %v1717 = vunpack.c.l.b16 %v1626
    %v1718 = vunpack.c.h.b16 %v1626
    %v1719 = vunpack.c.l.b16 %v1627
    %v1720 = vunpack.c.l.b16 %v1628
    %v1721 = vunpack.c.h.b16 %v1628
    %v1722 = vunpack.c.l.b16 %v1629
    %v1723 = vunpack.c.l.b16 %v1630
    %v1724 = vunpack.c.h.b16 %v1630
    %v1725 = vunpack.c.l.b16 %v1631
    %v1726 = vunpack.c.l.b16 %v1632
    %v1727 = vunpack.c.h.b16 %v1632
    %v1728 = vunpack.c.l.b16 %v1633
    %v1729 = vunpack.c.l.b16 %v1634
    %v1730 = vunpack.c.h.b16 %v1634
    %v1731 = vunpack.c.l.b16 %v1635
    %v1732 = vunpack.c.l.b16 %v1636
    %v1733 = vunpack.c.h.b16 %v1636
    %v1734 = vunpack.c.l.b16 %v1637
    %v1735 = vpack.c.b16 %v1690, %v1687
    %v1736 = vpack.c.b16 %v1691, %v1688
    %v1737 = vpack.c.b16 %v1692, %v1689
    %v1738 = vpack.c.b16 %v1696, %v1693
    %v1739 = vpack.c.b16 %v1697, %v1694
    %v1740 = vpack.c.b16 %v1698, %v1695
    %v1741 = vpack.c.b16 %v1702, %v1699
    %v1742 = vpack.c.b16 %v1703, %v1700
    %v1743 = vpack.c.b16 %v1704, %v1701
    %v1744 = vpack.c.b16 %v1708, %v1705
    %v1745 = vpack.c.b16 %v1709, %v1706
    %v1746 = vpack.c.b16 %v1710, %v1707
    %v1747 = vpack.c.b16 %v1714, %v1711
    %v1748 = vpack.c.b16 %v1715, %v1712
    %v1749 = vpack.c.b16 %v1716, %v1713
    %v1750 = vpack.c.b16 %v1720, %v1717
    %v1751 = vpack.c.b16 %v1721, %v1718
    %v1752 = vpack.c.b16 %v1722, %v1719
    %v1753 = vpack.c.b16 %v1726, %v1723
    %v1754 = vpack.c.b16 %v1727, %v1724
    %v1755 = vpack.c.b16 %v1728, %v1725
    %v1756 = vpack.c.b16 %v1732, %v1729
    %v1757 = vpack.c.b16 %v1733, %v1730
    %v1758 = vpack.c.b16 %v1734, %v1731
    %1783 = vmatprep.subr.bf16.mxu0 %v1757
    %1784 = vmatpush1.bf16.msra.mxu0 %v1756
    %1785 = vmatprep.subr.bf16.mxu0 %v1754
    %1786 = vmatpush1.bf16.msra.mxu0 %v1753
    %1787 = vmatprep.subr.bf16.mxu0 %v1751
    %1788 = vmatpush1.bf16.msra.mxu0 %v1750
    %1789 = vmatprep.subr.bf16.mxu0 %v1748
    %1790 = vmatpush1.bf16.msra.mxu0 %v1747
    %1791 = vmatprep.subr.bf16.mxu0 %v1745
    %1792 = vmatpush1.bf16.msra.mxu0 %v1744
    %1793 = vmatprep.subr.bf16.mxu0 %v1742
    %1794 = vmatpush1.bf16.msra.mxu0 %v1741
    %1795 = vmatprep.subr.bf16.mxu0 %v1739
    %1796 = vmatpush1.bf16.msra.mxu0 %v1738
    %1797 = vmatprep.subr.bf16.mxu0 %v1736
    %1798 = vmatpush1.bf16.msra.mxu0 %v1735
    %1799 = vmatprep.subr.bf16.mxu0 0
    %1800 = vmatpush2.bf16.msra.mxu0 0
    %1801 = vmatprep.subr.bf16.mxu0 0
    %1802 = vmatpush2.bf16.msra.mxu0 0
    %1803 = vmatprep.subr.bf16.mxu0 0
    %1804 = vmatpush2.bf16.msra.mxu0 0
    %1805 = vmatprep.subr.bf16.mxu0 0
    %1806 = vmatpush2.bf16.msra.mxu0 0
    %1807 = vmatprep.subr.bf16.mxu0 0
    %1808 = vmatpush2.bf16.msra.mxu0 0
    %1809 = vmatprep.subr.bf16.mxu0 0
    %1810 = vmatpush2.bf16.msra.mxu0 0
    %1811 = vmatprep.subr.bf16.mxu0 0
    %1812 = vmatpush2.bf16.msra.mxu0 0
    %1813 = vmatprep.subr.bf16.mxu0 0
    %1814 = vmatpush2.bf16.msra.mxu0 0
    %1815 = vmatprep.mubr.bf16.mxu0 0
    %1816 = vmatmul.mubr.bf16.gmra.mxu0 %v1605
    %v1817 = vpop.f32.mrf.mxu0
    %v1818 = vadd.f32 %v1643, %v1817
    %v1819 = vpop.f32.mrf.mxu0
    %v1820 = vadd.f32 %v1647, %v1819
    %v1821 = vpop.f32.mrf.mxu0
    %v1822 = vpop.f32.mrf.mxu0
    %1823 = vdwg.mxu0
    %1824 = vmatprep.subr.bf16.mxu0 0
    %1825 = vmatpush1.bf16.msra.mxu0 %v1758
    %1826 = vmatprep.subr.bf16.mxu0 0
    %1827 = vmatpush1.bf16.msra.mxu0 %v1755
    %1828 = vmatprep.subr.bf16.mxu0 0
    %1829 = vmatpush1.bf16.msra.mxu0 %v1752
    %1830 = vmatprep.subr.bf16.mxu0 0
    %1831 = vmatpush1.bf16.msra.mxu0 %v1749
    %1832 = vmatprep.subr.bf16.mxu0 0
    %1833 = vmatpush1.bf16.msra.mxu0 %v1746
    %1834 = vmatprep.subr.bf16.mxu0 0
    %1835 = vmatpush1.bf16.msra.mxu0 %v1743
    %1836 = vmatprep.subr.bf16.mxu0 0
    %1837 = vmatpush1.bf16.msra.mxu0 %v1740
    %1838 = vmatprep.subr.bf16.mxu0 0
    %1839 = vmatpush1.bf16.msra.mxu0 %v1737
    %1840 = vmatprep.subr.bf16.mxu0 0
    %1841 = vmatpush2.bf16.msra.mxu0 0
    %1842 = vmatprep.subr.bf16.mxu0 0
    %1843 = vmatpush2.bf16.msra.mxu0 0
    %1844 = vmatprep.subr.bf16.mxu0 0
    %1845 = vmatpush2.bf16.msra.mxu0 0
    %1846 = vmatprep.subr.bf16.mxu0 0
    %1847 = vmatpush2.bf16.msra.mxu0 0
    %1848 = vmatprep.subr.bf16.mxu0 0
    %1849 = vmatpush2.bf16.msra.mxu0 0
    %1850 = vmatprep.subr.bf16.mxu0 0
    %1851 = vmatpush2.bf16.msra.mxu0 0
    %1852 = vmatprep.subr.bf16.mxu0 0
    %1853 = vmatpush2.bf16.msra.mxu0 0
    %1854 = vmatprep.subr.bf16.mxu0 0
    %1855 = vmatpush2.bf16.msra.mxu0 0
    %1856 = vmatprep.mubr.bf16.mxu0 0
    %1857 = vmatmul.mubr.bf16.gmra.mxu0 %v1605
    %v1858 = vpop.f32.mrf.mxu0
    %v1859 = vadd.f32 %v1651, %v1858
    %v1860 = vpop.f32.mrf.mxu0
    %v1861 = vpop.f32.mrf.mxu0
    %v1862 = vpop.f32.mrf.mxu0
    %1863 = vdwg.mxu0
    %v1864 = vadd.f32 %v1601, %v1818
    %v1865 = vxor.u32 %v1864, 2147483648
    %v1866 = vmul.f32 %v1865, 1.442695
    %v1867 = vpow.pop %v1866
    %v1868 = vadd.f32 %v1867, 1.0
    %v1869 = vrcp.pop %v1868
    %v1870 = vmul.f32 1.0, %v1869
    %v1871 = vadd.f32 %v1602, %v1820
    %v1872 = vxor.u32 %v1871, 2147483648
    %v1873 = vmul.f32 %v1872, 1.442695
    %v1874 = vpow.pop %v1873
    %v1875 = vadd.f32 %v1874, 1.0
    %v1876 = vrcp.pop %v1875
    %v1877 = vmul.f32 1.0, %v1876
    %v1878 = vmul.f32 %v1870, %v1859
    %v1879 = vadd.f32 %v1603, %v1878
    %v1880 = vtanh.pop %v1879
    %v1881 = vsub.f32 1.0, %v1877
    %v1882 = vmul.f32 %v1881, %v1880
    %v1883 = vmul.f32 %v1877, %v1604
    %v1884 = vadd.f32 %v1882, %v1883
    %1885 = vst [vmem:[#allocation2] sm:$0xff] %v1884
    %v1886 = vpack.c.bf16 %v1884, %v1884
    %s1887 = scalar_lea.vmem [#allocation10], 16
    %1888 = vst [vmem:[%s1887] sm:$0xf] %v1886
    %s1889 = smul.u32 5, 3
    %s1890 = smul.addr %s1889, 8
    %s1891 = scalar_lea.vmem [#allocation3], %s1890
    %v1892 = vld [vmem:[%s1891] sm:$0xff]
    %v1893 = vld [vmem:[%s1891 + $0x8] sm:$0xff]
    %v1894 = vld [vmem:[%s1891 + $0x10] sm:$0xff]
    %v1895 = vld [vmem:[#allocation2] sm:$0xff]
    %v1896 = vpack.c.bf16 %v1895, %v1895
    %v1897 = vld [vmem:[#allocation9] sm:$0xff]
    %v1898 = vld [vmem:[#allocation9 + $0x8] sm:$0xf]
    %v1899 = vld [vmem:[#allocation9 + $0xc] sm:$0xff]
    %v1900 = vld [vmem:[#allocation9 + $0x14] sm:$0xf]
    %v1901 = vld [vmem:[#allocation9 + $0x18] sm:$0xff]
    %v1902 = vld [vmem:[#allocation9 + $0x20] sm:$0xf]
    %v1903 = vld [vmem:[#allocation9 + $0x24] sm:$0xff]
    %v1904 = vld [vmem:[#allocation9 + $0x2c] sm:$0xf]
    %v1905 = vld [vmem:[#allocation9 + $0x30] sm:$0xff]
    %v1906 = vld [vmem:[#allocation9 + $0x38] sm:$0xf]
    %v1907 = vld [vmem:[#allocation9 + $0x3c] sm:$0xff]
    %v1908 = vld [vmem:[#allocation9 + $0x44] sm:$0xf]
    %v1909 = vld [vmem:[#allocation9 + $0x48] sm:$0xff]
    %v1910 = vld [vmem:[#allocation9 + $0x50] sm:$0xf]
    %v1911 = vld [vmem:[#allocation9 + $0x54] sm:$0xff]
    %v1912 = vld [vmem:[#allocation9 + $0x5c] sm:$0xf]
    %v1913 = vld [vmem:[#allocation9 + $0x60] sm:$0xff]
    %v1914 = vld [vmem:[#allocation9 + $0x68] sm:$0xf]
    %v1915 = vld [vmem:[#allocation9 + $0x6c] sm:$0xff]
    %v1916 = vld [vmem:[#allocation9 + $0x74] sm:$0xf]
    %v1917 = vld [vmem:[#allocation9 + $0x78] sm:$0xff]
    %v1918 = vld [vmem:[#allocation9 + $0x80] sm:$0xf]
    %v1919 = vld [vmem:[#allocation9 + $0x84] sm:$0xff]
    %v1920 = vld [vmem:[#allocation9 + $0x8c] sm:$0xf]
    %v1921 = vld [vmem:[#allocation9 + $0x90] sm:$0xff]
    %v1922 = vld [vmem:[#allocation9 + $0x98] sm:$0xf]
    %v1923 = vld [vmem:[#allocation9 + $0x9c] sm:$0xff]
    %v1924 = vld [vmem:[#allocation9 + $0xa4] sm:$0xf]
    %v1925 = vld [vmem:[#allocation9 + $0xa8] sm:$0xff]
    %v1926 = vld [vmem:[#allocation9 + $0xb0] sm:$0xf]
    %v1927 = vld [vmem:[#allocation9 + $0xb4] sm:$0xff]
    %v1928 = vld [vmem:[#allocation9 + $0xbc] sm:$0xf]
    %v1929 = vld [vmem:[%s4] sm:$0x7]
    %v1931 = vlaneseq
    %v1932 = vshrl.u32 %v1931, 7
    %v1933 = vsub.s32 0, %v1932
    %v1934 = vrot.slane %v1929, %v1933
    %v1935 = vlaneseq
    %v1936 = vshrl.u32 %v1935, 7
    %v1937 = vsub.s32 1, %v1936
    %v1938 = vrot.slane %v1929, %v1937
    %v1939 = vlaneseq
    %v1940 = vshrl.u32 %v1939, 7
    %v1941 = vsub.s32 2, %v1940
    %v1942 = vrot.slane %v1929, %v1941
    %v1978 = vunpack.c.l.b16 %v1897
    %v1979 = vunpack.c.h.b16 %v1897
    %v1980 = vunpack.c.l.b16 %v1898
    %v1981 = vunpack.c.l.b16 %v1899
    %v1982 = vunpack.c.h.b16 %v1899
    %v1983 = vunpack.c.l.b16 %v1900
    %v1984 = vunpack.c.l.b16 %v1901
    %v1985 = vunpack.c.h.b16 %v1901
    %v1986 = vunpack.c.l.b16 %v1902
    %v1987 = vunpack.c.l.b16 %v1903
    %v1988 = vunpack.c.h.b16 %v1903
    %v1989 = vunpack.c.l.b16 %v1904
    %v1990 = vunpack.c.l.b16 %v1905
    %v1991 = vunpack.c.h.b16 %v1905
    %v1992 = vunpack.c.l.b16 %v1906
    %v1993 = vunpack.c.l.b16 %v1907
    %v1994 = vunpack.c.h.b16 %v1907
    %v1995 = vunpack.c.l.b16 %v1908
    %v1996 = vunpack.c.l.b16 %v1909
    %v1997 = vunpack.c.h.b16 %v1909
    %v1998 = vunpack.c.l.b16 %v1910
    %v1999 = vunpack.c.l.b16 %v1911
    %v2000 = vunpack.c.h.b16 %v1911
    %v2001 = vunpack.c.l.b16 %v1912
    %v2002 = vunpack.c.l.b16 %v1913
    %v2003 = vunpack.c.h.b16 %v1913
    %v2004 = vunpack.c.l.b16 %v1914
    %v2005 = vunpack.c.l.b16 %v1915
    %v2006 = vunpack.c.h.b16 %v1915
    %v2007 = vunpack.c.l.b16 %v1916
    %v2008 = vunpack.c.l.b16 %v1917
    %v2009 = vunpack.c.h.b16 %v1917
    %v2010 = vunpack.c.l.b16 %v1918
    %v2011 = vunpack.c.l.b16 %v1919
    %v2012 = vunpack.c.h.b16 %v1919
    %v2013 = vunpack.c.l.b16 %v1920
    %v2014 = vunpack.c.l.b16 %v1921
    %v2015 = vunpack.c.h.b16 %v1921
    %v2016 = vunpack.c.l.b16 %v1922
    %v2017 = vunpack.c.l.b16 %v1923
    %v2018 = vunpack.c.h.b16 %v1923
    %v2019 = vunpack.c.l.b16 %v1924
    %v2020 = vunpack.c.l.b16 %v1925
    %v2021 = vunpack.c.h.b16 %v1925
    %v2022 = vunpack.c.l.b16 %v1926
    %v2023 = vunpack.c.l.b16 %v1927
    %v2024 = vunpack.c.h.b16 %v1927
    %v2025 = vunpack.c.l.b16 %v1928
    %v2026 = vpack.c.b16 %v1981, %v1978
    %v2027 = vpack.c.b16 %v1982, %v1979
    %v2028 = vpack.c.b16 %v1983, %v1980
    %v2029 = vpack.c.b16 %v1987, %v1984
    %v2030 = vpack.c.b16 %v1988, %v1985
    %v2031 = vpack.c.b16 %v1989, %v1986
    %v2032 = vpack.c.b16 %v1993, %v1990
    %v2033 = vpack.c.b16 %v1994, %v1991
    %v2034 = vpack.c.b16 %v1995, %v1992
    %v2035 = vpack.c.b16 %v1999, %v1996
    %v2036 = vpack.c.b16 %v2000, %v1997
    %v2037 = vpack.c.b16 %v2001, %v1998
    %v2038 = vpack.c.b16 %v2005, %v2002
    %v2039 = vpack.c.b16 %v2006, %v2003
    %v2040 = vpack.c.b16 %v2007, %v2004
    %v2041 = vpack.c.b16 %v2011, %v2008
    %v2042 = vpack.c.b16 %v2012, %v2009
    %v2043 = vpack.c.b16 %v2013, %v2010
    %v2044 = vpack.c.b16 %v2017, %v2014
    %v2045 = vpack.c.b16 %v2018, %v2015
    %v2046 = vpack.c.b16 %v2019, %v2016
    %v2047 = vpack.c.b16 %v2023, %v2020
    %v2048 = vpack.c.b16 %v2024, %v2021
    %v2049 = vpack.c.b16 %v2025, %v2022
    %2074 = vmatprep.subr.bf16.mxu0 %v2048
    %2075 = vmatpush1.bf16.msra.mxu0 %v2047
    %2076 = vmatprep.subr.bf16.mxu0 %v2045
    %2077 = vmatpush1.bf16.msra.mxu0 %v2044
    %2078 = vmatprep.subr.bf16.mxu0 %v2042
    %2079 = vmatpush1.bf16.msra.mxu0 %v2041
    %2080 = vmatprep.subr.bf16.mxu0 %v2039
    %2081 = vmatpush1.bf16.msra.mxu0 %v2038
    %2082 = vmatprep.subr.bf16.mxu0 %v2036
    %2083 = vmatpush1.bf16.msra.mxu0 %v2035
    %2084 = vmatprep.subr.bf16.mxu0 %v2033
    %2085 = vmatpush1.bf16.msra.mxu0 %v2032
    %2086 = vmatprep.subr.bf16.mxu0 %v2030
    %2087 = vmatpush1.bf16.msra.mxu0 %v2029
    %2088 = vmatprep.subr.bf16.mxu0 %v2027
    %2089 = vmatpush1.bf16.msra.mxu0 %v2026
    %2090 = vmatprep.subr.bf16.mxu0 0
    %2091 = vmatpush2.bf16.msra.mxu0 0
    %2092 = vmatprep.subr.bf16.mxu0 0
    %2093 = vmatpush2.bf16.msra.mxu0 0
    %2094 = vmatprep.subr.bf16.mxu0 0
    %2095 = vmatpush2.bf16.msra.mxu0 0
    %2096 = vmatprep.subr.bf16.mxu0 0
    %2097 = vmatpush2.bf16.msra.mxu0 0
    %2098 = vmatprep.subr.bf16.mxu0 0
    %2099 = vmatpush2.bf16.msra.mxu0 0
    %2100 = vmatprep.subr.bf16.mxu0 0
    %2101 = vmatpush2.bf16.msra.mxu0 0
    %2102 = vmatprep.subr.bf16.mxu0 0
    %2103 = vmatpush2.bf16.msra.mxu0 0
    %2104 = vmatprep.subr.bf16.mxu0 0
    %2105 = vmatpush2.bf16.msra.mxu0 0
    %2106 = vmatprep.mubr.bf16.mxu0 0
    %2107 = vmatmul.mubr.bf16.gmra.mxu0 %v1896
    %v2108 = vpop.f32.mrf.mxu0
    %v2109 = vadd.f32 %v1934, %v2108
    %v2110 = vpop.f32.mrf.mxu0
    %v2111 = vadd.f32 %v1938, %v2110
    %v2112 = vpop.f32.mrf.mxu0
    %v2113 = vpop.f32.mrf.mxu0
    %2114 = vdwg.mxu0
    %2115 = vmatprep.subr.bf16.mxu0 0
    %2116 = vmatpush1.bf16.msra.mxu0 %v2049
    %2117 = vmatprep.subr.bf16.mxu0 0
    %2118 = vmatpush1.bf16.msra.mxu0 %v2046
    %2119 = vmatprep.subr.bf16.mxu0 0
    %2120 = vmatpush1.bf16.msra.mxu0 %v2043
    %2121 = vmatprep.subr.bf16.mxu0 0
    %2122 = vmatpush1.bf16.msra.mxu0 %v2040
    %2123 = vmatprep.subr.bf16.mxu0 0
    %2124 = vmatpush1.bf16.msra.mxu0 %v2037
    %2125 = vmatprep.subr.bf16.mxu0 0
    %2126 = vmatpush1.bf16.msra.mxu0 %v2034
    %2127 = vmatprep.subr.bf16.mxu0 0
    %2128 = vmatpush1.bf16.msra.mxu0 %v2031
    %2129 = vmatprep.subr.bf16.mxu0 0
    %2130 = vmatpush1.bf16.msra.mxu0 %v2028
    %2131 = vmatprep.subr.bf16.mxu0 0
    %2132 = vmatpush2.bf16.msra.mxu0 0
    %2133 = vmatprep.subr.bf16.mxu0 0
    %2134 = vmatpush2.bf16.msra.mxu0 0
    %2135 = vmatprep.subr.bf16.mxu0 0
    %2136 = vmatpush2.bf16.msra.mxu0 0
    %2137 = vmatprep.subr.bf16.mxu0 0
    %2138 = vmatpush2.bf16.msra.mxu0 0
    %2139 = vmatprep.subr.bf16.mxu0 0
    %2140 = vmatpush2.bf16.msra.mxu0 0
    %2141 = vmatprep.subr.bf16.mxu0 0
    %2142 = vmatpush2.bf16.msra.mxu0 0
    %2143 = vmatprep.subr.bf16.mxu0 0
    %2144 = vmatpush2.bf16.msra.mxu0 0
    %2145 = vmatprep.subr.bf16.mxu0 0
    %2146 = vmatpush2.bf16.msra.mxu0 0
    %2147 = vmatprep.mubr.bf16.mxu0 0
    %2148 = vmatmul.mubr.bf16.gmra.mxu0 %v1896
    %v2149 = vpop.f32.mrf.mxu0
    %v2150 = vadd.f32 %v1942, %v2149
    %v2151 = vpop.f32.mrf.mxu0
    %v2152 = vpop.f32.mrf.mxu0
    %v2153 = vpop.f32.mrf.mxu0
    %2154 = vdwg.mxu0
    %v2155 = vadd.f32 %v1892, %v2109
    %v2156 = vxor.u32 %v2155, 2147483648
    %v2157 = vmul.f32 %v2156, 1.442695
    %v2158 = vpow.pop %v2157
    %v2159 = vadd.f32 %v2158, 1.0
    %v2160 = vrcp.pop %v2159
    %v2161 = vmul.f32 1.0, %v2160
    %v2162 = vadd.f32 %v1893, %v2111
    %v2163 = vxor.u32 %v2162, 2147483648
    %v2164 = vmul.f32 %v2163, 1.442695
    %v2165 = vpow.pop %v2164
    %v2166 = vadd.f32 %v2165, 1.0
    %v2167 = vrcp.pop %v2166
    %v2168 = vmul.f32 1.0, %v2167
    %v2169 = vmul.f32 %v2161, %v2150
    %v2170 = vadd.f32 %v1894, %v2169
    %v2171 = vtanh.pop %v2170
    %v2172 = vsub.f32 1.0, %v2168
    %v2173 = vmul.f32 %v2172, %v2171
    %v2174 = vmul.f32 %v2168, %v1895
    %v2175 = vadd.f32 %v2173, %v2174
    %2176 = vst [vmem:[#allocation2] sm:$0xff] %v2175
    %v2177 = vpack.c.bf16 %v2175, %v2175
    %s2178 = scalar_lea.vmem [#allocation10], 20
    %2179 = vst [vmem:[%s2178] sm:$0xf] %v2177
    %s2180 = smul.u32 6, 3
    %s2181 = smul.addr %s2180, 8
    %s2182 = scalar_lea.vmem [#allocation3], %s2181
    %v2183 = vld [vmem:[%s2182] sm:$0xff]
    %v2184 = vld [vmem:[%s2182 + $0x8] sm:$0xff]
    %v2185 = vld [vmem:[%s2182 + $0x10] sm:$0xff]
    %v2186 = vld [vmem:[#allocation2] sm:$0xff]
    %v2187 = vpack.c.bf16 %v2186, %v2186
    %v2188 = vld [vmem:[#allocation9] sm:$0xff]
    %v2189 = vld [vmem:[#allocation9 + $0x8] sm:$0xf]
    %v2190 = vld [vmem:[#allocation9 + $0xc] sm:$0xff]
    %v2191 = vld [vmem:[#allocation9 + $0x14] sm:$0xf]
    %v2192 = vld [vmem:[#allocation9 + $0x18] sm:$0xff]
    %v2193 = vld [vmem:[#allocation9 + $0x20] sm:$0xf]
    %v2194 = vld [vmem:[#allocation9 + $0x24] sm:$0xff]
    %v2195 = vld [vmem:[#allocation9 + $0x2c] sm:$0xf]
    %v2196 = vld [vmem:[#allocation9 + $0x30] sm:$0xff]
    %v2197 = vld [vmem:[#allocation9 + $0x38] sm:$0xf]
    %v2198 = vld [vmem:[#allocation9 + $0x3c] sm:$0xff]
    %v2199 = vld [vmem:[#allocation9 + $0x44] sm:$0xf]
    %v2200 = vld [vmem:[#allocation9 + $0x48] sm:$0xff]
    %v2201 = vld [vmem:[#allocation9 + $0x50] sm:$0xf]
    %v2202 = vld [vmem:[#allocation9 + $0x54] sm:$0xff]
    %v2203 = vld [vmem:[#allocation9 + $0x5c] sm:$0xf]
    %v2204 = vld [vmem:[#allocation9 + $0x60] sm:$0xff]
    %v2205 = vld [vmem:[#allocation9 + $0x68] sm:$0xf]
    %v2206 = vld [vmem:[#allocation9 + $0x6c] sm:$0xff]
    %v2207 = vld [vmem:[#allocation9 + $0x74] sm:$0xf]
    %v2208 = vld [vmem:[#allocation9 + $0x78] sm:$0xff]
    %v2209 = vld [vmem:[#allocation9 + $0x80] sm:$0xf]
    %v2210 = vld [vmem:[#allocation9 + $0x84] sm:$0xff]
    %v2211 = vld [vmem:[#allocation9 + $0x8c] sm:$0xf]
    %v2212 = vld [vmem:[#allocation9 + $0x90] sm:$0xff]
    %v2213 = vld [vmem:[#allocation9 + $0x98] sm:$0xf]
    %v2214 = vld [vmem:[#allocation9 + $0x9c] sm:$0xff]
    %v2215 = vld [vmem:[#allocation9 + $0xa4] sm:$0xf]
    %v2216 = vld [vmem:[#allocation9 + $0xa8] sm:$0xff]
    %v2217 = vld [vmem:[#allocation9 + $0xb0] sm:$0xf]
    %v2218 = vld [vmem:[#allocation9 + $0xb4] sm:$0xff]
    %v2219 = vld [vmem:[#allocation9 + $0xbc] sm:$0xf]
    %v2220 = vld [vmem:[%s4] sm:$0x7]
    %v2222 = vlaneseq
    %v2223 = vshrl.u32 %v2222, 7
    %v2224 = vsub.s32 0, %v2223
    %v2225 = vrot.slane %v2220, %v2224
    %v2226 = vlaneseq
    %v2227 = vshrl.u32 %v2226, 7
    %v2228 = vsub.s32 1, %v2227
    %v2229 = vrot.slane %v2220, %v2228
    %v2230 = vlaneseq
    %v2231 = vshrl.u32 %v2230, 7
    %v2232 = vsub.s32 2, %v2231
    %v2233 = vrot.slane %v2220, %v2232
    %v2269 = vunpack.c.l.b16 %v2188
    %v2270 = vunpack.c.h.b16 %v2188
    %v2271 = vunpack.c.l.b16 %v2189
    %v2272 = vunpack.c.l.b16 %v2190
    %v2273 = vunpack.c.h.b16 %v2190
    %v2274 = vunpack.c.l.b16 %v2191
    %v2275 = vunpack.c.l.b16 %v2192
    %v2276 = vunpack.c.h.b16 %v2192
    %v2277 = vunpack.c.l.b16 %v2193
    %v2278 = vunpack.c.l.b16 %v2194
    %v2279 = vunpack.c.h.b16 %v2194
    %v2280 = vunpack.c.l.b16 %v2195
    %v2281 = vunpack.c.l.b16 %v2196
    %v2282 = vunpack.c.h.b16 %v2196
    %v2283 = vunpack.c.l.b16 %v2197
    %v2284 = vunpack.c.l.b16 %v2198
    %v2285 = vunpack.c.h.b16 %v2198
    %v2286 = vunpack.c.l.b16 %v2199
    %v2287 = vunpack.c.l.b16 %v2200
    %v2288 = vunpack.c.h.b16 %v2200
    %v2289 = vunpack.c.l.b16 %v2201
    %v2290 = vunpack.c.l.b16 %v2202
    %v2291 = vunpack.c.h.b16 %v2202
    %v2292 = vunpack.c.l.b16 %v2203
    %v2293 = vunpack.c.l.b16 %v2204
    %v2294 = vunpack.c.h.b16 %v2204
    %v2295 = vunpack.c.l.b16 %v2205
    %v2296 = vunpack.c.l.b16 %v2206
    %v2297 = vunpack.c.h.b16 %v2206
    %v2298 = vunpack.c.l.b16 %v2207
    %v2299 = vunpack.c.l.b16 %v2208
    %v2300 = vunpack.c.h.b16 %v2208
    %v2301 = vunpack.c.l.b16 %v2209
    %v2302 = vunpack.c.l.b16 %v2210
    %v2303 = vunpack.c.h.b16 %v2210
    %v2304 = vunpack.c.l.b16 %v2211
    %v2305 = vunpack.c.l.b16 %v2212
    %v2306 = vunpack.c.h.b16 %v2212
    %v2307 = vunpack.c.l.b16 %v2213
    %v2308 = vunpack.c.l.b16 %v2214
    %v2309 = vunpack.c.h.b16 %v2214
    %v2310 = vunpack.c.l.b16 %v2215
    %v2311 = vunpack.c.l.b16 %v2216
    %v2312 = vunpack.c.h.b16 %v2216
    %v2313 = vunpack.c.l.b16 %v2217
    %v2314 = vunpack.c.l.b16 %v2218
    %v2315 = vunpack.c.h.b16 %v2218
    %v2316 = vunpack.c.l.b16 %v2219
    %v2317 = vpack.c.b16 %v2272, %v2269
    %v2318 = vpack.c.b16 %v2273, %v2270
    %v2319 = vpack.c.b16 %v2274, %v2271
    %v2320 = vpack.c.b16 %v2278, %v2275
    %v2321 = vpack.c.b16 %v2279, %v2276
    %v2322 = vpack.c.b16 %v2280, %v2277
    %v2323 = vpack.c.b16 %v2284, %v2281
    %v2324 = vpack.c.b16 %v2285, %v2282
    %v2325 = vpack.c.b16 %v2286, %v2283
    %v2326 = vpack.c.b16 %v2290, %v2287
    %v2327 = vpack.c.b16 %v2291, %v2288
    %v2328 = vpack.c.b16 %v2292, %v2289
    %v2329 = vpack.c.b16 %v2296, %v2293
    %v2330 = vpack.c.b16 %v2297, %v2294
    %v2331 = vpack.c.b16 %v2298, %v2295
    %v2332 = vpack.c.b16 %v2302, %v2299
    %v2333 = vpack.c.b16 %v2303, %v2300
    %v2334 = vpack.c.b16 %v2304, %v2301
    %v2335 = vpack.c.b16 %v2308, %v2305
    %v2336 = vpack.c.b16 %v2309, %v2306
    %v2337 = vpack.c.b16 %v2310, %v2307
    %v2338 = vpack.c.b16 %v2314, %v2311
    %v2339 = vpack.c.b16 %v2315, %v2312
    %v2340 = vpack.c.b16 %v2316, %v2313
    %2365 = vmatprep.subr.bf16.mxu0 %v2339
    %2366 = vmatpush1.bf16.msra.mxu0 %v2338
    %2367 = vmatprep.subr.bf16.mxu0 %v2336
    %2368 = vmatpush1.bf16.msra.mxu0 %v2335
    %2369 = vmatprep.subr.bf16.mxu0 %v2333
    %2370 = vmatpush1.bf16.msra.mxu0 %v2332
    %2371 = vmatprep.subr.bf16.mxu0 %v2330
    %2372 = vmatpush1.bf16.msra.mxu0 %v2329
    %2373 = vmatprep.subr.bf16.mxu0 %v2327
    %2374 = vmatpush1.bf16.msra.mxu0 %v2326
    %2375 = vmatprep.subr.bf16.mxu0 %v2324
    %2376 = vmatpush1.bf16.msra.mxu0 %v2323
    %2377 = vmatprep.subr.bf16.mxu0 %v2321
    %2378 = vmatpush1.bf16.msra.mxu0 %v2320
    %2379 = vmatprep.subr.bf16.mxu0 %v2318
    %2380 = vmatpush1.bf16.msra.mxu0 %v2317
    %2381 = vmatprep.subr.bf16.mxu0 0
    %2382 = vmatpush2.bf16.msra.mxu0 0
    %2383 = vmatprep.subr.bf16.mxu0 0
    %2384 = vmatpush2.bf16.msra.mxu0 0
    %2385 = vmatprep.subr.bf16.mxu0 0
    %2386 = vmatpush2.bf16.msra.mxu0 0
    %2387 = vmatprep.subr.bf16.mxu0 0
    %2388 = vmatpush2.bf16.msra.mxu0 0
    %2389 = vmatprep.subr.bf16.mxu0 0
    %2390 = vmatpush2.bf16.msra.mxu0 0
    %2391 = vmatprep.subr.bf16.mxu0 0
    %2392 = vmatpush2.bf16.msra.mxu0 0
    %2393 = vmatprep.subr.bf16.mxu0 0
    %2394 = vmatpush2.bf16.msra.mxu0 0
    %2395 = vmatprep.subr.bf16.mxu0 0
    %2396 = vmatpush2.bf16.msra.mxu0 0
    %2397 = vmatprep.mubr.bf16.mxu0 0
    %2398 = vmatmul.mubr.bf16.gmra.mxu0 %v2187
    %v2399 = vpop.f32.mrf.mxu0
    %v2400 = vadd.f32 %v2225, %v2399
    %v2401 = vpop.f32.mrf.mxu0
    %v2402 = vadd.f32 %v2229, %v2401
    %v2403 = vpop.f32.mrf.mxu0
    %v2404 = vpop.f32.mrf.mxu0
    %2405 = vdwg.mxu0
    %2406 = vmatprep.subr.bf16.mxu0 0
    %2407 = vmatpush1.bf16.msra.mxu0 %v2340
    %2408 = vmatprep.subr.bf16.mxu0 0
    %2409 = vmatpush1.bf16.msra.mxu0 %v2337
    %2410 = vmatprep.subr.bf16.mxu0 0
    %2411 = vmatpush1.bf16.msra.mxu0 %v2334
    %2412 = vmatprep.subr.bf16.mxu0 0
    %2413 = vmatpush1.bf16.msra.mxu0 %v2331
    %2414 = vmatprep.subr.bf16.mxu0 0
    %2415 = vmatpush1.bf16.msra.mxu0 %v2328
    %2416 = vmatprep.subr.bf16.mxu0 0
    %2417 = vmatpush1.bf16.msra.mxu0 %v2325
    %2418 = vmatprep.subr.bf16.mxu0 0
    %2419 = vmatpush1.bf16.msra.mxu0 %v2322
    %2420 = vmatprep.subr.bf16.mxu0 0
    %2421 = vmatpush1.bf16.msra.mxu0 %v2319
    %2422 = vmatprep.subr.bf16.mxu0 0
    %2423 = vmatpush2.bf16.msra.mxu0 0
    %2424 = vmatprep.subr.bf16.mxu0 0
    %2425 = vmatpush2.bf16.msra.mxu0 0
    %2426 = vmatprep.subr.bf16.mxu0 0
    %2427 = vmatpush2.bf16.msra.mxu0 0
    %2428 = vmatprep.subr.bf16.mxu0 0
    %2429 = vmatpush2.bf16.msra.mxu0 0
    %2430 = vmatprep.subr.bf16.mxu0 0
    %2431 = vmatpush2.bf16.msra.mxu0 0
    %2432 = vmatprep.subr.bf16.mxu0 0
    %2433 = vmatpush2.bf16.msra.mxu0 0
    %2434 = vmatprep.subr.bf16.mxu0 0
    %2435 = vmatpush2.bf16.msra.mxu0 0
    %2436 = vmatprep.subr.bf16.mxu0 0
    %2437 = vmatpush2.bf16.msra.mxu0 0
    %2438 = vmatprep.mubr.bf16.mxu0 0
    %2439 = vmatmul.mubr.bf16.gmra.mxu0 %v2187
    %v2440 = vpop.f32.mrf.mxu0
    %v2441 = vadd.f32 %v2233, %v2440
    %v2442 = vpop.f32.mrf.mxu0
    %v2443 = vpop.f32.mrf.mxu0
    %v2444 = vpop.f32.mrf.mxu0
    %2445 = vdwg.mxu0
    %v2446 = vadd.f32 %v2183, %v2400
    %v2447 = vxor.u32 %v2446, 2147483648
    %v2448 = vmul.f32 %v2447, 1.442695
    %v2449 = vpow.pop %v2448
    %v2450 = vadd.f32 %v2449, 1.0
    %v2451 = vrcp.pop %v2450
    %v2452 = vmul.f32 1.0, %v2451
    %v2453 = vadd.f32 %v2184, %v2402
    %v2454 = vxor.u32 %v2453, 2147483648
    %v2455 = vmul.f32 %v2454, 1.442695
    %v2456 = vpow.pop %v2455
    %v2457 = vadd.f32 %v2456, 1.0
    %v2458 = vrcp.pop %v2457
    %v2459 = vmul.f32 1.0, %v2458
    %v2460 = vmul.f32 %v2452, %v2441
    %v2461 = vadd.f32 %v2185, %v2460
    %v2462 = vtanh.pop %v2461
    %v2463 = vsub.f32 1.0, %v2459
    %v2464 = vmul.f32 %v2463, %v2462
    %v2465 = vmul.f32 %v2459, %v2186
    %v2466 = vadd.f32 %v2464, %v2465
    %2467 = vst [vmem:[#allocation2] sm:$0xff] %v2466
    %v2468 = vpack.c.bf16 %v2466, %v2466
    %s2469 = scalar_lea.vmem [#allocation10], 24
    %2470 = vst [vmem:[%s2469] sm:$0xf] %v2468
    %s2471 = smul.u32 7, 3
    %s2472 = smul.addr %s2471, 8
    %s2473 = scalar_lea.vmem [#allocation3], %s2472
    %v2474 = vld [vmem:[%s2473] sm:$0xff]
    %v2475 = vld [vmem:[%s2473 + $0x8] sm:$0xff]
    %v2476 = vld [vmem:[%s2473 + $0x10] sm:$0xff]
    %v2477 = vld [vmem:[#allocation2] sm:$0xff]
    %v2478 = vpack.c.bf16 %v2477, %v2477
    %v2479 = vld [vmem:[#allocation9] sm:$0xff]
    %v2480 = vld [vmem:[#allocation9 + $0x8] sm:$0xf]
    %v2481 = vld [vmem:[#allocation9 + $0xc] sm:$0xff]
    %v2482 = vld [vmem:[#allocation9 + $0x14] sm:$0xf]
    %v2483 = vld [vmem:[#allocation9 + $0x18] sm:$0xff]
    %v2484 = vld [vmem:[#allocation9 + $0x20] sm:$0xf]
    %v2485 = vld [vmem:[#allocation9 + $0x24] sm:$0xff]
    %v2486 = vld [vmem:[#allocation9 + $0x2c] sm:$0xf]
    %v2487 = vld [vmem:[#allocation9 + $0x30] sm:$0xff]
    %v2488 = vld [vmem:[#allocation9 + $0x38] sm:$0xf]
    %v2489 = vld [vmem:[#allocation9 + $0x3c] sm:$0xff]
    %v2490 = vld [vmem:[#allocation9 + $0x44] sm:$0xf]
    %v2491 = vld [vmem:[#allocation9 + $0x48] sm:$0xff]
    %v2492 = vld [vmem:[#allocation9 + $0x50] sm:$0xf]
    %v2493 = vld [vmem:[#allocation9 + $0x54] sm:$0xff]
    %v2494 = vld [vmem:[#allocation9 + $0x5c] sm:$0xf]
    %v2495 = vld [vmem:[#allocation9 + $0x60] sm:$0xff]
    %v2496 = vld [vmem:[#allocation9 + $0x68] sm:$0xf]
    %v2497 = vld [vmem:[#allocation9 + $0x6c] sm:$0xff]
    %v2498 = vld [vmem:[#allocation9 + $0x74] sm:$0xf]
    %v2499 = vld [vmem:[#allocation9 + $0x78] sm:$0xff]
    %v2500 = vld [vmem:[#allocation9 + $0x80] sm:$0xf]
    %v2501 = vld [vmem:[#allocation9 + $0x84] sm:$0xff]
    %v2502 = vld [vmem:[#allocation9 + $0x8c] sm:$0xf]
    %v2503 = vld [vmem:[#allocation9 + $0x90] sm:$0xff]
    %v2504 = vld [vmem:[#allocation9 + $0x98] sm:$0xf]
    %v2505 = vld [vmem:[#allocation9 + $0x9c] sm:$0xff]
    %v2506 = vld [vmem:[#allocation9 + $0xa4] sm:$0xf]
    %v2507 = vld [vmem:[#allocation9 + $0xa8] sm:$0xff]
    %v2508 = vld [vmem:[#allocation9 + $0xb0] sm:$0xf]
    %v2509 = vld [vmem:[#allocation9 + $0xb4] sm:$0xff]
    %v2510 = vld [vmem:[#allocation9 + $0xbc] sm:$0xf]
    %v2511 = vld [vmem:[%s4] sm:$0x7]
    %v2513 = vlaneseq
    %v2514 = vshrl.u32 %v2513, 7
    %v2515 = vsub.s32 0, %v2514
    %v2516 = vrot.slane %v2511, %v2515
    %v2517 = vlaneseq
    %v2518 = vshrl.u32 %v2517, 7
    %v2519 = vsub.s32 1, %v2518
    %v2520 = vrot.slane %v2511, %v2519
    %v2521 = vlaneseq
    %v2522 = vshrl.u32 %v2521, 7
    %v2523 = vsub.s32 2, %v2522
    %v2524 = vrot.slane %v2511, %v2523
    %v2560 = vunpack.c.l.b16 %v2479
    %v2561 = vunpack.c.h.b16 %v2479
    %v2562 = vunpack.c.l.b16 %v2480
    %v2563 = vunpack.c.l.b16 %v2481
    %v2564 = vunpack.c.h.b16 %v2481
    %v2565 = vunpack.c.l.b16 %v2482
    %v2566 = vunpack.c.l.b16 %v2483
    %v2567 = vunpack.c.h.b16 %v2483
    %v2568 = vunpack.c.l.b16 %v2484
    %v2569 = vunpack.c.l.b16 %v2485
    %v2570 = vunpack.c.h.b16 %v2485
    %v2571 = vunpack.c.l.b16 %v2486
    %v2572 = vunpack.c.l.b16 %v2487
    %v2573 = vunpack.c.h.b16 %v2487
    %v2574 = vunpack.c.l.b16 %v2488
    %v2575 = vunpack.c.l.b16 %v2489
    %v2576 = vunpack.c.h.b16 %v2489
    %v2577 = vunpack.c.l.b16 %v2490
    %v2578 = vunpack.c.l.b16 %v2491
    %v2579 = vunpack.c.h.b16 %v2491
    %v2580 = vunpack.c.l.b16 %v2492
    %v2581 = vunpack.c.l.b16 %v2493
    %v2582 = vunpack.c.h.b16 %v2493
    %v2583 = vunpack.c.l.b16 %v2494
    %v2584 = vunpack.c.l.b16 %v2495
    %v2585 = vunpack.c.h.b16 %v2495
    %v2586 = vunpack.c.l.b16 %v2496
    %v2587 = vunpack.c.l.b16 %v2497
    %v2588 = vunpack.c.h.b16 %v2497
    %v2589 = vunpack.c.l.b16 %v2498
    %v2590 = vunpack.c.l.b16 %v2499
    %v2591 = vunpack.c.h.b16 %v2499
    %v2592 = vunpack.c.l.b16 %v2500
    %v2593 = vunpack.c.l.b16 %v2501
    %v2594 = vunpack.c.h.b16 %v2501
    %v2595 = vunpack.c.l.b16 %v2502
    %v2596 = vunpack.c.l.b16 %v2503
    %v2597 = vunpack.c.h.b16 %v2503
    %v2598 = vunpack.c.l.b16 %v2504
    %v2599 = vunpack.c.l.b16 %v2505
    %v2600 = vunpack.c.h.b16 %v2505
    %v2601 = vunpack.c.l.b16 %v2506
    %v2602 = vunpack.c.l.b16 %v2507
    %v2603 = vunpack.c.h.b16 %v2507
    %v2604 = vunpack.c.l.b16 %v2508
    %v2605 = vunpack.c.l.b16 %v2509
    %v2606 = vunpack.c.h.b16 %v2509
    %v2607 = vunpack.c.l.b16 %v2510
    %v2608 = vpack.c.b16 %v2563, %v2560
    %v2609 = vpack.c.b16 %v2564, %v2561
    %v2610 = vpack.c.b16 %v2565, %v2562
    %v2611 = vpack.c.b16 %v2569, %v2566
    %v2612 = vpack.c.b16 %v2570, %v2567
    %v2613 = vpack.c.b16 %v2571, %v2568
    %v2614 = vpack.c.b16 %v2575, %v2572
    %v2615 = vpack.c.b16 %v2576, %v2573
    %v2616 = vpack.c.b16 %v2577, %v2574
    %v2617 = vpack.c.b16 %v2581, %v2578
    %v2618 = vpack.c.b16 %v2582, %v2579
    %v2619 = vpack.c.b16 %v2583, %v2580
    %v2620 = vpack.c.b16 %v2587, %v2584
    %v2621 = vpack.c.b16 %v2588, %v2585
    %v2622 = vpack.c.b16 %v2589, %v2586
    %v2623 = vpack.c.b16 %v2593, %v2590
    %v2624 = vpack.c.b16 %v2594, %v2591
    %v2625 = vpack.c.b16 %v2595, %v2592
    %v2626 = vpack.c.b16 %v2599, %v2596
    %v2627 = vpack.c.b16 %v2600, %v2597
    %v2628 = vpack.c.b16 %v2601, %v2598
    %v2629 = vpack.c.b16 %v2605, %v2602
    %v2630 = vpack.c.b16 %v2606, %v2603
    %v2631 = vpack.c.b16 %v2607, %v2604
    %2656 = vmatprep.subr.bf16.mxu0 %v2630
    %2657 = vmatpush1.bf16.msra.mxu0 %v2629
    %2658 = vmatprep.subr.bf16.mxu0 %v2627
    %2659 = vmatpush1.bf16.msra.mxu0 %v2626
    %2660 = vmatprep.subr.bf16.mxu0 %v2624
    %2661 = vmatpush1.bf16.msra.mxu0 %v2623
    %2662 = vmatprep.subr.bf16.mxu0 %v2621
    %2663 = vmatpush1.bf16.msra.mxu0 %v2620
    %2664 = vmatprep.subr.bf16.mxu0 %v2618
    %2665 = vmatpush1.bf16.msra.mxu0 %v2617
    %2666 = vmatprep.subr.bf16.mxu0 %v2615
    %2667 = vmatpush1.bf16.msra.mxu0 %v2614
    %2668 = vmatprep.subr.bf16.mxu0 %v2612
    %2669 = vmatpush1.bf16.msra.mxu0 %v2611
    %2670 = vmatprep.subr.bf16.mxu0 %v2609
    %2671 = vmatpush1.bf16.msra.mxu0 %v2608
    %2672 = vmatprep.subr.bf16.mxu0 0
    %2673 = vmatpush2.bf16.msra.mxu0 0
    %2674 = vmatprep.subr.bf16.mxu0 0
    %2675 = vmatpush2.bf16.msra.mxu0 0
    %2676 = vmatprep.subr.bf16.mxu0 0
    %2677 = vmatpush2.bf16.msra.mxu0 0
    %2678 = vmatprep.subr.bf16.mxu0 0
    %2679 = vmatpush2.bf16.msra.mxu0 0
    %2680 = vmatprep.subr.bf16.mxu0 0
    %2681 = vmatpush2.bf16.msra.mxu0 0
    %2682 = vmatprep.subr.bf16.mxu0 0
    %2683 = vmatpush2.bf16.msra.mxu0 0
    %2684 = vmatprep.subr.bf16.mxu0 0
    %2685 = vmatpush2.bf16.msra.mxu0 0
    %2686 = vmatprep.subr.bf16.mxu0 0
    %2687 = vmatpush2.bf16.msra.mxu0 0
    %2688 = vmatprep.mubr.bf16.mxu0 0
    %2689 = vmatmul.mubr.bf16.gmra.mxu0 %v2478
    %v2690 = vpop.f32.mrf.mxu0
    %v2691 = vadd.f32 %v2516, %v2690
    %v2692 = vpop.f32.mrf.mxu0
    %v2693 = vadd.f32 %v2520, %v2692
    %v2694 = vpop.f32.mrf.mxu0
    %v2695 = vpop.f32.mrf.mxu0
    %2696 = vdwg.mxu0
    %2697 = vmatprep.subr.bf16.mxu0 0
    %2698 = vmatpush1.bf16.msra.mxu0 %v2631
    %2699 = vmatprep.subr.bf16.mxu0 0
    %2700 = vmatpush1.bf16.msra.mxu0 %v2628
    %2701 = vmatprep.subr.bf16.mxu0 0
    %2702 = vmatpush1.bf16.msra.mxu0 %v2625
    %2703 = vmatprep.subr.bf16.mxu0 0
    %2704 = vmatpush1.bf16.msra.mxu0 %v2622
    %2705 = vmatprep.subr.bf16.mxu0 0
    %2706 = vmatpush1.bf16.msra.mxu0 %v2619
    %2707 = vmatprep.subr.bf16.mxu0 0
    %2708 = vmatpush1.bf16.msra.mxu0 %v2616
    %2709 = vmatprep.subr.bf16.mxu0 0
    %2710 = vmatpush1.bf16.msra.mxu0 %v2613
    %2711 = vmatprep.subr.bf16.mxu0 0
    %2712 = vmatpush1.bf16.msra.mxu0 %v2610
    %2713 = vmatprep.subr.bf16.mxu0 0
    %2714 = vmatpush2.bf16.msra.mxu0 0
    %2715 = vmatprep.subr.bf16.mxu0 0
    %2716 = vmatpush2.bf16.msra.mxu0 0
    %2717 = vmatprep.subr.bf16.mxu0 0
    %2718 = vmatpush2.bf16.msra.mxu0 0
    %2719 = vmatprep.subr.bf16.mxu0 0
    %2720 = vmatpush2.bf16.msra.mxu0 0
    %2721 = vmatprep.subr.bf16.mxu0 0
    %2722 = vmatpush2.bf16.msra.mxu0 0
    %2723 = vmatprep.subr.bf16.mxu0 0
    %2724 = vmatpush2.bf16.msra.mxu0 0
    %2725 = vmatprep.subr.bf16.mxu0 0
    %2726 = vmatpush2.bf16.msra.mxu0 0
    %2727 = vmatprep.subr.bf16.mxu0 0
    %2728 = vmatpush2.bf16.msra.mxu0 0
    %2729 = vmatprep.mubr.bf16.mxu0 0
    %2730 = vmatmul.mubr.bf16.gmra.mxu0 %v2478
    %v2731 = vpop.f32.mrf.mxu0
    %v2732 = vadd.f32 %v2524, %v2731
    %v2733 = vpop.f32.mrf.mxu0
    %v2734 = vpop.f32.mrf.mxu0
    %v2735 = vpop.f32.mrf.mxu0
    %2736 = vdwg.mxu0
    %v2737 = vadd.f32 %v2474, %v2691
    %v2738 = vxor.u32 %v2737, 2147483648
    %v2739 = vmul.f32 %v2738, 1.442695
    %v2740 = vpow.pop %v2739
    %v2741 = vadd.f32 %v2740, 1.0
    %v2742 = vrcp.pop %v2741
    %v2743 = vmul.f32 1.0, %v2742
    %v2744 = vadd.f32 %v2475, %v2693
    %v2745 = vxor.u32 %v2744, 2147483648
    %v2746 = vmul.f32 %v2745, 1.442695
    %v2747 = vpow.pop %v2746
    %v2748 = vadd.f32 %v2747, 1.0
    %v2749 = vrcp.pop %v2748
    %v2750 = vmul.f32 1.0, %v2749
    %v2751 = vmul.f32 %v2743, %v2732
    %v2752 = vadd.f32 %v2476, %v2751
    %v2753 = vtanh.pop %v2752
    %v2754 = vsub.f32 1.0, %v2750
    %v2755 = vmul.f32 %v2754, %v2753
    %v2756 = vmul.f32 %v2750, %v2477
    %v2757 = vadd.f32 %v2755, %v2756
    %2758 = vst [vmem:[#allocation2] sm:$0xff] %v2757
    %v2759 = vpack.c.bf16 %v2757, %v2757
    %s2760 = scalar_lea.vmem [#allocation10], 28
    %2761 = vst [vmem:[%s2760] sm:$0xf] %v2759
    // Predicated region
    $region34: #{tpu_custom_call.1} parent=1 // pred_check
      _
    $region35: #{tpu_custom_call.1} parent=1 // pred_check_branch
      %2763 = sbr.rel (0) target = $region37
    $region36: #{tpu_custom_call.1} parent=1 // pred_region
      %s2765 = ssub.s32 512, 512
      %2766 = vsyncadd [#allocation6], %s2765
      %s2767 = sshll.u32 [#allocation10], 4
      %s2768 = int_to_ptr.vmem [resolvable:$true] %s2767
      %2773 = dma.vmem_to_hbm [thread:$0]  %s2768, 512, %s5, [#allocation6], 64, 64, 4
    $region37: #{tpu_custom_call.1} parent=1 // pred_fallthru
      _
    // Predicated region
    $region38: #{tpu_custom_call.1} parent=1 // pred_check
      _
    $region39: #{tpu_custom_call.1} parent=1 // pred_check_branch
      %2775 = sbr.rel (0) target = $region41
    $region40: #{tpu_custom_call.1} parent=1 // pred_region
      %2776 = dma.done [#allocation6], 512
    $region41: #{tpu_custom_call.1} parent=1 // pred_fallthru
      _
    %2777 = vsyncpa [#allocation5], 1
    %2778 = vsyncpa [#allocation8], 1
    %2779 = vsyncpa [#allocation6], 1

</llo_original>
